<compile_context>
chip_gen: v7x
topology: tpu7x:2x2x1
jax: 0.10.0
libtpu: 0.0.40
codegen_flags: <defaults>
</compile_context>

<pallas_src>
import math

import jax
import jax.numpy as jnp
from jax.experimental import pallas as pl
from jax.experimental.pallas import tpu as pltpu


# ----------------------------- config --------------------------------------
VOCAB_SIZE = 8
HIDDEN = 32
NUM_HEADS = 4
HEAD_DIM = HIDDEN // NUM_HEADS
INTERMEDIATE = 64
NUM_LAYERS = 2
MAX_POS = 16
TYPE_VOCAB = 2
LN_EPS = 1e-12

BATCH = 2
SEQ = 8

# matmul operand dtype (f32 accumulate everywhere); elementwise/LN/softmax stay f32
MXU_DTYPE = jnp.bfloat16


# ----------------------------- kernel helpers -------------------------------
def _layernorm(x, gamma, beta):
    # matches BertLayerNorm: biased variance, eps inside sqrt
    u = jnp.mean(x, axis=-1, keepdims=True)
    s = jnp.mean((x - u) ** 2, axis=-1, keepdims=True)
    return gamma * ((x - u) / jnp.sqrt(s + LN_EPS)) + beta


def _gelu(x):
    return x * 0.5 * (1.0 + jax.lax.erf(x / math.sqrt(2.0)))


# ----------------------------- fused kernel ---------------------------------
def bert_fused_kernel(mask_ref, we_ref, te_ref, pe_ref, embg_ref, embb_ref,
                      wqkv_ref, bqkv_ref, wo_ref, bo_ref, ln1g_ref, ln1b_ref,
                      wi_ref, bi_ref, wf_ref, bf_ref, ln2g_ref, ln2b_ref,
                      wp_ref, bp_ref,
                      enc_ref, pooled_ref):
    # --- embeddings: word + position + token-type, then LayerNorm (dropout=identity)
    hid = _layernorm(we_ref[0] + pe_ref[...] + te_ref[0],
                     embg_ref[...], embb_ref[...])                       # (S, H) f32

    # --- additive attention mask, broadcast ONCE (hoisted out of layer/head loops)
    maskb = jnp.broadcast_to(mask_ref[0], (NUM_HEADS, SEQ, SEQ))          # (NH, S, S)
    scale = 1.0 / math.sqrt(HEAD_DIM)

    # --- all encoder layers, statically unrolled inside the single kernel
    for l in range(NUM_LAYERS):
        # fused QKV projection: (S,H) @ (H,3H) on the MXU, f32 accumulate
        qkv = jnp.dot(hid.astype(MXU_DTYPE), wqkv_ref[l],
                      preferred_element_type=jnp.float32) + bqkv_ref[l]   # (S, 3H) f32

        # split heads (static lane slices) and batch them on a leading heads axis
        qh = jnp.stack([qkv[:, h * HEAD_DIM:(h + 1) * HEAD_DIM]
                        for h in range(NUM_HEADS)]).astype(MXU_DTYPE)     # (NH, S, DH)
        kh = jnp.stack([qkv[:, HIDDEN + h * HEAD_DIM:HIDDEN + (h + 1) * HEAD_DIM]
                        for h in range(NUM_HEADS)]).astype(MXU_DTYPE)
        vh = jnp.stack([qkv[:, 2 * HIDDEN + h * HEAD_DIM:2 * HIDDEN + (h + 1) * HEAD_DIM]
                        for h in range(NUM_HEADS)]).astype(MXU_DTYPE)

        # batched scaled-dot-product attention over all heads (one dot_general each)
        scores = jnp.einsum('hqd,hkd->hqk', qh, kh,
                            preferred_element_type=jnp.float32) * scale + maskb
        probs = jax.nn.softmax(scores, axis=-1)          # f32; attention dropout = identity
        ctx = jnp.einsum('hqk,hkd->hqd', probs.astype(MXU_DTYPE), vh,
                         preferred_element_type=jnp.float32)              # (NH, S, DH)

        # output projection with per-head weight slabs, summed over heads
        # (replaces the lane concatenate + (H,H) dot of the previous version)
        attn_h = jnp.einsum('hqd,hdo->hqo', ctx.astype(MXU_DTYPE), wo_ref[l],
                            preferred_element_type=jnp.float32)           # (NH, S, H)
        attn = jnp.sum(attn_h, axis=0) + bo_ref[l]                        # (S, H)
        h1 = _layernorm(attn + hid, ln1g_ref[l], ln1b_ref[l])

        # feed-forward: GELU(h1 @ Wi + bi) @ Wf + bf, residual + LayerNorm
        inter = _gelu(jnp.dot(h1.astype(MXU_DTYPE), wi_ref[l],
                              preferred_element_type=jnp.float32) + bi_ref[l])
        ffn = jnp.dot(inter.astype(MXU_DTYPE), wf_ref[l],
                      preferred_element_type=jnp.float32) + bf_ref[l]
        hid = _layernorm(ffn + h1, ln2g_ref[l], ln2b_ref[l])

        enc_ref[0, l] = hid                               # encoder layer l output

    # --- pooler: first-token dense + tanh (fused; no separate pallas_call)
    pooled = jnp.tanh(jnp.dot(hid[0:1, :].astype(MXU_DTYPE), wp_ref[...],
                              preferred_element_type=jnp.float32) + bp_ref[...])
    pooled_ref[0] = pooled


# ----------------------------- wrapper --------------------------------------
def _const_spec(shape):
    n = len(shape)
    return pl.BlockSpec(shape, lambda b, _n=n: (0,) * _n)


def run_bert_fused(ext_mask, we, te, pe, p):
    B, S, H = we.shape
    L = NUM_LAYERS
    I = INTERMEDIATE
    in_specs = [
        pl.BlockSpec((1, 1, S), lambda b: (b, 0, 0)),       # additive mask   (B,1,S)
        pl.BlockSpec((1, S, H), lambda b: (b, 0, 0)),       # word embeddings (B,S,H)
        pl.BlockSpec((1, S, H), lambda b: (b, 0, 0)),       # type embeddings (B,S,H)
        _const_spec((S, H)),                                 # position embeddings
        _const_spec((1, H)), _const_spec((1, H)),            # embedding LN gamma/beta
        _const_spec((L, H, 3 * H)), _const_spec((L, 1, 3 * H)),             # fused QKV
        _const_spec((L, NUM_HEADS, HEAD_DIM, H)), _const_spec((L, 1, H)),   # attn out proj
        _const_spec((L, 1, H)), _const_spec((L, 1, H)),      # LN1 gamma/beta
        _const_spec((L, H, I)), _const_spec((L, 1, I)),      # FFN in
        _const_spec((L, I, H)), _const_spec((L, 1, H)),      # FFN out
        _const_spec((L, 1, H)), _const_spec((L, 1, H)),      # LN2 gamma/beta
        _const_spec((H, H)), _const_spec((1, H)),            # pooler
    ]
    out_shape = (
        jax.ShapeDtypeStruct((B, L, S, H), jnp.float32),     # all encoded layers
        jax.ShapeDtypeStruct((B, 1, H), jnp.float32),        # pooled output
    )
    out_specs = (
        pl.BlockSpec((1, L, S, H), lambda b: (b, 0, 0, 0)),
        pl.BlockSpec((1, 1, H), lambda b: (b, 0, 0)),
    )
    return pl.pallas_call(
        bert_fused_kernel,
        out_shape=out_shape,
        grid=(B,),
        in_specs=in_specs,
        out_specs=out_specs,
        compiler_params=pltpu.CompilerParams(dimension_semantics=("parallel",)),
    )(ext_mask, we, te, pe, p["emb_ln_g"], p["emb_ln_b"],
      p["wqkv"], p["bqkv"], p["wo_h"], p["bo"], p["ln1_g"], p["ln1_b"],
      p["wi"], p["bi"], p["wf"], p["bf"], p["ln2_g"], p["ln2_b"],
      p["pooler_w"], p["pooler_b"])


# ----------------------------- parameters -----------------------------------
def init_params(key):
    """Per-module parameters (Linear weights stored (in,out) so y = x @ W + b)."""
    def normal(k, shape, std=0.02):
        return std * jax.random.normal(k, shape, dtype=jnp.float32)

    keys = jax.random.split(key, 4 + NUM_LAYERS * 6)
    ki = iter(keys)

    word_emb = normal(next(ki), (VOCAB_SIZE, HIDDEN)).at[0].set(0.0)   # padding_idx=0
    pos_emb = normal(next(ki), (MAX_POS, HIDDEN))
    type_emb = normal(next(ki), (TYPE_VOCAB, HIDDEN))

    layers = []
    for _ in range(NUM_LAYERS):
        layers.append({
            "wq": normal(next(ki), (HIDDEN, HIDDEN)),
            "wk": normal(next(ki), (HIDDEN, HIDDEN)),
            "wv": normal(next(ki), (HIDDEN, HIDDEN)),
            "wo": normal(next(ki), (HIDDEN, HIDDEN)),
            "wi": normal(next(ki), (HIDDEN, INTERMEDIATE)),
            "wf": normal(next(ki), (INTERMEDIATE, HIDDEN)),
            "bq": jnp.zeros((1, HIDDEN), jnp.float32),
            "bk": jnp.zeros((1, HIDDEN), jnp.float32),
            "bv": jnp.zeros((1, HIDDEN), jnp.float32),
            "bo": jnp.zeros((1, HIDDEN), jnp.float32),
            "bi": jnp.zeros((1, INTERMEDIATE), jnp.float32),
            "bf": jnp.zeros((1, HIDDEN), jnp.float32),
            "ln1_g": jnp.ones((1, HIDDEN), jnp.float32),
            "ln1_b": jnp.zeros((1, HIDDEN), jnp.float32),
            "ln2_g": jnp.ones((1, HIDDEN), jnp.float32),
            "ln2_b": jnp.zeros((1, HIDDEN), jnp.float32),
        })

    return {
        "word_emb": word_emb, "pos_emb": pos_emb, "type_emb": type_emb,
        "emb_ln_g": jnp.ones((1, HIDDEN), jnp.float32),
        "emb_ln_b": jnp.zeros((1, HIDDEN), jnp.float32),
        "layers": layers,
        "pooler_w": normal(next(ki), (HIDDEN, HIDDEN)),
        "pooler_b": jnp.zeros((1, HIDDEN), jnp.float32),
    }


def pack_params(raw):
    """Stack per-layer params over a leading layer axis, fuse QKV, split the
    output-projection rows per head, and cast matmul weights to bf16."""
    L = NUM_LAYERS

    def stack(name):
        return jnp.stack([lp[name] for lp in raw["layers"]])

    wqkv = jnp.concatenate([stack("wq"), stack("wk"), stack("wv")], axis=-1)   # (L,H,3H)
    bqkv = jnp.concatenate([stack("bq"), stack("bk"), stack("bv")], axis=-1)   # (L,1,3H)
    wo_h = stack("wo").reshape(L, NUM_HEADS, HEAD_DIM, HIDDEN)                 # per-head rows

    return {
        "word_emb": raw["word_emb"], "pos_emb": raw["pos_emb"], "type_emb": raw["type_emb"],
        "emb_ln_g": raw["emb_ln_g"], "emb_ln_b": raw["emb_ln_b"],
        "wqkv": wqkv.astype(MXU_DTYPE), "bqkv": bqkv,
        "wo_h": wo_h.astype(MXU_DTYPE), "bo": stack("bo"),
        "ln1_g": stack("ln1_g"), "ln1_b": stack("ln1_b"),
        "wi": stack("wi").astype(MXU_DTYPE), "bi": stack("bi"),
        "wf": stack("wf").astype(MXU_DTYPE), "bf": stack("bf"),
        "ln2_g": stack("ln2_g"), "ln2_b": stack("ln2_b"),
        "pooler_w": raw["pooler_w"].astype(MXU_DTYPE), "pooler_b": raw["pooler_b"],
    }


# ----------------------------- model forward --------------------------------
def bert_model_forward(params, input_ids, token_type_ids=None, attention_mask=None,
                       output_all_encoded_layers=True):
    B, S = input_ids.shape
    if attention_mask is None:
        attention_mask = jnp.ones_like(input_ids)
    if token_type_ids is None:
        token_type_ids = jnp.zeros_like(input_ids)

    # extended attention mask: (1 - mask) * -10000, shaped (B, 1, S)
    ext_mask = ((1.0 - attention_mask.astype(jnp.float32)) * -10000.0).reshape(B, 1, S)

    # embedding gathers stay in plain JAX (glue); everything else runs in one kernel
    we = jnp.take(params["word_emb"], input_ids, axis=0)        # (B,S,H)
    te = jnp.take(params["type_emb"], token_type_ids, axis=0)   # (B,S,H)
    pe = params["pos_emb"][:S]                                  # (S,H)

    enc, pooled = run_bert_fused(ext_mask, we, te, pe, params)
    pooled = pooled[:, 0, :]                                    # (B,H)
    encoded_layers = [enc[:, l] for l in range(NUM_LAYERS)]

    if not output_all_encoded_layers:
        return encoded_layers[-1], pooled
    return encoded_layers, pooled


# ----------------------------- main -----------------------------------------
if __name__ == "__main__":
    key = jax.random.PRNGKey(0)
    pkey, ikey, tkey = jax.random.split(key, 3)

    params = pack_params(init_params(pkey))
    input_ids = jax.random.randint(ikey, (BATCH, SEQ), 0, VOCAB_SIZE, dtype=jnp.int32)
    token_type_ids = jax.random.randint(tkey, (BATCH, SEQ), 0, TYPE_VOCAB, dtype=jnp.int32)
    attention_mask = jnp.ones((BATCH, SEQ), dtype=jnp.int32)

    encoded_layers, pooled = bert_model_forward(
        params, input_ids, token_type_ids, attention_mask,
        output_all_encoded_layers=True)

    jax.block_until_ready(encoded_layers[-1])
    jax.block_until_ready(pooled)

    assert encoded_layers[-1].shape == (BATCH, SEQ, HIDDEN)
    assert pooled.shape == (BATCH, HIDDEN)
    assert len(encoded_layers) == NUM_LAYERS
    print("KERNEL_OK")
</pallas_src>

<mosaic_0001>
module attributes {stable_mosaic.version = 11 : i64} {
  func.func @bert_fused_kernel(%arg0: i32, %arg1: memref<1x1x8xf32, #tpu.memory_space<vmem>>, %arg2: memref<1x8x32xf32, #tpu.memory_space<vmem>>, %arg3: memref<1x8x32xf32, #tpu.memory_space<vmem>>, %arg4: memref<8x32xf32, #tpu.memory_space<vmem>>, %arg5: memref<1x32xf32, #tpu.memory_space<vmem>>, %arg6: memref<1x32xf32, #tpu.memory_space<vmem>>, %arg7: memref<2x32x96xbf16, #tpu.memory_space<vmem>>, %arg8: memref<2x1x96xf32, #tpu.memory_space<vmem>>, %arg9: memref<2x4x8x32xbf16, #tpu.memory_space<vmem>>, %arg10: memref<2x1x32xf32, #tpu.memory_space<vmem>>, %arg11: memref<2x1x32xf32, #tpu.memory_space<vmem>>, %arg12: memref<2x1x32xf32, #tpu.memory_space<vmem>>, %arg13: memref<2x32x64xbf16, #tpu.memory_space<vmem>>, %arg14: memref<2x1x64xf32, #tpu.memory_space<vmem>>, %arg15: memref<2x64x32xbf16, #tpu.memory_space<vmem>>, %arg16: memref<2x1x32xf32, #tpu.memory_space<vmem>>, %arg17: memref<2x1x32xf32, #tpu.memory_space<vmem>>, %arg18: memref<2x1x32xf32, #tpu.memory_space<vmem>>, %arg19: memref<32x32xbf16, #tpu.memory_space<vmem>>, %arg20: memref<1x32xf32, #tpu.memory_space<vmem>>, %arg21: memref<1x2x8x32xf32, #tpu.memory_space<vmem>>, %arg22: memref<1x1x32xf32, #tpu.memory_space<vmem>>) attributes {dimension_semantics = [#tpu.dimension_semantics<parallel>], iteration_bounds = array<i64: 2>, scalar_prefetch = 0 : i64, scratch_operands = 0 : i64, tpu.core_type = #tpu.core_type<tc>, window_params = [{transform_indices = @transform_0, window_bounds = array<i64: 1, 1, 8>}, {transform_indices = @transform_1, window_bounds = array<i64: 1, 8, 32>}, {transform_indices = @transform_2, window_bounds = array<i64: 1, 8, 32>}, {pipeline_mode = #tpu.pipeline_mode<synchronous>, transform_indices = @transform_3, window_bounds = array<i64: 8, 32>}, {pipeline_mode = #tpu.pipeline_mode<synchronous>, transform_indices = @transform_4, window_bounds = array<i64: 1, 32>}, {pipeline_mode = #tpu.pipeline_mode<synchronous>, transform_indices = @transform_5, window_bounds = array<i64: 1, 32>}, {pipeline_mode = #tpu.pipeline_mode<synchronous>, transform_indices = @transform_6, window_bounds = array<i64: 2, 32, 96>}, {pipeline_mode = #tpu.pipeline_mode<synchronous>, transform_indices = @transform_7, window_bounds = array<i64: 2, 1, 96>}, {pipeline_mode = #tpu.pipeline_mode<synchronous>, transform_indices = @transform_8, window_bounds = array<i64: 2, 4, 8, 32>}, {pipeline_mode = #tpu.pipeline_mode<synchronous>, transform_indices = @transform_9, window_bounds = array<i64: 2, 1, 32>}, {pipeline_mode = #tpu.pipeline_mode<synchronous>, transform_indices = @transform_10, window_bounds = array<i64: 2, 1, 32>}, {pipeline_mode = #tpu.pipeline_mode<synchronous>, transform_indices = @transform_11, window_bounds = array<i64: 2, 1, 32>}, {pipeline_mode = #tpu.pipeline_mode<synchronous>, transform_indices = @transform_12, window_bounds = array<i64: 2, 32, 64>}, {pipeline_mode = #tpu.pipeline_mode<synchronous>, transform_indices = @transform_13, window_bounds = array<i64: 2, 1, 64>}, {pipeline_mode = #tpu.pipeline_mode<synchronous>, transform_indices = @transform_14, window_bounds = array<i64: 2, 64, 32>}, {pipeline_mode = #tpu.pipeline_mode<synchronous>, transform_indices = @transform_15, window_bounds = array<i64: 2, 1, 32>}, {pipeline_mode = #tpu.pipeline_mode<synchronous>, transform_indices = @transform_16, window_bounds = array<i64: 2, 1, 32>}, {pipeline_mode = #tpu.pipeline_mode<synchronous>, transform_indices = @transform_17, window_bounds = array<i64: 2, 1, 32>}, {pipeline_mode = #tpu.pipeline_mode<synchronous>, transform_indices = @transform_18, window_bounds = array<i64: 32, 32>}, {pipeline_mode = #tpu.pipeline_mode<synchronous>, transform_indices = @transform_19, window_bounds = array<i64: 1, 32>}, {transform_indices = @transform_20, window_bounds = array<i64: 1, 2, 8, 32>}, {transform_indices = @transform_21, window_bounds = array<i64: 1, 1, 32>}]} {
    %c0 = arith.constant 0 : index
    %c0_0 = arith.constant 0 : index
    %c0_1 = arith.constant 0 : index
    %0 = vector.load %arg2[%c0, %c0_0, %c0_1] : memref<1x8x32xf32, #tpu.memory_space<vmem>>, vector<1x8x32xf32>
    %1 = vector.shape_cast %0 : vector<1x8x32xf32> to vector<8x32xf32>
    %c0_2 = arith.constant 0 : index
    %c0_3 = arith.constant 0 : index
    %2 = vector.load %arg4[%c0_2, %c0_3] : memref<8x32xf32, #tpu.memory_space<vmem>>, vector<8x32xf32>
    %3 = arith.addf %1, %2 : vector<8x32xf32>
    %c0_4 = arith.constant 0 : index
    %c0_5 = arith.constant 0 : index
    %c0_6 = arith.constant 0 : index
    %4 = vector.load %arg3[%c0_4, %c0_5, %c0_6] : memref<1x8x32xf32, #tpu.memory_space<vmem>>, vector<1x8x32xf32>
    %5 = vector.shape_cast %4 : vector<1x8x32xf32> to vector<8x32xf32>
    %6 = arith.addf %3, %5 : vector<8x32xf32>
    %c0_7 = arith.constant 0 : index
    %c0_8 = arith.constant 0 : index
    %7 = vector.load %arg5[%c0_7, %c0_8] : memref<1x32xf32, #tpu.memory_space<vmem>>, vector<1x32xf32>
    %c0_9 = arith.constant 0 : index
    %c0_10 = arith.constant 0 : index
    %8 = vector.load %arg6[%c0_9, %c0_10] : memref<1x32xf32, #tpu.memory_space<vmem>>, vector<1x32xf32>
    %cst = arith.constant dense<0.000000e+00> : vector<8xf32>
    %9 = vector.multi_reduction <add>, %6, %cst [1] : vector<8x32xf32> to vector<8xf32>
    %10 = vector.shape_cast %9 : vector<8xf32> to vector<8x1xf32>
    %cst_11 = arith.constant 3.200000e+01 : f32
    %11 = vector.broadcast %cst_11 : f32 to vector<8x1xf32>
    %12 = arith.divf %10, %11 : vector<8x1xf32>
    %13 = vector.broadcast %12 : vector<8x1xf32> to vector<8x32xf32>
    %14 = arith.subf %6, %13 : vector<8x32xf32>
    %15 = arith.mulf %14, %14 : vector<8x32xf32>
    %cst_12 = arith.constant dense<0.000000e+00> : vector<8xf32>
    %16 = vector.multi_reduction <add>, %15, %cst_12 [1] : vector<8x32xf32> to vector<8xf32>
    %17 = vector.shape_cast %16 : vector<8xf32> to vector<8x1xf32>
    %cst_13 = arith.constant 3.200000e+01 : f32
    %18 = vector.broadcast %cst_13 : f32 to vector<8x1xf32>
    %19 = arith.divf %17, %18 : vector<8x1xf32>
    %20 = vector.broadcast %12 : vector<8x1xf32> to vector<8x32xf32>
    %21 = arith.subf %6, %20 : vector<8x32xf32>
    %cst_14 = arith.constant 9.99999996E-13 : f32
    %22 = vector.broadcast %cst_14 : f32 to vector<8x1xf32>
    %23 = arith.addf %19, %22 : vector<8x1xf32>
    %24 = math.sqrt %23 : vector<8x1xf32>
    %25 = vector.broadcast %24 : vector<8x1xf32> to vector<8x32xf32>
    %26 = arith.divf %21, %25 : vector<8x32xf32>
    %27 = vector.broadcast %7 : vector<1x32xf32> to vector<8x32xf32>
    %28 = arith.mulf %27, %26 : vector<8x32xf32>
    %29 = vector.broadcast %8 : vector<1x32xf32> to vector<8x32xf32>
    %30 = arith.addf %28, %29 : vector<8x32xf32>
    %c0_15 = arith.constant 0 : index
    %c0_16 = arith.constant 0 : index
    %c0_17 = arith.constant 0 : index
    %31 = vector.load %arg1[%c0_15, %c0_16, %c0_17] : memref<1x1x8xf32, #tpu.memory_space<vmem>>, vector<1x1x8xf32>
    %32 = vector.shape_cast %31 : vector<1x1x8xf32> to vector<1x8xf32>
    %33 = vector.shape_cast %32 : vector<1x8xf32> to vector<1x1x8xf32>
    %34 = vector.broadcast %33 : vector<1x1x8xf32> to vector<4x8x8xf32>
    %35 = arith.truncf %30 : vector<8x32xf32> to vector<8x32xbf16>
    %c0_18 = arith.constant 0 : index
    %c0_19 = arith.constant 0 : index
    %c0_20 = arith.constant 0 : index
    %36 = vector.load %arg7[%c0_18, %c0_19, %c0_20] : memref<2x32x96xbf16, #tpu.memory_space<vmem>>, vector<1x32x96xbf16>
    %37 = vector.shape_cast %36 : vector<1x32x96xbf16> to vector<32x96xbf16>
    %cst_21 = arith.constant dense<0.000000e+00> : vector<8x96xf32>
    %38 = tpu.matmul %35, %37, %cst_21 {dimension_numbers = #tpu.dot_dimension_numbers<[1], [0], [0], [1], [0, 0, 1, 1], [], []>} : vector<8x32xbf16>, vector<32x96xbf16>, vector<8x96xf32> -> vector<8x96xf32>
    %c0_22 = arith.constant 0 : index
    %c0_23 = arith.constant 0 : index
    %c0_24 = arith.constant 0 : index
    %39 = vector.load %arg8[%c0_22, %c0_23, %c0_24] : memref<2x1x96xf32, #tpu.memory_space<vmem>>, vector<1x1x96xf32>
    %40 = vector.shape_cast %39 : vector<1x1x96xf32> to vector<1x96xf32>
    %41 = vector.broadcast %40 : vector<1x96xf32> to vector<8x96xf32>
    %42 = arith.addf %38, %41 : vector<8x96xf32>
    %43 = vector.extract_strided_slice %42 {offsets = [0, 0], sizes = [8, 8], strides = [1, 1]} : vector<8x96xf32> to vector<8x8xf32>
    %44 = vector.extract_strided_slice %42 {offsets = [0, 8], sizes = [8, 8], strides = [1, 1]} : vector<8x96xf32> to vector<8x8xf32>
    %45 = vector.extract_strided_slice %42 {offsets = [0, 16], sizes = [8, 8], strides = [1, 1]} : vector<8x96xf32> to vector<8x8xf32>
    %46 = vector.extract_strided_slice %42 {offsets = [0, 24], sizes = [8, 8], strides = [1, 1]} : vector<8x96xf32> to vector<8x8xf32>
    %47 = vector.shape_cast %43 : vector<8x8xf32> to vector<1x8x8xf32>
    %48 = vector.shape_cast %44 : vector<8x8xf32> to vector<1x8x8xf32>
    %49 = vector.shape_cast %45 : vector<8x8xf32> to vector<1x8x8xf32>
    %50 = vector.shape_cast %46 : vector<8x8xf32> to vector<1x8x8xf32>
    %51 = tpu.concatenate %47, %48, %49, %50 in 0 : vector<1x8x8xf32>, vector<1x8x8xf32>, vector<1x8x8xf32>, vector<1x8x8xf32> -> vector<4x8x8xf32>
    %52 = arith.truncf %51 : vector<4x8x8xf32> to vector<4x8x8xbf16>
    %53 = vector.extract_strided_slice %42 {offsets = [0, 32], sizes = [8, 8], strides = [1, 1]} : vector<8x96xf32> to vector<8x8xf32>
    %54 = vector.extract_strided_slice %42 {offsets = [0, 40], sizes = [8, 8], strides = [1, 1]} : vector<8x96xf32> to vector<8x8xf32>
    %55 = vector.extract_strided_slice %42 {offsets = [0, 48], sizes = [8, 8], strides = [1, 1]} : vector<8x96xf32> to vector<8x8xf32>
    %56 = vector.extract_strided_slice %42 {offsets = [0, 56], sizes = [8, 8], strides = [1, 1]} : vector<8x96xf32> to vector<8x8xf32>
    %57 = vector.shape_cast %53 : vector<8x8xf32> to vector<1x8x8xf32>
    %58 = vector.shape_cast %54 : vector<8x8xf32> to vector<1x8x8xf32>
    %59 = vector.shape_cast %55 : vector<8x8xf32> to vector<1x8x8xf32>
    %60 = vector.shape_cast %56 : vector<8x8xf32> to vector<1x8x8xf32>
    %61 = tpu.concatenate %57, %58, %59, %60 in 0 : vector<1x8x8xf32>, vector<1x8x8xf32>, vector<1x8x8xf32>, vector<1x8x8xf32> -> vector<4x8x8xf32>
    %62 = arith.truncf %61 : vector<4x8x8xf32> to vector<4x8x8xbf16>
    %63 = vector.extract_strided_slice %42 {offsets = [0, 64], sizes = [8, 8], strides = [1, 1]} : vector<8x96xf32> to vector<8x8xf32>
    %64 = vector.extract_strided_slice %42 {offsets = [0, 72], sizes = [8, 8], strides = [1, 1]} : vector<8x96xf32> to vector<8x8xf32>
    %65 = vector.extract_strided_slice %42 {offsets = [0, 80], sizes = [8, 8], strides = [1, 1]} : vector<8x96xf32> to vector<8x8xf32>
    %66 = vector.extract_strided_slice %42 {offsets = [0, 88], sizes = [8, 8], strides = [1, 1]} : vector<8x96xf32> to vector<8x8xf32>
    %67 = vector.shape_cast %63 : vector<8x8xf32> to vector<1x8x8xf32>
    %68 = vector.shape_cast %64 : vector<8x8xf32> to vector<1x8x8xf32>
    %69 = vector.shape_cast %65 : vector<8x8xf32> to vector<1x8x8xf32>
    %70 = vector.shape_cast %66 : vector<8x8xf32> to vector<1x8x8xf32>
    %71 = tpu.concatenate %67, %68, %69, %70 in 0 : vector<1x8x8xf32>, vector<1x8x8xf32>, vector<1x8x8xf32>, vector<1x8x8xf32> -> vector<4x8x8xf32>
    %72 = arith.truncf %71 : vector<4x8x8xf32> to vector<4x8x8xbf16>
    "tpu.trace_start"() <{level = 10 : i32, message = "hqd,hkd->hqk"}> : () -> ()
    %cst_25 = arith.constant dense<0.000000e+00> : vector<4x8x8xf32>
    %73 = tpu.matmul %52, %62, %cst_25 {dimension_numbers = #tpu.dot_dimension_numbers<[2], [2], [1], [1], [0, 0, 0, 1, 1, 1], [0], [0]>} : vector<4x8x8xbf16>, vector<4x8x8xbf16>, vector<4x8x8xf32> -> vector<4x8x8xf32>
    "tpu.trace_stop"() : () -> ()
    %cst_26 = arith.constant 0.353553385 : f32
    %74 = vector.broadcast %cst_26 : f32 to vector<4x8x8xf32>
    %75 = arith.mulf %73, %74 : vector<4x8x8xf32>
    %76 = arith.addf %75, %34 : vector<4x8x8xf32>
    %cst_27 = arith.constant dense<0xFF800000> : vector<4x8xf32>
    %77 = vector.multi_reduction <maximumf>, %76, %cst_27 [2] : vector<4x8x8xf32> to vector<4x8xf32>
    %cst_28 = arith.constant 0xFF800000 : f32
    %78 = vector.broadcast %cst_28 : f32 to vector<4x8xf32>
    %79 = arith.maximumf %78, %77 : vector<4x8xf32>
    %80 = vector.shape_cast %79 : vector<4x8xf32> to vector<4x8x1xf32>
    %81 = vector.broadcast %80 : vector<4x8x1xf32> to vector<4x8x8xf32>
    %82 = arith.subf %76, %81 : vector<4x8x8xf32>
    %83 = math.exp %82 : vector<4x8x8xf32>
    %cst_29 = arith.constant dense<0.000000e+00> : vector<4x8xf32>
    %84 = vector.multi_reduction <add>, %83, %cst_29 [2] : vector<4x8x8xf32> to vector<4x8xf32>
    %85 = vector.shape_cast %84 : vector<4x8xf32> to vector<4x8x1xf32>
    %86 = vector.broadcast %85 : vector<4x8x1xf32> to vector<4x8x8xf32>
    %87 = arith.divf %83, %86 : vector<4x8x8xf32>
    %88 = arith.truncf %87 : vector<4x8x8xf32> to vector<4x8x8xbf16>
    "tpu.trace_start"() <{level = 10 : i32, message = "hqk,hkd->hqd"}> : () -> ()
    %cst_30 = arith.constant dense<0.000000e+00> : vector<4x8x8xf32>
    %89 = tpu.matmul %88, %72, %cst_30 {dimension_numbers = #tpu.dot_dimension_numbers<[2], [1], [1], [2], [0, 0, 0, 1, 1, 2], [0], [0]>} : vector<4x8x8xbf16>, vector<4x8x8xbf16>, vector<4x8x8xf32> -> vector<4x8x8xf32>
    "tpu.trace_stop"() : () -> ()
    %90 = arith.truncf %89 : vector<4x8x8xf32> to vector<4x8x8xbf16>
    %c0_31 = arith.constant 0 : index
    %c0_32 = arith.constant 0 : index
    %c0_33 = arith.constant 0 : index
    %c0_34 = arith.constant 0 : index
    %91 = vector.load %arg9[%c0_31, %c0_32, %c0_33, %c0_34] : memref<2x4x8x32xbf16, #tpu.memory_space<vmem>>, vector<1x4x8x32xbf16>
    %92 = vector.shape_cast %91 : vector<1x4x8x32xbf16> to vector<4x8x32xbf16>
    "tpu.trace_start"() <{level = 10 : i32, message = "hqd,hdo->hqo"}> : () -> ()
    %cst_35 = arith.constant dense<0.000000e+00> : vector<4x8x32xf32>
    %93 = tpu.matmul %90, %92, %cst_35 {dimension_numbers = #tpu.dot_dimension_numbers<[2], [1], [1], [2], [0, 0, 0, 1, 1, 2], [0], [0]>} : vector<4x8x8xbf16>, vector<4x8x32xbf16>, vector<4x8x32xf32> -> vector<4x8x32xf32>
    "tpu.trace_stop"() : () -> ()
    %cst_36 = arith.constant dense<0.000000e+00> : vector<8x32xf32>
    %94 = vector.multi_reduction <add>, %93, %cst_36 [0] : vector<4x8x32xf32> to vector<8x32xf32>
    %c0_37 = arith.constant 0 : index
    %c0_38 = arith.constant 0 : index
    %c0_39 = arith.constant 0 : index
    %95 = vector.load %arg10[%c0_37, %c0_38, %c0_39] : memref<2x1x32xf32, #tpu.memory_space<vmem>>, vector<1x1x32xf32>
    %96 = vector.shape_cast %95 : vector<1x1x32xf32> to vector<1x32xf32>
    %97 = vector.broadcast %96 : vector<1x32xf32> to vector<8x32xf32>
    %98 = arith.addf %94, %97 : vector<8x32xf32>
    %99 = arith.addf %98, %30 : vector<8x32xf32>
    %c0_40 = arith.constant 0 : index
    %c0_41 = arith.constant 0 : index
    %c0_42 = arith.constant 0 : index
    %100 = vector.load %arg11[%c0_40, %c0_41, %c0_42] : memref<2x1x32xf32, #tpu.memory_space<vmem>>, vector<1x1x32xf32>
    %101 = vector.shape_cast %100 : vector<1x1x32xf32> to vector<1x32xf32>
    %c0_43 = arith.constant 0 : index
    %c0_44 = arith.constant 0 : index
    %c0_45 = arith.constant 0 : index
    %102 = vector.load %arg12[%c0_43, %c0_44, %c0_45] : memref<2x1x32xf32, #tpu.memory_space<vmem>>, vector<1x1x32xf32>
    %103 = vector.shape_cast %102 : vector<1x1x32xf32> to vector<1x32xf32>
    %cst_46 = arith.constant dense<0.000000e+00> : vector<8xf32>
    %104 = vector.multi_reduction <add>, %99, %cst_46 [1] : vector<8x32xf32> to vector<8xf32>
    %105 = vector.shape_cast %104 : vector<8xf32> to vector<8x1xf32>
    %cst_47 = arith.constant 3.200000e+01 : f32
    %106 = vector.broadcast %cst_47 : f32 to vector<8x1xf32>
    %107 = arith.divf %105, %106 : vector<8x1xf32>
    %108 = vector.broadcast %107 : vector<8x1xf32> to vector<8x32xf32>
    %109 = arith.subf %99, %108 : vector<8x32xf32>
    %110 = arith.mulf %109, %109 : vector<8x32xf32>
    %cst_48 = arith.constant dense<0.000000e+00> : vector<8xf32>
    %111 = vector.multi_reduction <add>, %110, %cst_48 [1] : vector<8x32xf32> to vector<8xf32>
    %112 = vector.shape_cast %111 : vector<8xf32> to vector<8x1xf32>
    %cst_49 = arith.constant 3.200000e+01 : f32
    %113 = vector.broadcast %cst_49 : f32 to vector<8x1xf32>
    %114 = arith.divf %112, %113 : vector<8x1xf32>
    %115 = vector.broadcast %107 : vector<8x1xf32> to vector<8x32xf32>
    %116 = arith.subf %99, %115 : vector<8x32xf32>
    %cst_50 = arith.constant 9.99999996E-13 : f32
    %117 = vector.broadcast %cst_50 : f32 to vector<8x1xf32>
    %118 = arith.addf %114, %117 : vector<8x1xf32>
    %119 = math.sqrt %118 : vector<8x1xf32>
    %120 = vector.broadcast %119 : vector<8x1xf32> to vector<8x32xf32>
    %121 = arith.divf %116, %120 : vector<8x32xf32>
    %122 = vector.broadcast %101 : vector<1x32xf32> to vector<8x32xf32>
    %123 = arith.mulf %122, %121 : vector<8x32xf32>
    %124 = vector.broadcast %103 : vector<1x32xf32> to vector<8x32xf32>
    %125 = arith.addf %123, %124 : vector<8x32xf32>
    %126 = arith.truncf %125 : vector<8x32xf32> to vector<8x32xbf16>
    %c0_51 = arith.constant 0 : index
    %c0_52 = arith.constant 0 : index
    %c0_53 = arith.constant 0 : index
    %127 = vector.load %arg13[%c0_51, %c0_52, %c0_53] : memref<2x32x64xbf16, #tpu.memory_space<vmem>>, vector<1x32x64xbf16>
    %128 = vector.shape_cast %127 : vector<1x32x64xbf16> to vector<32x64xbf16>
    %cst_54 = arith.constant dense<0.000000e+00> : vector<8x64xf32>
    %129 = tpu.matmul %126, %128, %cst_54 {dimension_numbers = #tpu.dot_dimension_numbers<[1], [0], [0], [1], [0, 0, 1, 1], [], []>} : vector<8x32xbf16>, vector<32x64xbf16>, vector<8x64xf32> -> vector<8x64xf32>
    %c0_55 = arith.constant 0 : index
    %c0_56 = arith.constant 0 : index
    %c0_57 = arith.constant 0 : index
    %130 = vector.load %arg14[%c0_55, %c0_56, %c0_57] : memref<2x1x64xf32, #tpu.memory_space<vmem>>, vector<1x1x64xf32>
    %131 = vector.shape_cast %130 : vector<1x1x64xf32> to vector<1x64xf32>
    %132 = vector.broadcast %131 : vector<1x64xf32> to vector<8x64xf32>
    %133 = arith.addf %129, %132 : vector<8x64xf32>
    %cst_58 = arith.constant 5.000000e-01 : f32
    %134 = vector.broadcast %cst_58 : f32 to vector<8x64xf32>
    %135 = arith.mulf %133, %134 : vector<8x64xf32>
    %cst_59 = arith.constant 1.41421354 : f32
    %136 = vector.broadcast %cst_59 : f32 to vector<8x64xf32>
    %137 = arith.divf %133, %136 : vector<8x64xf32>
    %138 = math.erf %137 : vector<8x64xf32>
    %cst_60 = arith.constant 1.000000e+00 : f32
    %139 = vector.broadcast %cst_60 : f32 to vector<8x64xf32>
    %140 = arith.addf %139, %138 : vector<8x64xf32>
    %141 = arith.mulf %135, %140 : vector<8x64xf32>
    %142 = arith.truncf %141 : vector<8x64xf32> to vector<8x64xbf16>
    %c0_61 = arith.constant 0 : index
    %c0_62 = arith.constant 0 : index
    %c0_63 = arith.constant 0 : index
    %143 = vector.load %arg15[%c0_61, %c0_62, %c0_63] : memref<2x64x32xbf16, #tpu.memory_space<vmem>>, vector<1x64x32xbf16>
    %144 = vector.shape_cast %143 : vector<1x64x32xbf16> to vector<64x32xbf16>
    %cst_64 = arith.constant dense<0.000000e+00> : vector<8x32xf32>
    %145 = tpu.matmul %142, %144, %cst_64 {dimension_numbers = #tpu.dot_dimension_numbers<[1], [0], [0], [1], [0, 0, 1, 1], [], []>} : vector<8x64xbf16>, vector<64x32xbf16>, vector<8x32xf32> -> vector<8x32xf32>
    %c0_65 = arith.constant 0 : index
    %c0_66 = arith.constant 0 : index
    %c0_67 = arith.constant 0 : index
    %146 = vector.load %arg16[%c0_65, %c0_66, %c0_67] : memref<2x1x32xf32, #tpu.memory_space<vmem>>, vector<1x1x32xf32>
    %147 = vector.shape_cast %146 : vector<1x1x32xf32> to vector<1x32xf32>
    %148 = vector.broadcast %147 : vector<1x32xf32> to vector<8x32xf32>
    %149 = arith.addf %145, %148 : vector<8x32xf32>
    %150 = arith.addf %149, %125 : vector<8x32xf32>
    %c0_68 = arith.constant 0 : index
    %c0_69 = arith.constant 0 : index
    %c0_70 = arith.constant 0 : index
    %151 = vector.load %arg17[%c0_68, %c0_69, %c0_70] : memref<2x1x32xf32, #tpu.memory_space<vmem>>, vector<1x1x32xf32>
    %152 = vector.shape_cast %151 : vector<1x1x32xf32> to vector<1x32xf32>
    %c0_71 = arith.constant 0 : index
    %c0_72 = arith.constant 0 : index
    %c0_73 = arith.constant 0 : index
    %153 = vector.load %arg18[%c0_71, %c0_72, %c0_73] : memref<2x1x32xf32, #tpu.memory_space<vmem>>, vector<1x1x32xf32>
    %154 = vector.shape_cast %153 : vector<1x1x32xf32> to vector<1x32xf32>
    %cst_74 = arith.constant dense<0.000000e+00> : vector<8xf32>
    %155 = vector.multi_reduction <add>, %150, %cst_74 [1] : vector<8x32xf32> to vector<8xf32>
    %156 = vector.shape_cast %155 : vector<8xf32> to vector<8x1xf32>
    %cst_75 = arith.constant 3.200000e+01 : f32
    %157 = vector.broadcast %cst_75 : f32 to vector<8x1xf32>
    %158 = arith.divf %156, %157 : vector<8x1xf32>
    %159 = vector.broadcast %158 : vector<8x1xf32> to vector<8x32xf32>
    %160 = arith.subf %150, %159 : vector<8x32xf32>
    %161 = arith.mulf %160, %160 : vector<8x32xf32>
    %cst_76 = arith.constant dense<0.000000e+00> : vector<8xf32>
    %162 = vector.multi_reduction <add>, %161, %cst_76 [1] : vector<8x32xf32> to vector<8xf32>
    %163 = vector.shape_cast %162 : vector<8xf32> to vector<8x1xf32>
    %cst_77 = arith.constant 3.200000e+01 : f32
    %164 = vector.broadcast %cst_77 : f32 to vector<8x1xf32>
    %165 = arith.divf %163, %164 : vector<8x1xf32>
    %166 = vector.broadcast %158 : vector<8x1xf32> to vector<8x32xf32>
    %167 = arith.subf %150, %166 : vector<8x32xf32>
    %cst_78 = arith.constant 9.99999996E-13 : f32
    %168 = vector.broadcast %cst_78 : f32 to vector<8x1xf32>
    %169 = arith.addf %165, %168 : vector<8x1xf32>
    %170 = math.sqrt %169 : vector<8x1xf32>
    %171 = vector.broadcast %170 : vector<8x1xf32> to vector<8x32xf32>
    %172 = arith.divf %167, %171 : vector<8x32xf32>
    %173 = vector.broadcast %152 : vector<1x32xf32> to vector<8x32xf32>
    %174 = arith.mulf %173, %172 : vector<8x32xf32>
    %175 = vector.broadcast %154 : vector<1x32xf32> to vector<8x32xf32>
    %176 = arith.addf %174, %175 : vector<8x32xf32>
    %c0_79 = arith.constant 0 : index
    %c0_80 = arith.constant 0 : index
    %c0_81 = arith.constant 0 : index
    %c0_82 = arith.constant 0 : index
    %177 = vector.load %arg21[%c0_79, %c0_80, %c0_81, %c0_82] : memref<1x2x8x32xf32, #tpu.memory_space<vmem>>, vector<1x1x8x32xf32>
    %178 = vector.shape_cast %177 : vector<1x1x8x32xf32> to vector<8x32xf32>
    %179 = vector.shape_cast %176 : vector<8x32xf32> to vector<1x1x8x32xf32>
    tpu.vector_store %arg21[%c0_79, %c0_80, %c0_81, %c0_82], %179 {strides = array<i32>} : memref<1x2x8x32xf32, #tpu.memory_space<vmem>>, vector<1x1x8x32xf32>,
    %180 = arith.truncf %176 : vector<8x32xf32> to vector<8x32xbf16>
    %c1 = arith.constant 1 : index
    %c0_83 = arith.constant 0 : index
    %c0_84 = arith.constant 0 : index
    %181 = vector.load %arg7[%c1, %c0_83, %c0_84] : memref<2x32x96xbf16, #tpu.memory_space<vmem>>, vector<1x32x96xbf16>
    %182 = vector.shape_cast %181 : vector<1x32x96xbf16> to vector<32x96xbf16>
    %cst_85 = arith.constant dense<0.000000e+00> : vector<8x96xf32>
    %183 = tpu.matmul %180, %182, %cst_85 {dimension_numbers = #tpu.dot_dimension_numbers<[1], [0], [0], [1], [0, 0, 1, 1], [], []>} : vector<8x32xbf16>, vector<32x96xbf16>, vector<8x96xf32> -> vector<8x96xf32>
    %c1_86 = arith.constant 1 : index
    %c0_87 = arith.constant 0 : index
    %c0_88 = arith.constant 0 : index
    %184 = vector.load %arg8[%c1_86, %c0_87, %c0_88] : memref<2x1x96xf32, #tpu.memory_space<vmem>>, vector<1x1x96xf32>
    %185 = vector.shape_cast %184 : vector<1x1x96xf32> to vector<1x96xf32>
    %186 = vector.broadcast %185 : vector<1x96xf32> to vector<8x96xf32>
    %187 = arith.addf %183, %186 : vector<8x96xf32>
    %188 = vector.extract_strided_slice %187 {offsets = [0, 0], sizes = [8, 8], strides = [1, 1]} : vector<8x96xf32> to vector<8x8xf32>
    %189 = vector.extract_strided_slice %187 {offsets = [0, 8], sizes = [8, 8], strides = [1, 1]} : vector<8x96xf32> to vector<8x8xf32>
    %190 = vector.extract_strided_slice %187 {offsets = [0, 16], sizes = [8, 8], strides = [1, 1]} : vector<8x96xf32> to vector<8x8xf32>
    %191 = vector.extract_strided_slice %187 {offsets = [0, 24], sizes = [8, 8], strides = [1, 1]} : vector<8x96xf32> to vector<8x8xf32>
    %192 = vector.shape_cast %188 : vector<8x8xf32> to vector<1x8x8xf32>
    %193 = vector.shape_cast %189 : vector<8x8xf32> to vector<1x8x8xf32>
    %194 = vector.shape_cast %190 : vector<8x8xf32> to vector<1x8x8xf32>
    %195 = vector.shape_cast %191 : vector<8x8xf32> to vector<1x8x8xf32>
    %196 = tpu.concatenate %192, %193, %194, %195 in 0 : vector<1x8x8xf32>, vector<1x8x8xf32>, vector<1x8x8xf32>, vector<1x8x8xf32> -> vector<4x8x8xf32>
    %197 = arith.truncf %196 : vector<4x8x8xf32> to vector<4x8x8xbf16>
    %198 = vector.extract_strided_slice %187 {offsets = [0, 32], sizes = [8, 8], strides = [1, 1]} : vector<8x96xf32> to vector<8x8xf32>
    %199 = vector.extract_strided_slice %187 {offsets = [0, 40], sizes = [8, 8], strides = [1, 1]} : vector<8x96xf32> to vector<8x8xf32>
    %200 = vector.extract_strided_slice %187 {offsets = [0, 48], sizes = [8, 8], strides = [1, 1]} : vector<8x96xf32> to vector<8x8xf32>
    %201 = vector.extract_strided_slice %187 {offsets = [0, 56], sizes = [8, 8], strides = [1, 1]} : vector<8x96xf32> to vector<8x8xf32>
    %202 = vector.shape_cast %198 : vector<8x8xf32> to vector<1x8x8xf32>
    %203 = vector.shape_cast %199 : vector<8x8xf32> to vector<1x8x8xf32>
    %204 = vector.shape_cast %200 : vector<8x8xf32> to vector<1x8x8xf32>
    %205 = vector.shape_cast %201 : vector<8x8xf32> to vector<1x8x8xf32>
    %206 = tpu.concatenate %202, %203, %204, %205 in 0 : vector<1x8x8xf32>, vector<1x8x8xf32>, vector<1x8x8xf32>, vector<1x8x8xf32> -> vector<4x8x8xf32>
    %207 = arith.truncf %206 : vector<4x8x8xf32> to vector<4x8x8xbf16>
    %208 = vector.extract_strided_slice %187 {offsets = [0, 64], sizes = [8, 8], strides = [1, 1]} : vector<8x96xf32> to vector<8x8xf32>
    %209 = vector.extract_strided_slice %187 {offsets = [0, 72], sizes = [8, 8], strides = [1, 1]} : vector<8x96xf32> to vector<8x8xf32>
    %210 = vector.extract_strided_slice %187 {offsets = [0, 80], sizes = [8, 8], strides = [1, 1]} : vector<8x96xf32> to vector<8x8xf32>
    %211 = vector.extract_strided_slice %187 {offsets = [0, 88], sizes = [8, 8], strides = [1, 1]} : vector<8x96xf32> to vector<8x8xf32>
    %212 = vector.shape_cast %208 : vector<8x8xf32> to vector<1x8x8xf32>
    %213 = vector.shape_cast %209 : vector<8x8xf32> to vector<1x8x8xf32>
    %214 = vector.shape_cast %210 : vector<8x8xf32> to vector<1x8x8xf32>
    %215 = vector.shape_cast %211 : vector<8x8xf32> to vector<1x8x8xf32>
    %216 = tpu.concatenate %212, %213, %214, %215 in 0 : vector<1x8x8xf32>, vector<1x8x8xf32>, vector<1x8x8xf32>, vector<1x8x8xf32> -> vector<4x8x8xf32>
    %217 = arith.truncf %216 : vector<4x8x8xf32> to vector<4x8x8xbf16>
    "tpu.trace_start"() <{level = 10 : i32, message = "hqd,hkd->hqk"}> : () -> ()
    %cst_89 = arith.constant dense<0.000000e+00> : vector<4x8x8xf32>
    %218 = tpu.matmul %197, %207, %cst_89 {dimension_numbers = #tpu.dot_dimension_numbers<[2], [2], [1], [1], [0, 0, 0, 1, 1, 1], [0], [0]>} : vector<4x8x8xbf16>, vector<4x8x8xbf16>, vector<4x8x8xf32> -> vector<4x8x8xf32>
    "tpu.trace_stop"() : () -> ()
    %cst_90 = arith.constant 0.353553385 : f32
    %219 = vector.broadcast %cst_90 : f32 to vector<4x8x8xf32>
    %220 = arith.mulf %218, %219 : vector<4x8x8xf32>
    %221 = arith.addf %220, %34 : vector<4x8x8xf32>
    %cst_91 = arith.constant dense<0xFF800000> : vector<4x8xf32>
    %222 = vector.multi_reduction <maximumf>, %221, %cst_91 [2] : vector<4x8x8xf32> to vector<4x8xf32>
    %cst_92 = arith.constant 0xFF800000 : f32
    %223 = vector.broadcast %cst_92 : f32 to vector<4x8xf32>
    %224 = arith.maximumf %223, %222 : vector<4x8xf32>
    %225 = vector.shape_cast %224 : vector<4x8xf32> to vector<4x8x1xf32>
    %226 = vector.broadcast %225 : vector<4x8x1xf32> to vector<4x8x8xf32>
    %227 = arith.subf %221, %226 : vector<4x8x8xf32>
    %228 = math.exp %227 : vector<4x8x8xf32>
    %cst_93 = arith.constant dense<0.000000e+00> : vector<4x8xf32>
    %229 = vector.multi_reduction <add>, %228, %cst_93 [2] : vector<4x8x8xf32> to vector<4x8xf32>
    %230 = vector.shape_cast %229 : vector<4x8xf32> to vector<4x8x1xf32>
    %231 = vector.broadcast %230 : vector<4x8x1xf32> to vector<4x8x8xf32>
    %232 = arith.divf %228, %231 : vector<4x8x8xf32>
    %233 = arith.truncf %232 : vector<4x8x8xf32> to vector<4x8x8xbf16>
    "tpu.trace_start"() <{level = 10 : i32, message = "hqk,hkd->hqd"}> : () -> ()
    %cst_94 = arith.constant dense<0.000000e+00> : vector<4x8x8xf32>
    %234 = tpu.matmul %233, %217, %cst_94 {dimension_numbers = #tpu.dot_dimension_numbers<[2], [1], [1], [2], [0, 0, 0, 1, 1, 2], [0], [0]>} : vector<4x8x8xbf16>, vector<4x8x8xbf16>, vector<4x8x8xf32> -> vector<4x8x8xf32>
    "tpu.trace_stop"() : () -> ()
    %235 = arith.truncf %234 : vector<4x8x8xf32> to vector<4x8x8xbf16>
    %c1_95 = arith.constant 1 : index
    %c0_96 = arith.constant 0 : index
    %c0_97 = arith.constant 0 : index
    %c0_98 = arith.constant 0 : index
    %236 = vector.load %arg9[%c1_95, %c0_96, %c0_97, %c0_98] : memref<2x4x8x32xbf16, #tpu.memory_space<vmem>>, vector<1x4x8x32xbf16>
    %237 = vector.shape_cast %236 : vector<1x4x8x32xbf16> to vector<4x8x32xbf16>
    "tpu.trace_start"() <{level = 10 : i32, message = "hqd,hdo->hqo"}> : () -> ()
    %cst_99 = arith.constant dense<0.000000e+00> : vector<4x8x32xf32>
    %238 = tpu.matmul %235, %237, %cst_99 {dimension_numbers = #tpu.dot_dimension_numbers<[2], [1], [1], [2], [0, 0, 0, 1, 1, 2], [0], [0]>} : vector<4x8x8xbf16>, vector<4x8x32xbf16>, vector<4x8x32xf32> -> vector<4x8x32xf32>
    "tpu.trace_stop"() : () -> ()
    %cst_100 = arith.constant dense<0.000000e+00> : vector<8x32xf32>
    %239 = vector.multi_reduction <add>, %238, %cst_100 [0] : vector<4x8x32xf32> to vector<8x32xf32>
    %c1_101 = arith.constant 1 : index
    %c0_102 = arith.constant 0 : index
    %c0_103 = arith.constant 0 : index
    %240 = vector.load %arg10[%c1_101, %c0_102, %c0_103] : memref<2x1x32xf32, #tpu.memory_space<vmem>>, vector<1x1x32xf32>
    %241 = vector.shape_cast %240 : vector<1x1x32xf32> to vector<1x32xf32>
    %242 = vector.broadcast %241 : vector<1x32xf32> to vector<8x32xf32>
    %243 = arith.addf %239, %242 : vector<8x32xf32>
    %244 = arith.addf %243, %176 : vector<8x32xf32>
    %c1_104 = arith.constant 1 : index
    %c0_105 = arith.constant 0 : index
    %c0_106 = arith.constant 0 : index
    %245 = vector.load %arg11[%c1_104, %c0_105, %c0_106] : memref<2x1x32xf32, #tpu.memory_space<vmem>>, vector<1x1x32xf32>
    %246 = vector.shape_cast %245 : vector<1x1x32xf32> to vector<1x32xf32>
    %c1_107 = arith.constant 1 : index
    %c0_108 = arith.constant 0 : index
    %c0_109 = arith.constant 0 : index
    %247 = vector.load %arg12[%c1_107, %c0_108, %c0_109] : memref<2x1x32xf32, #tpu.memory_space<vmem>>, vector<1x1x32xf32>
    %248 = vector.shape_cast %247 : vector<1x1x32xf32> to vector<1x32xf32>
    %cst_110 = arith.constant dense<0.000000e+00> : vector<8xf32>
    %249 = vector.multi_reduction <add>, %244, %cst_110 [1] : vector<8x32xf32> to vector<8xf32>
    %250 = vector.shape_cast %249 : vector<8xf32> to vector<8x1xf32>
    %cst_111 = arith.constant 3.200000e+01 : f32
    %251 = vector.broadcast %cst_111 : f32 to vector<8x1xf32>
    %252 = arith.divf %250, %251 : vector<8x1xf32>
    %253 = vector.broadcast %252 : vector<8x1xf32> to vector<8x32xf32>
    %254 = arith.subf %244, %253 : vector<8x32xf32>
    %255 = arith.mulf %254, %254 : vector<8x32xf32>
    %cst_112 = arith.constant dense<0.000000e+00> : vector<8xf32>
    %256 = vector.multi_reduction <add>, %255, %cst_112 [1] : vector<8x32xf32> to vector<8xf32>
    %257 = vector.shape_cast %256 : vector<8xf32> to vector<8x1xf32>
    %cst_113 = arith.constant 3.200000e+01 : f32
    %258 = vector.broadcast %cst_113 : f32 to vector<8x1xf32>
    %259 = arith.divf %257, %258 : vector<8x1xf32>
    %260 = vector.broadcast %252 : vector<8x1xf32> to vector<8x32xf32>
    %261 = arith.subf %244, %260 : vector<8x32xf32>
    %cst_114 = arith.constant 9.99999996E-13 : f32
    %262 = vector.broadcast %cst_114 : f32 to vector<8x1xf32>
    %263 = arith.addf %259, %262 : vector<8x1xf32>
    %264 = math.sqrt %263 : vector<8x1xf32>
    %265 = vector.broadcast %264 : vector<8x1xf32> to vector<8x32xf32>
    %266 = arith.divf %261, %265 : vector<8x32xf32>
    %267 = vector.broadcast %246 : vector<1x32xf32> to vector<8x32xf32>
    %268 = arith.mulf %267, %266 : vector<8x32xf32>
    %269 = vector.broadcast %248 : vector<1x32xf32> to vector<8x32xf32>
    %270 = arith.addf %268, %269 : vector<8x32xf32>
    %271 = arith.truncf %270 : vector<8x32xf32> to vector<8x32xbf16>
    %c1_115 = arith.constant 1 : index
    %c0_116 = arith.constant 0 : index
    %c0_117 = arith.constant 0 : index
    %272 = vector.load %arg13[%c1_115, %c0_116, %c0_117] : memref<2x32x64xbf16, #tpu.memory_space<vmem>>, vector<1x32x64xbf16>
    %273 = vector.shape_cast %272 : vector<1x32x64xbf16> to vector<32x64xbf16>
    %cst_118 = arith.constant dense<0.000000e+00> : vector<8x64xf32>
    %274 = tpu.matmul %271, %273, %cst_118 {dimension_numbers = #tpu.dot_dimension_numbers<[1], [0], [0], [1], [0, 0, 1, 1], [], []>} : vector<8x32xbf16>, vector<32x64xbf16>, vector<8x64xf32> -> vector<8x64xf32>
    %c1_119 = arith.constant 1 : index
    %c0_120 = arith.constant 0 : index
    %c0_121 = arith.constant 0 : index
    %275 = vector.load %arg14[%c1_119, %c0_120, %c0_121] : memref<2x1x64xf32, #tpu.memory_space<vmem>>, vector<1x1x64xf32>
    %276 = vector.shape_cast %275 : vector<1x1x64xf32> to vector<1x64xf32>
    %277 = vector.broadcast %276 : vector<1x64xf32> to vector<8x64xf32>
    %278 = arith.addf %274, %277 : vector<8x64xf32>
    %cst_122 = arith.constant 5.000000e-01 : f32
    %279 = vector.broadcast %cst_122 : f32 to vector<8x64xf32>
    %280 = arith.mulf %278, %279 : vector<8x64xf32>
    %cst_123 = arith.constant 1.41421354 : f32
    %281 = vector.broadcast %cst_123 : f32 to vector<8x64xf32>
    %282 = arith.divf %278, %281 : vector<8x64xf32>
    %283 = math.erf %282 : vector<8x64xf32>
    %cst_124 = arith.constant 1.000000e+00 : f32
    %284 = vector.broadcast %cst_124 : f32 to vector<8x64xf32>
    %285 = arith.addf %284, %283 : vector<8x64xf32>
    %286 = arith.mulf %280, %285 : vector<8x64xf32>
    %287 = arith.truncf %286 : vector<8x64xf32> to vector<8x64xbf16>
    %c1_125 = arith.constant 1 : index
    %c0_126 = arith.constant 0 : index
    %c0_127 = arith.constant 0 : index
    %288 = vector.load %arg15[%c1_125, %c0_126, %c0_127] : memref<2x64x32xbf16, #tpu.memory_space<vmem>>, vector<1x64x32xbf16>
    %289 = vector.shape_cast %288 : vector<1x64x32xbf16> to vector<64x32xbf16>
    %cst_128 = arith.constant dense<0.000000e+00> : vector<8x32xf32>
    %290 = tpu.matmul %287, %289, %cst_128 {dimension_numbers = #tpu.dot_dimension_numbers<[1], [0], [0], [1], [0, 0, 1, 1], [], []>} : vector<8x64xbf16>, vector<64x32xbf16>, vector<8x32xf32> -> vector<8x32xf32>
    %c1_129 = arith.constant 1 : index
    %c0_130 = arith.constant 0 : index
    %c0_131 = arith.constant 0 : index
    %291 = vector.load %arg16[%c1_129, %c0_130, %c0_131] : memref<2x1x32xf32, #tpu.memory_space<vmem>>, vector<1x1x32xf32>
    %292 = vector.shape_cast %291 : vector<1x1x32xf32> to vector<1x32xf32>
    %293 = vector.broadcast %292 : vector<1x32xf32> to vector<8x32xf32>
    %294 = arith.addf %290, %293 : vector<8x32xf32>
    %295 = arith.addf %294, %270 : vector<8x32xf32>
    %c1_132 = arith.constant 1 : index
    %c0_133 = arith.constant 0 : index
    %c0_134 = arith.constant 0 : index
    %296 = vector.load %arg17[%c1_132, %c0_133, %c0_134] : memref<2x1x32xf32, #tpu.memory_space<vmem>>, vector<1x1x32xf32>
    %297 = vector.shape_cast %296 : vector<1x1x32xf32> to vector<1x32xf32>
    %c1_135 = arith.constant 1 : index
    %c0_136 = arith.constant 0 : index
    %c0_137 = arith.constant 0 : index
    %298 = vector.load %arg18[%c1_135, %c0_136, %c0_137] : memref<2x1x32xf32, #tpu.memory_space<vmem>>, vector<1x1x32xf32>
    %299 = vector.shape_cast %298 : vector<1x1x32xf32> to vector<1x32xf32>
    %cst_138 = arith.constant dense<0.000000e+00> : vector<8xf32>
    %300 = vector.multi_reduction <add>, %295, %cst_138 [1] : vector<8x32xf32> to vector<8xf32>
    %301 = vector.shape_cast %300 : vector<8xf32> to vector<8x1xf32>
    %cst_139 = arith.constant 3.200000e+01 : f32
    %302 = vector.broadcast %cst_139 : f32 to vector<8x1xf32>
    %303 = arith.divf %301, %302 : vector<8x1xf32>
    %304 = vector.broadcast %303 : vector<8x1xf32> to vector<8x32xf32>
    %305 = arith.subf %295, %304 : vector<8x32xf32>
    %306 = arith.mulf %305, %305 : vector<8x32xf32>
    %cst_140 = arith.constant dense<0.000000e+00> : vector<8xf32>
    %307 = vector.multi_reduction <add>, %306, %cst_140 [1] : vector<8x32xf32> to vector<8xf32>
    %308 = vector.shape_cast %307 : vector<8xf32> to vector<8x1xf32>
    %cst_141 = arith.constant 3.200000e+01 : f32
    %309 = vector.broadcast %cst_141 : f32 to vector<8x1xf32>
    %310 = arith.divf %308, %309 : vector<8x1xf32>
    %311 = vector.broadcast %303 : vector<8x1xf32> to vector<8x32xf32>
    %312 = arith.subf %295, %311 : vector<8x32xf32>
    %cst_142 = arith.constant 9.99999996E-13 : f32
    %313 = vector.broadcast %cst_142 : f32 to vector<8x1xf32>
    %314 = arith.addf %310, %313 : vector<8x1xf32>
    %315 = math.sqrt %314 : vector<8x1xf32>
    %316 = vector.broadcast %315 : vector<8x1xf32> to vector<8x32xf32>
    %317 = arith.divf %312, %316 : vector<8x32xf32>
    %318 = vector.broadcast %297 : vector<1x32xf32> to vector<8x32xf32>
    %319 = arith.mulf %318, %317 : vector<8x32xf32>
    %320 = vector.broadcast %299 : vector<1x32xf32> to vector<8x32xf32>
    %321 = arith.addf %319, %320 : vector<8x32xf32>
    %c0_143 = arith.constant 0 : index
    %c1_144 = arith.constant 1 : index
    %c0_145 = arith.constant 0 : index
    %c0_146 = arith.constant 0 : index
    %322 = vector.load %arg21[%c0_143, %c1_144, %c0_145, %c0_146] : memref<1x2x8x32xf32, #tpu.memory_space<vmem>>, vector<1x1x8x32xf32>
    %323 = vector.shape_cast %322 : vector<1x1x8x32xf32> to vector<8x32xf32>
    %324 = vector.shape_cast %321 : vector<8x32xf32> to vector<1x1x8x32xf32>
    tpu.vector_store %arg21[%c0_143, %c1_144, %c0_145, %c0_146], %324 {strides = array<i32>} : memref<1x2x8x32xf32, #tpu.memory_space<vmem>>, vector<1x1x8x32xf32>,
    %325 = vector.extract_strided_slice %321 {offsets = [0, 0], sizes = [1, 32], strides = [1, 1]} : vector<8x32xf32> to vector<1x32xf32>
    %326 = arith.truncf %325 : vector<1x32xf32> to vector<1x32xbf16>
    %c0_147 = arith.constant 0 : index
    %c0_148 = arith.constant 0 : index
    %327 = vector.load %arg19[%c0_147, %c0_148] : memref<32x32xbf16, #tpu.memory_space<vmem>>, vector<32x32xbf16>
    %cst_149 = arith.constant dense<0.000000e+00> : vector<1x32xf32>
    %328 = tpu.matmul %326, %327, %cst_149 {dimension_numbers = #tpu.dot_dimension_numbers<[1], [0], [0], [1], [0, 0, 1, 1], [], []>} : vector<1x32xbf16>, vector<32x32xbf16>, vector<1x32xf32> -> vector<1x32xf32>
    %c0_150 = arith.constant 0 : index
    %c0_151 = arith.constant 0 : index
    %329 = vector.load %arg20[%c0_150, %c0_151] : memref<1x32xf32, #tpu.memory_space<vmem>>, vector<1x32xf32>
    %330 = arith.addf %328, %329 : vector<1x32xf32>
    %331 = math.tanh %330 : vector<1x32xf32>
    %c0_152 = arith.constant 0 : index
    %c0_153 = arith.constant 0 : index
    %c0_154 = arith.constant 0 : index
    %332 = vector.load %arg22[%c0_152, %c0_153, %c0_154] : memref<1x1x32xf32, #tpu.memory_space<vmem>>, vector<1x1x32xf32>
    %333 = vector.shape_cast %332 : vector<1x1x32xf32> to vector<1x32xf32>
    %334 = vector.shape_cast %331 : vector<1x32xf32> to vector<1x1x32xf32>
    tpu.vector_store %arg22[%c0_152, %c0_153, %c0_154], %334 {strides = array<i32>} : memref<1x1x32xf32, #tpu.memory_space<vmem>>, vector<1x1x32xf32>,
    return
  }
  func.func @transform_0(%arg0: i32) -> (i32, i32, i32) {
    %c0_i32 = arith.constant 0 : i32
    %c0_i32_0 = arith.constant 0 : i32
    %c0_i32_1 = arith.constant 0 : i32
    return %arg0, %c0_i32, %c0_i32_0 : i32, i32, i32
  }
  func.func @transform_1(%arg0: i32) -> (i32, i32, i32) {
    %c0_i32 = arith.constant 0 : i32
    %c0_i32_0 = arith.constant 0 : i32
    %c0_i32_1 = arith.constant 0 : i32
    return %arg0, %c0_i32, %c0_i32_0 : i32, i32, i32
  }
  func.func @transform_2(%arg0: i32) -> (i32, i32, i32) {
    %c0_i32 = arith.constant 0 : i32
    %c0_i32_0 = arith.constant 0 : i32
    %c0_i32_1 = arith.constant 0 : i32
    return %arg0, %c0_i32, %c0_i32_0 : i32, i32, i32
  }
  func.func @transform_3(%arg0: i32) -> (i32, i32) {
    %c0_i32 = arith.constant 0 : i32
    %c0_i32_0 = arith.constant 0 : i32
    %c0_i32_1 = arith.constant 0 : i32
    return %c0_i32, %c0_i32_0 : i32, i32
  }
  func.func @transform_4(%arg0: i32) -> (i32, i32) {
    %c0_i32 = arith.constant 0 : i32
    %c0_i32_0 = arith.constant 0 : i32
    %c0_i32_1 = arith.constant 0 : i32
    return %c0_i32, %c0_i32_0 : i32, i32
  }
  func.func @transform_5(%arg0: i32) -> (i32, i32) {
    %c0_i32 = arith.constant 0 : i32
    %c0_i32_0 = arith.constant 0 : i32
    %c0_i32_1 = arith.constant 0 : i32
    return %c0_i32, %c0_i32_0 : i32, i32
  }
  func.func @transform_6(%arg0: i32) -> (i32, i32, i32) {
    %c0_i32 = arith.constant 0 : i32
    %c0_i32_0 = arith.constant 0 : i32
    %c0_i32_1 = arith.constant 0 : i32
    %c0_i32_2 = arith.constant 0 : i32
    return %c0_i32, %c0_i32_0, %c0_i32_1 : i32, i32, i32
  }
  func.func @transform_7(%arg0: i32) -> (i32, i32, i32) {
    %c0_i32 = arith.constant 0 : i32
    %c0_i32_0 = arith.constant 0 : i32
    %c0_i32_1 = arith.constant 0 : i32
    %c0_i32_2 = arith.constant 0 : i32
    return %c0_i32, %c0_i32_0, %c0_i32_1 : i32, i32, i32
  }
  func.func @transform_8(%arg0: i32) -> (i32, i32, i32, i32) {
    %c0_i32 = arith.constant 0 : i32
    %c0_i32_0 = arith.constant 0 : i32
    %c0_i32_1 = arith.constant 0 : i32
    %c0_i32_2 = arith.constant 0 : i32
    %c0_i32_3 = arith.constant 0 : i32
    return %c0_i32, %c0_i32_0, %c0_i32_1, %c0_i32_2 : i32, i32, i32, i32
  }
  func.func @transform_9(%arg0: i32) -> (i32, i32, i32) {
    %c0_i32 = arith.constant 0 : i32
    %c0_i32_0 = arith.constant 0 : i32
    %c0_i32_1 = arith.constant 0 : i32
    %c0_i32_2 = arith.constant 0 : i32
    return %c0_i32, %c0_i32_0, %c0_i32_1 : i32, i32, i32
  }
  func.func @transform_10(%arg0: i32) -> (i32, i32, i32) {
    %c0_i32 = arith.constant 0 : i32
    %c0_i32_0 = arith.constant 0 : i32
    %c0_i32_1 = arith.constant 0 : i32
    %c0_i32_2 = arith.constant 0 : i32
    return %c0_i32, %c0_i32_0, %c0_i32_1 : i32, i32, i32
  }
  func.func @transform_11(%arg0: i32) -> (i32, i32, i32) {
    %c0_i32 = arith.constant 0 : i32
    %c0_i32_0 = arith.constant 0 : i32
    %c0_i32_1 = arith.constant 0 : i32
    %c0_i32_2 = arith.constant 0 : i32
    return %c0_i32, %c0_i32_0, %c0_i32_1 : i32, i32, i32
  }
  func.func @transform_12(%arg0: i32) -> (i32, i32, i32) {
    %c0_i32 = arith.constant 0 : i32
    %c0_i32_0 = arith.constant 0 : i32
    %c0_i32_1 = arith.constant 0 : i32
    %c0_i32_2 = arith.constant 0 : i32
    return %c0_i32, %c0_i32_0, %c0_i32_1 : i32, i32, i32
  }
  func.func @transform_13(%arg0: i32) -> (i32, i32, i32) {
    %c0_i32 = arith.constant 0 : i32
    %c0_i32_0 = arith.constant 0 : i32
    %c0_i32_1 = arith.constant 0 : i32
    %c0_i32_2 = arith.constant 0 : i32
    return %c0_i32, %c0_i32_0, %c0_i32_1 : i32, i32, i32
  }
  func.func @transform_14(%arg0: i32) -> (i32, i32, i32) {
    %c0_i32 = arith.constant 0 : i32
    %c0_i32_0 = arith.constant 0 : i32
    %c0_i32_1 = arith.constant 0 : i32
    %c0_i32_2 = arith.constant 0 : i32
    return %c0_i32, %c0_i32_0, %c0_i32_1 : i32, i32, i32
  }
  func.func @transform_15(%arg0: i32) -> (i32, i32, i32) {
    %c0_i32 = arith.constant 0 : i32
    %c0_i32_0 = arith.constant 0 : i32
    %c0_i32_1 = arith.constant 0 : i32
    %c0_i32_2 = arith.constant 0 : i32
    return %c0_i32, %c0_i32_0, %c0_i32_1 : i32, i32, i32
  }
  func.func @transform_16(%arg0: i32) -> (i32, i32, i32) {
    %c0_i32 = arith.constant 0 : i32
    %c0_i32_0 = arith.constant 0 : i32
    %c0_i32_1 = arith.constant 0 : i32
    %c0_i32_2 = arith.constant 0 : i32
    return %c0_i32, %c0_i32_0, %c0_i32_1 : i32, i32, i32
  }
  func.func @transform_17(%arg0: i32) -> (i32, i32, i32) {
    %c0_i32 = arith.constant 0 : i32
    %c0_i32_0 = arith.constant 0 : i32
    %c0_i32_1 = arith.constant 0 : i32
    %c0_i32_2 = arith.constant 0 : i32
    return %c0_i32, %c0_i32_0, %c0_i32_1 : i32, i32, i32
  }
  func.func @transform_18(%arg0: i32) -> (i32, i32) {
    %c0_i32 = arith.constant 0 : i32
    %c0_i32_0 = arith.constant 0 : i32
    %c0_i32_1 = arith.constant 0 : i32
    return %c0_i32, %c0_i32_0 : i32, i32
  }
  func.func @transform_19(%arg0: i32) -> (i32, i32) {
    %c0_i32 = arith.constant 0 : i32
    %c0_i32_0 = arith.constant 0 : i32
    %c0_i32_1 = arith.constant 0 : i32
    return %c0_i32, %c0_i32_0 : i32, i32
  }
  func.func @transform_20(%arg0: i32) -> (i32, i32, i32, i32) {
    %c0_i32 = arith.constant 0 : i32
    %c0_i32_0 = arith.constant 0 : i32
    %c0_i32_1 = arith.constant 0 : i32
    %c0_i32_2 = arith.constant 0 : i32
    return %arg0, %c0_i32, %c0_i32_0, %c0_i32_1 : i32, i32, i32, i32
  }
  func.func @transform_21(%arg0: i32) -> (i32, i32, i32) {
    %c0_i32 = arith.constant 0 : i32
    %c0_i32_0 = arith.constant 0 : i32
    %c0_i32_1 = arith.constant 0 : i32
    return %arg0, %c0_i32, %c0_i32_0 : i32, i32, i32
  }
}

</mosaic_0001>

<llo_original>
// kernel: tpu_custom_call.1
$region0: #{tpu_custom_call.1}
  #allocation0 [shape = 'u32[]', space=smem, size = 0x4, offset = 0x4, fixed_abs, tag = 'smem constant byte address 0x4 - core index']
  #allocation1 [shape = 'u32[144,128]{1,0:T(1,128)}', space=vmem, size = 0x12000, scoped, tag = 'internal scratch']
  %s0 = inlined_call_operand.hbm [shape: f32[2,1,8], index: 0, kind: input, shape index: {}]
  %s1 = inlined_call_operand.hbm [shape: f32[2,8,32], index: 1, kind: input, shape index: {}]
  %s2 = inlined_call_operand.hbm [shape: f32[2,8,32], index: 2, kind: input, shape index: {}]
  %s3 = inlined_call_operand.hbm [shape: f32[8,32], index: 3, kind: input, shape index: {}]
  %s4 = inlined_call_operand.hbm [shape: f32[1,32], index: 4, kind: input, shape index: {}]
  %s5 = inlined_call_operand.hbm [shape: f32[1,32], index: 5, kind: input, shape index: {}]
  %s6 = inlined_call_operand.vmem [shape: bf16[2,32,96], index: 6, kind: input, shape index: {}]
  %s7 = inlined_call_operand.vmem [shape: f32[2,1,96], index: 7, kind: input, shape index: {}]
  %s8 = inlined_call_operand.vmem [shape: bf16[2,4,8,32], index: 8, kind: input, shape index: {}]
  %s9 = inlined_call_operand.vmem [shape: f32[2,1,32], index: 9, kind: input, shape index: {}]
  %s10 = inlined_call_operand.hbm [shape: f32[2,1,32], index: 10, kind: input, shape index: {}]
  %s11 = inlined_call_operand.hbm [shape: f32[2,1,32], index: 11, kind: input, shape index: {}]
  %s12 = inlined_call_operand.vmem [shape: bf16[2,32,64], index: 12, kind: input, shape index: {}]
  %s13 = inlined_call_operand.hbm [shape: f32[2,1,64], index: 13, kind: input, shape index: {}]
  %s14 = inlined_call_operand.vmem [shape: bf16[2,64,32], index: 14, kind: input, shape index: {}]
  %s15 = inlined_call_operand.vmem [shape: f32[2,1,32], index: 15, kind: input, shape index: {}]
  %s16 = inlined_call_operand.vmem [shape: f32[2,1,32], index: 16, kind: input, shape index: {}]
  %s17 = inlined_call_operand.vmem [shape: f32[2,1,32], index: 17, kind: input, shape index: {}]
  %s18 = inlined_call_operand.vmem [shape: bf16[32,32], index: 18, kind: input, shape index: {}]
  %s19 = inlined_call_operand.vmem [shape: f32[1,32], index: 19, kind: input, shape index: {}]
  %s20 = inlined_call_operand.hbm [shape: f32[2,2,8,32], index: 20, kind: output, shape index: {0}]
  %s21 = inlined_call_operand.hbm [shape: f32[2,1,32], index: 21, kind: output, shape index: {1}]
  %22 = xla_tuple %s20, %s21
  %s23 = sld [smem:[#allocation0]]
  $region157: #{tpu_custom_call.1} parent=0
    _
  %s25 = ssub.s32 1, %s23
  %s26 = scalar_select 0, %s25, %s23
  $region1: #{tpu_custom_call.1} parent=0
    #allocation2 [shape = 'u8[1024]{0}', space=vmem, size = 0x400, scoped, tag = 'input window, operand 0']
    #allocation3 [shape = 's32[2]{0}', space=sflag, size = 0x8, scoped, tag = 'scoped memory for tpu_custom_call.1']
    #allocation4 [shape = 's32[2]{0}', space=sflag, size = 0x8, scoped, tag = 'scoped memory for tpu_custom_call.1']
    #allocation5 [shape = 'u8[8192]{0}', space=vmem, size = 0x2000, scoped, tag = 'input window, operand 1']
    #allocation6 [shape = 's32[2]{0}', space=sflag, size = 0x8, scoped, tag = 'scoped memory for tpu_custom_call.1']
    #allocation7 [shape = 'u8[8192]{0}', space=vmem, size = 0x2000, scoped, tag = 'input window, operand 2']
    #allocation8 [shape = 'u8[4096]{0}', space=vmem, size = 0x1000, scoped, tag = 'input window, operand 3, single buffered']
    #allocation9 [shape = 's32[1]{0}', space=sflag, size = 0x4, scoped, tag = 'scoped memory for tpu_custom_call.1']
    #allocation10 [shape = 'u8[512]{0}', space=vmem, size = 0x400, scoped, tag = 'input window, operand 4, single buffered']
    #allocation11 [shape = 'u8[512]{0}', space=vmem, size = 0x400, scoped, tag = 'input window, operand 5, single buffered']
    #allocation12 [shape = 's32[1]{0}', space=sflag, size = 0x4, scoped, tag = 'scoped memory for tpu_custom_call.1']
    #allocation13 [shape = 'u8[1024]{0}', space=vmem, size = 0x400, scoped, tag = 'input window, operand 10, single buffered']
    #allocation14 [shape = 'u8[1024]{0}', space=vmem, size = 0x400, scoped, tag = 'input window, operand 11, single buffered']
    #allocation15 [shape = 's32[1]{0}', space=sflag, size = 0x4, scoped, tag = 'scoped memory for tpu_custom_call.1']
    #allocation16 [shape = 'u8[1024]{0}', space=vmem, size = 0x400, scoped, tag = 'input window, operand 13, single buffered']
    #allocation17 [shape = 'u8[16384]{0}', space=vmem, size = 0x4000, scoped, tag = 'output window, operand 0']
    #allocation18 [shape = 'u8[1024]{0}', space=vmem, size = 0x400, scoped, tag = 'output window, operand 1']
    #allocation19 [shape = 's32[2]{0}', space=sflag, size = 0x8, scoped, tag = 'scoped memory for tpu_custom_call.1']
    %27 = vsyncpa [#allocation3], 0
    %s28 = scalar_lea.sflag [#allocation3], 1
    %29 = vsyncpa %s28, 0
    %30 = vsyncpa [#allocation6], 0
    %s31 = scalar_lea.sflag [#allocation6], 1
    %32 = vsyncpa %s31, 0
    %33 = vsyncpa [#allocation9], 0
    %34 = vsyncpa [#allocation12], 0
    %35 = vsyncpa [#allocation15], 0
    %36 = vsyncpa [#allocation4], 0
    %s37 = scalar_lea.sflag [#allocation4], 1
    %38 = vsyncpa %s37, 0
    %39 = vsyncpa [#allocation19], 0
    %s40 = scalar_lea.sflag [#allocation19], 1
    %41 = vsyncpa %s40, 0
    loop: start=0, step=1, limit=4
    $region2: #{tpu_custom_call.1} parent=1 // loop_pre_header
      _
    $region3: #{tpu_custom_call.1} parent=1 // loop_header
      %s43 = sphi 0, %s47
      %p44 = scmp.ge.s32.totalorder %s43, 4
      %s53 = sphi 0, %s55
      %s56 = sphi 0, %s53
      %s57 = sphi 0, %s56
      %s73 = sphi 0, %s57
      %s79 = sphi 0, %s81
      %s82 = sphi 0, %s79
      %s83 = sphi 0, %s82
      %s99 = sphi 0, %s83
      %s105 = sphi 0, %s107
      %s108 = sphi 0, %s105
      %s109 = sphi 0, %s108
      %s125 = sphi 0, %s109
      %s129 = sphi 0, %s129
      %s131 = sphi 0, %s129
      %s132 = sphi 0, %s131
      %s146 = sphi 0, %s132
      %s150 = sphi 0, %s150
      %s152 = sphi 0, %s150
      %s153 = sphi 0, %s152
      %s167 = sphi 0, %s153
      %s171 = sphi 0, %s171
      %s173 = sphi 0, %s171
      %s174 = sphi 0, %s173
      %s188 = sphi 0, %s174
      %s192 = sphi 0, %s192
      %s194 = sphi 0, %s192
      %s195 = sphi 0, %s194
      %s209 = sphi 0, %s195
      %s213 = sphi 0, %s213
      %s215 = sphi 0, %s213
      %s216 = sphi 0, %s215
      %s230 = sphi 0, %s216
      %s234 = sphi 0, %s234
      %s236 = sphi 0, %s234
      %s237 = sphi 0, %s236
      %s251 = sphi 0, %s237
      %s255 = sphi 0, %s255
      %s257 = sphi 0, %s255
      %s258 = sphi 0, %s257
      %s272 = sphi 0, %s258
      %s276 = sphi 0, %s276
      %s278 = sphi 0, %s276
      %s279 = sphi 0, %s278
      %s293 = sphi 0, %s279
      %s297 = sphi 0, %s297
      %s299 = sphi 0, %s297
      %s300 = sphi 0, %s299
      %s314 = sphi 0, %s300
      %s318 = sphi 0, %s318
      %s320 = sphi 0, %s318
      %s321 = sphi 0, %s320
      %s335 = sphi 0, %s321
      %s339 = sphi 0, %s339
      %s341 = sphi 0, %s339
      %s342 = sphi 0, %s341
      %s356 = sphi 0, %s342
      %s360 = sphi 0, %s360
      %s362 = sphi 0, %s360
      %s363 = sphi 0, %s362
      %s377 = sphi 0, %s363
      %s381 = sphi 0, %s381
      %s383 = sphi 0, %s381
      %s384 = sphi 0, %s383
      %s398 = sphi 0, %s384
      %s402 = sphi 0, %s402
      %s404 = sphi 0, %s402
      %s405 = sphi 0, %s404
      %s419 = sphi 0, %s405
      %s423 = sphi 0, %s423
      %s425 = sphi 0, %s423
      %s426 = sphi 0, %s425
      %s440 = sphi 0, %s426
      %s444 = sphi 0, %s444
      %s446 = sphi 0, %s444
      %s447 = sphi 0, %s446
      %s461 = sphi 0, %s447
      %s465 = sphi 0, %s465
      %s467 = sphi 0, %s465
      %s468 = sphi 0, %s467
      %s482 = sphi 0, %s468
      %s488 = sphi 0, %s490
      %s491 = sphi 0, %s488
      %s492 = sphi 0, %s491
      %s508 = sphi 0, %s492
      %s514 = sphi 0, %s516
      %s517 = sphi 0, %s514
      %s518 = sphi 0, %s517
      %s534 = sphi 0, %s518
    $region4: #{tpu_custom_call.1} parent=1 // loop_header_branch
      %46 = sbr.rel (%p44) target = $region8
    $region5: #{tpu_custom_call.1} parent=1 // loop_body
      %s48 = ssub.s32 %s43, 1
      %s49 = ssub.s32 %s43, 2
      %s50 = sadd.s32 %s43, 1
      %s51 = ssub.s32 %s43, %s50
      %p52 = scmp.eq.s32.totalorder %s51, 0
      %s54 = sadd.s32 %s53, 1
      %s55 = scalar_select %p52, %s53, %s54
      %p58 = pneg %p52
      %p59 = scmp.eq.s32.totalorder %s43, 1
      %p60 = por %p58, %p59
      %p61 = scmp.ne.s32.totalorder %s53, %s56
      %p62 = scmp.eq.s32.totalorder %s43, 0
      %p63 = por %p61, %p62
      %p64 = scmp.ne.s32.totalorder %s53, %s56
      %p65 = scmp.eq.s32.totalorder %s48, 1
      %p66 = por %p64, %p65
      %p67 = scmp.ne.s32.totalorder %s56, %s57
      %p68 = scmp.eq.s32.totalorder %s48, 0
      %p69 = por %p67, %p68
      %p70 = scmp.ne.s32.totalorder %s56, %s57
      %p71 = scmp.eq.s32.totalorder %s49, 1
      %p72 = por %p70, %p71
      %p74 = scmp.ne.s32.totalorder %s57, %s73
      %p75 = scmp.eq.s32.totalorder %s49, 0
      %p76 = por %p74, %p75
      %s77 = ssub.s32 %s43, %s50
      %p78 = scmp.eq.s32.totalorder %s77, 0
      %s80 = sadd.s32 %s79, 1
      %s81 = scalar_select %p78, %s79, %s80
      %p84 = pneg %p78
      %p85 = scmp.eq.s32.totalorder %s43, 1
      %p86 = por %p84, %p85
      %p87 = scmp.ne.s32.totalorder %s79, %s82
      %p88 = scmp.eq.s32.totalorder %s43, 0
      %p89 = por %p87, %p88
      %p90 = scmp.ne.s32.totalorder %s79, %s82
      %p91 = scmp.eq.s32.totalorder %s48, 1
      %p92 = por %p90, %p91
      %p93 = scmp.ne.s32.totalorder %s82, %s83
      %p94 = scmp.eq.s32.totalorder %s48, 0
      %p95 = por %p93, %p94
      %p96 = scmp.ne.s32.totalorder %s82, %s83
      %p97 = scmp.eq.s32.totalorder %s49, 1
      %p98 = por %p96, %p97
      %p100 = scmp.ne.s32.totalorder %s83, %s99
      %p101 = scmp.eq.s32.totalorder %s49, 0
      %p102 = por %p100, %p101
      %s103 = ssub.s32 %s43, %s50
      %p104 = scmp.eq.s32.totalorder %s103, 0
      %s106 = sadd.s32 %s105, 1
      %s107 = scalar_select %p104, %s105, %s106
      %p110 = pneg %p104
      %p111 = scmp.eq.s32.totalorder %s43, 1
      %p112 = por %p110, %p111
      %p113 = scmp.ne.s32.totalorder %s105, %s108
      %p114 = scmp.eq.s32.totalorder %s43, 0
      %p115 = por %p113, %p114
      %p116 = scmp.ne.s32.totalorder %s105, %s108
      %p117 = scmp.eq.s32.totalorder %s48, 1
      %p118 = por %p116, %p117
      %p119 = scmp.ne.s32.totalorder %s108, %s109
      %p120 = scmp.eq.s32.totalorder %s48, 0
      %p121 = por %p119, %p120
      %p122 = scmp.ne.s32.totalorder %s108, %s109
      %p123 = scmp.eq.s32.totalorder %s49, 1
      %p124 = por %p122, %p123
      %p126 = scmp.ne.s32.totalorder %s109, %s125
      %p127 = scmp.eq.s32.totalorder %s49, 0
      %p128 = por %p126, %p127
      %s130 = sadd.s32 %s129, 1
      %p133 = scmp.eq.s32.totalorder %s43, 1
      %p134 = scmp.ne.s32.totalorder %s129, %s131
      %p135 = scmp.eq.s32.totalorder %s43, 0
      %p136 = por %p134, %p135
      %p137 = scmp.ne.s32.totalorder %s129, %s131
      %p138 = scmp.eq.s32.totalorder %s48, 1
      %p139 = por %p137, %p138
      %p140 = scmp.ne.s32.totalorder %s131, %s132
      %p141 = scmp.eq.s32.totalorder %s48, 0
      %p142 = por %p140, %p141
      %p143 = scmp.ne.s32.totalorder %s131, %s132
      %p144 = scmp.eq.s32.totalorder %s49, 1
      %p145 = por %p143, %p144
      %p147 = scmp.ne.s32.totalorder %s132, %s146
      %p148 = scmp.eq.s32.totalorder %s49, 0
      %p149 = por %p147, %p148
      %s151 = sadd.s32 %s150, 1
      %p154 = scmp.eq.s32.totalorder %s43, 1
      %p155 = scmp.ne.s32.totalorder %s150, %s152
      %p156 = scmp.eq.s32.totalorder %s43, 0
      %p157 = por %p155, %p156
      %p158 = scmp.ne.s32.totalorder %s150, %s152
      %p159 = scmp.eq.s32.totalorder %s48, 1
      %p160 = por %p158, %p159
      %p161 = scmp.ne.s32.totalorder %s152, %s153
      %p162 = scmp.eq.s32.totalorder %s48, 0
      %p163 = por %p161, %p162
      %p164 = scmp.ne.s32.totalorder %s152, %s153
      %p165 = scmp.eq.s32.totalorder %s49, 1
      %p166 = por %p164, %p165
      %p168 = scmp.ne.s32.totalorder %s153, %s167
      %p169 = scmp.eq.s32.totalorder %s49, 0
      %p170 = por %p168, %p169
      %s172 = sadd.s32 %s171, 1
      %p175 = scmp.eq.s32.totalorder %s43, 1
      %p176 = scmp.ne.s32.totalorder %s171, %s173
      %p177 = scmp.eq.s32.totalorder %s43, 0
      %p178 = por %p176, %p177
      %p179 = scmp.ne.s32.totalorder %s171, %s173
      %p180 = scmp.eq.s32.totalorder %s48, 1
      %p181 = por %p179, %p180
      %p182 = scmp.ne.s32.totalorder %s173, %s174
      %p183 = scmp.eq.s32.totalorder %s48, 0
      %p184 = por %p182, %p183
      %p185 = scmp.ne.s32.totalorder %s173, %s174
      %p186 = scmp.eq.s32.totalorder %s49, 1
      %p187 = por %p185, %p186
      %p189 = scmp.ne.s32.totalorder %s174, %s188
      %p190 = scmp.eq.s32.totalorder %s49, 0
      %p191 = por %p189, %p190
      %s193 = sadd.s32 %s192, 1
      %p196 = scmp.eq.s32.totalorder %s43, 1
      %p197 = scmp.ne.s32.totalorder %s192, %s194
      %p198 = scmp.eq.s32.totalorder %s43, 0
      %p199 = por %p197, %p198
      %p200 = scmp.ne.s32.totalorder %s192, %s194
      %p201 = scmp.eq.s32.totalorder %s48, 1
      %p202 = por %p200, %p201
      %p203 = scmp.ne.s32.totalorder %s194, %s195
      %p204 = scmp.eq.s32.totalorder %s48, 0
      %p205 = por %p203, %p204
      %p206 = scmp.ne.s32.totalorder %s194, %s195
      %p207 = scmp.eq.s32.totalorder %s49, 1
      %p208 = por %p206, %p207
      %p210 = scmp.ne.s32.totalorder %s195, %s209
      %p211 = scmp.eq.s32.totalorder %s49, 0
      %p212 = por %p210, %p211
      %s214 = sadd.s32 %s213, 1
      %p217 = scmp.eq.s32.totalorder %s43, 1
      %p218 = scmp.ne.s32.totalorder %s213, %s215
      %p219 = scmp.eq.s32.totalorder %s43, 0
      %p220 = por %p218, %p219
      %p221 = scmp.ne.s32.totalorder %s213, %s215
      %p222 = scmp.eq.s32.totalorder %s48, 1
      %p223 = por %p221, %p222
      %p224 = scmp.ne.s32.totalorder %s215, %s216
      %p225 = scmp.eq.s32.totalorder %s48, 0
      %p226 = por %p224, %p225
      %p227 = scmp.ne.s32.totalorder %s215, %s216
      %p228 = scmp.eq.s32.totalorder %s49, 1
      %p229 = por %p227, %p228
      %p231 = scmp.ne.s32.totalorder %s216, %s230
      %p232 = scmp.eq.s32.totalorder %s49, 0
      %p233 = por %p231, %p232
      %s235 = sadd.s32 %s234, 1
      %p238 = scmp.eq.s32.totalorder %s43, 1
      %p239 = scmp.ne.s32.totalorder %s234, %s236
      %p240 = scmp.eq.s32.totalorder %s43, 0
      %p241 = por %p239, %p240
      %p242 = scmp.ne.s32.totalorder %s234, %s236
      %p243 = scmp.eq.s32.totalorder %s48, 1
      %p244 = por %p242, %p243
      %p245 = scmp.ne.s32.totalorder %s236, %s237
      %p246 = scmp.eq.s32.totalorder %s48, 0
      %p247 = por %p245, %p246
      %p248 = scmp.ne.s32.totalorder %s236, %s237
      %p249 = scmp.eq.s32.totalorder %s49, 1
      %p250 = por %p248, %p249
      %p252 = scmp.ne.s32.totalorder %s237, %s251
      %p253 = scmp.eq.s32.totalorder %s49, 0
      %p254 = por %p252, %p253
      %s256 = sadd.s32 %s255, 1
      %p259 = scmp.eq.s32.totalorder %s43, 1
      %p260 = scmp.ne.s32.totalorder %s255, %s257
      %p261 = scmp.eq.s32.totalorder %s43, 0
      %p262 = por %p260, %p261
      %p263 = scmp.ne.s32.totalorder %s255, %s257
      %p264 = scmp.eq.s32.totalorder %s48, 1
      %p265 = por %p263, %p264
      %p266 = scmp.ne.s32.totalorder %s257, %s258
      %p267 = scmp.eq.s32.totalorder %s48, 0
      %p268 = por %p266, %p267
      %p269 = scmp.ne.s32.totalorder %s257, %s258
      %p270 = scmp.eq.s32.totalorder %s49, 1
      %p271 = por %p269, %p270
      %p273 = scmp.ne.s32.totalorder %s258, %s272
      %p274 = scmp.eq.s32.totalorder %s49, 0
      %p275 = por %p273, %p274
      %s277 = sadd.s32 %s276, 1
      %p280 = scmp.eq.s32.totalorder %s43, 1
      %p281 = scmp.ne.s32.totalorder %s276, %s278
      %p282 = scmp.eq.s32.totalorder %s43, 0
      %p283 = por %p281, %p282
      %p284 = scmp.ne.s32.totalorder %s276, %s278
      %p285 = scmp.eq.s32.totalorder %s48, 1
      %p286 = por %p284, %p285
      %p287 = scmp.ne.s32.totalorder %s278, %s279
      %p288 = scmp.eq.s32.totalorder %s48, 0
      %p289 = por %p287, %p288
      %p290 = scmp.ne.s32.totalorder %s278, %s279
      %p291 = scmp.eq.s32.totalorder %s49, 1
      %p292 = por %p290, %p291
      %p294 = scmp.ne.s32.totalorder %s279, %s293
      %p295 = scmp.eq.s32.totalorder %s49, 0
      %p296 = por %p294, %p295
      %s298 = sadd.s32 %s297, 1
      %p301 = scmp.eq.s32.totalorder %s43, 1
      %p302 = scmp.ne.s32.totalorder %s297, %s299
      %p303 = scmp.eq.s32.totalorder %s43, 0
      %p304 = por %p302, %p303
      %p305 = scmp.ne.s32.totalorder %s297, %s299
      %p306 = scmp.eq.s32.totalorder %s48, 1
      %p307 = por %p305, %p306
      %p308 = scmp.ne.s32.totalorder %s299, %s300
      %p309 = scmp.eq.s32.totalorder %s48, 0
      %p310 = por %p308, %p309
      %p311 = scmp.ne.s32.totalorder %s299, %s300
      %p312 = scmp.eq.s32.totalorder %s49, 1
      %p313 = por %p311, %p312
      %p315 = scmp.ne.s32.totalorder %s300, %s314
      %p316 = scmp.eq.s32.totalorder %s49, 0
      %p317 = por %p315, %p316
      %s319 = sadd.s32 %s318, 1
      %p322 = scmp.eq.s32.totalorder %s43, 1
      %p323 = scmp.ne.s32.totalorder %s318, %s320
      %p324 = scmp.eq.s32.totalorder %s43, 0
      %p325 = por %p323, %p324
      %p326 = scmp.ne.s32.totalorder %s318, %s320
      %p327 = scmp.eq.s32.totalorder %s48, 1
      %p328 = por %p326, %p327
      %p329 = scmp.ne.s32.totalorder %s320, %s321
      %p330 = scmp.eq.s32.totalorder %s48, 0
      %p331 = por %p329, %p330
      %p332 = scmp.ne.s32.totalorder %s320, %s321
      %p333 = scmp.eq.s32.totalorder %s49, 1
      %p334 = por %p332, %p333
      %p336 = scmp.ne.s32.totalorder %s321, %s335
      %p337 = scmp.eq.s32.totalorder %s49, 0
      %p338 = por %p336, %p337
      %s340 = sadd.s32 %s339, 1
      %p343 = scmp.eq.s32.totalorder %s43, 1
      %p344 = scmp.ne.s32.totalorder %s339, %s341
      %p345 = scmp.eq.s32.totalorder %s43, 0
      %p346 = por %p344, %p345
      %p347 = scmp.ne.s32.totalorder %s339, %s341
      %p348 = scmp.eq.s32.totalorder %s48, 1
      %p349 = por %p347, %p348
      %p350 = scmp.ne.s32.totalorder %s341, %s342
      %p351 = scmp.eq.s32.totalorder %s48, 0
      %p352 = por %p350, %p351
      %p353 = scmp.ne.s32.totalorder %s341, %s342
      %p354 = scmp.eq.s32.totalorder %s49, 1
      %p355 = por %p353, %p354
      %p357 = scmp.ne.s32.totalorder %s342, %s356
      %p358 = scmp.eq.s32.totalorder %s49, 0
      %p359 = por %p357, %p358
      %s361 = sadd.s32 %s360, 1
      %p364 = scmp.eq.s32.totalorder %s43, 1
      %p365 = scmp.ne.s32.totalorder %s360, %s362
      %p366 = scmp.eq.s32.totalorder %s43, 0
      %p367 = por %p365, %p366
      %p368 = scmp.ne.s32.totalorder %s360, %s362
      %p369 = scmp.eq.s32.totalorder %s48, 1
      %p370 = por %p368, %p369
      %p371 = scmp.ne.s32.totalorder %s362, %s363
      %p372 = scmp.eq.s32.totalorder %s48, 0
      %p373 = por %p371, %p372
      %p374 = scmp.ne.s32.totalorder %s362, %s363
      %p375 = scmp.eq.s32.totalorder %s49, 1
      %p376 = por %p374, %p375
      %p378 = scmp.ne.s32.totalorder %s363, %s377
      %p379 = scmp.eq.s32.totalorder %s49, 0
      %p380 = por %p378, %p379
      %s382 = sadd.s32 %s381, 1
      %p385 = scmp.eq.s32.totalorder %s43, 1
      %p386 = scmp.ne.s32.totalorder %s381, %s383
      %p387 = scmp.eq.s32.totalorder %s43, 0
      %p388 = por %p386, %p387
      %p389 = scmp.ne.s32.totalorder %s381, %s383
      %p390 = scmp.eq.s32.totalorder %s48, 1
      %p391 = por %p389, %p390
      %p392 = scmp.ne.s32.totalorder %s383, %s384
      %p393 = scmp.eq.s32.totalorder %s48, 0
      %p394 = por %p392, %p393
      %p395 = scmp.ne.s32.totalorder %s383, %s384
      %p396 = scmp.eq.s32.totalorder %s49, 1
      %p397 = por %p395, %p396
      %p399 = scmp.ne.s32.totalorder %s384, %s398
      %p400 = scmp.eq.s32.totalorder %s49, 0
      %p401 = por %p399, %p400
      %s403 = sadd.s32 %s402, 1
      %p406 = scmp.eq.s32.totalorder %s43, 1
      %p407 = scmp.ne.s32.totalorder %s402, %s404
      %p408 = scmp.eq.s32.totalorder %s43, 0
      %p409 = por %p407, %p408
      %p410 = scmp.ne.s32.totalorder %s402, %s404
      %p411 = scmp.eq.s32.totalorder %s48, 1
      %p412 = por %p410, %p411
      %p413 = scmp.ne.s32.totalorder %s404, %s405
      %p414 = scmp.eq.s32.totalorder %s48, 0
      %p415 = por %p413, %p414
      %p416 = scmp.ne.s32.totalorder %s404, %s405
      %p417 = scmp.eq.s32.totalorder %s49, 1
      %p418 = por %p416, %p417
      %p420 = scmp.ne.s32.totalorder %s405, %s419
      %p421 = scmp.eq.s32.totalorder %s49, 0
      %p422 = por %p420, %p421
      %s424 = sadd.s32 %s423, 1
      %p427 = scmp.eq.s32.totalorder %s43, 1
      %p428 = scmp.ne.s32.totalorder %s423, %s425
      %p429 = scmp.eq.s32.totalorder %s43, 0
      %p430 = por %p428, %p429
      %p431 = scmp.ne.s32.totalorder %s423, %s425
      %p432 = scmp.eq.s32.totalorder %s48, 1
      %p433 = por %p431, %p432
      %p434 = scmp.ne.s32.totalorder %s425, %s426
      %p435 = scmp.eq.s32.totalorder %s48, 0
      %p436 = por %p434, %p435
      %p437 = scmp.ne.s32.totalorder %s425, %s426
      %p438 = scmp.eq.s32.totalorder %s49, 1
      %p439 = por %p437, %p438
      %p441 = scmp.ne.s32.totalorder %s426, %s440
      %p442 = scmp.eq.s32.totalorder %s49, 0
      %p443 = por %p441, %p442
      %s445 = sadd.s32 %s444, 1
      %p448 = scmp.eq.s32.totalorder %s43, 1
      %p449 = scmp.ne.s32.totalorder %s444, %s446
      %p450 = scmp.eq.s32.totalorder %s43, 0
      %p451 = por %p449, %p450
      %p452 = scmp.ne.s32.totalorder %s444, %s446
      %p453 = scmp.eq.s32.totalorder %s48, 1
      %p454 = por %p452, %p453
      %p455 = scmp.ne.s32.totalorder %s446, %s447
      %p456 = scmp.eq.s32.totalorder %s48, 0
      %p457 = por %p455, %p456
      %p458 = scmp.ne.s32.totalorder %s446, %s447
      %p459 = scmp.eq.s32.totalorder %s49, 1
      %p460 = por %p458, %p459
      %p462 = scmp.ne.s32.totalorder %s447, %s461
      %p463 = scmp.eq.s32.totalorder %s49, 0
      %p464 = por %p462, %p463
      %s466 = sadd.s32 %s465, 1
      %p469 = scmp.eq.s32.totalorder %s43, 1
      %p470 = scmp.ne.s32.totalorder %s465, %s467
      %p471 = scmp.eq.s32.totalorder %s43, 0
      %p472 = por %p470, %p471
      %p473 = scmp.ne.s32.totalorder %s465, %s467
      %p474 = scmp.eq.s32.totalorder %s48, 1
      %p475 = por %p473, %p474
      %p476 = scmp.ne.s32.totalorder %s467, %s468
      %p477 = scmp.eq.s32.totalorder %s48, 0
      %p478 = por %p476, %p477
      %p479 = scmp.ne.s32.totalorder %s467, %s468
      %p480 = scmp.eq.s32.totalorder %s49, 1
      %p481 = por %p479, %p480
      %p483 = scmp.ne.s32.totalorder %s468, %s482
      %p484 = scmp.eq.s32.totalorder %s49, 0
      %p485 = por %p483, %p484
      %s486 = ssub.s32 %s43, %s50
      %p487 = scmp.eq.s32.totalorder %s486, 0
      %s489 = sadd.s32 %s488, 1
      %s490 = scalar_select %p487, %s488, %s489
      %p493 = pneg %p487
      %p494 = scmp.eq.s32.totalorder %s43, 1
      %p495 = por %p493, %p494
      %p496 = scmp.ne.s32.totalorder %s488, %s491
      %p497 = scmp.eq.s32.totalorder %s43, 0
      %p498 = por %p496, %p497
      %p499 = scmp.ne.s32.totalorder %s488, %s491
      %p500 = scmp.eq.s32.totalorder %s48, 1
      %p501 = por %p499, %p500
      %p502 = scmp.ne.s32.totalorder %s491, %s492
      %p503 = scmp.eq.s32.totalorder %s48, 0
      %p504 = por %p502, %p503
      %p505 = scmp.ne.s32.totalorder %s491, %s492
      %p506 = scmp.eq.s32.totalorder %s49, 1
      %p507 = por %p505, %p506
      %p509 = scmp.ne.s32.totalorder %s492, %s508
      %p510 = scmp.eq.s32.totalorder %s49, 0
      %p511 = por %p509, %p510
      %s512 = ssub.s32 %s43, %s50
      %p513 = scmp.eq.s32.totalorder %s512, 0
      %s515 = sadd.s32 %s514, 1
      %s516 = scalar_select %p513, %s514, %s515
      %p519 = pneg %p513
      %p520 = scmp.eq.s32.totalorder %s43, 1
      %p521 = por %p519, %p520
      %p522 = scmp.ne.s32.totalorder %s514, %s517
      %p523 = scmp.eq.s32.totalorder %s43, 0
      %p524 = por %p522, %p523
      %p525 = scmp.ne.s32.totalorder %s514, %s517
      %p526 = scmp.eq.s32.totalorder %s48, 1
      %p527 = por %p525, %p526
      %p528 = scmp.ne.s32.totalorder %s517, %s518
      %p529 = scmp.eq.s32.totalorder %s48, 0
      %p530 = por %p528, %p529
      %p531 = scmp.ne.s32.totalorder %s517, %s518
      %p532 = scmp.eq.s32.totalorder %s49, 1
      %p533 = por %p531, %p532
      %p535 = scmp.ne.s32.totalorder %s518, %s534
      %p536 = scmp.eq.s32.totalorder %s49, 0
      %p537 = por %p535, %p536
      %p538 = scmp.le.s32.totalorder 1, %s43
      %p539 = scmp.lt.s32.totalorder %s43, 3
      %p540 = pnand %p538, %p539
      %p541 = pneg %p540
      // Predicated region
      $region9: #{tpu_custom_call.1} parent=5 // pred_check
        _
      $region10: #{tpu_custom_call.1} parent=5 // pred_check_branch
        %543 = sbr.rel (%p540) target = $region12
      $region11: #{tpu_custom_call.1} parent=5 // pred_region
        %s544 = ssub.s32 %s43, 1
        // Predicated region
        $region13: #{tpu_custom_call.1} parent=11 // pred_check
          %p545 = pneg %p142
        $region14: #{tpu_custom_call.1} parent=11 // pred_check_branch
          %547 = sbr.rel (%p545) target = $region16
        $region15: #{tpu_custom_call.1} parent=11 // pred_region
          %s549 = ssub.s32 128, 128
          %550 = vsyncadd [#allocation9], %s549
          %s552 = sshll.u32 [#allocation8], 4
          %s553 = int_to_ptr.vmem [resolvable:$true] %s552
          %555 = dma.hbm_to_vmem [thread:$0]  %s3, 128, %s553, [#allocation9]
        $region16: #{tpu_custom_call.1} parent=11 // pred_fallthru
          _
        // Predicated region
        $region17: #{tpu_custom_call.1} parent=11 // pred_check
          %p556 = pneg %p163
        $region18: #{tpu_custom_call.1} parent=11 // pred_check_branch
          %558 = sbr.rel (%p556) target = $region20
        $region19: #{tpu_custom_call.1} parent=11 // pred_region
          %s560 = ssub.s32 16, 16
          %561 = vsyncadd [#allocation9], %s560
          %s563 = sshll.u32 [#allocation10], 4
          %s564 = int_to_ptr.vmem [resolvable:$true] %s563
          %566 = dma.hbm_to_vmem [thread:$0]  %s4, 16, %s564, [#allocation9]
        $region20: #{tpu_custom_call.1} parent=11 // pred_fallthru
          _
        // Predicated region
        $region21: #{tpu_custom_call.1} parent=11 // pred_check
          %p567 = pneg %p184
        $region22: #{tpu_custom_call.1} parent=11 // pred_check_branch
          %569 = sbr.rel (%p567) target = $region24
        $region23: #{tpu_custom_call.1} parent=11 // pred_region
          %s571 = ssub.s32 16, 16
          %572 = vsyncadd [#allocation12], %s571
          %s574 = sshll.u32 [#allocation11], 4
          %s575 = int_to_ptr.vmem [resolvable:$true] %s574
          %577 = dma.hbm_to_vmem [thread:$0]  %s5, 16, %s575, [#allocation12]
        $region24: #{tpu_custom_call.1} parent=11 // pred_fallthru
          _
        // Predicated region
        $region25: #{tpu_custom_call.1} parent=11 // pred_check
          %p578 = pneg %p205
        $region26: #{tpu_custom_call.1} parent=11 // pred_check_branch
          %580 = sbr.rel (%p578) target = $region28
        $region27: #{tpu_custom_call.1} parent=11 // pred_region
          _
        $region28: #{tpu_custom_call.1} parent=11 // pred_fallthru
          _
        // Predicated region
        $region29: #{tpu_custom_call.1} parent=11 // pred_check
          %p581 = pneg %p226
        $region30: #{tpu_custom_call.1} parent=11 // pred_check_branch
          %583 = sbr.rel (%p581) target = $region32
        $region31: #{tpu_custom_call.1} parent=11 // pred_region
          _
        $region32: #{tpu_custom_call.1} parent=11 // pred_fallthru
          _
        // Predicated region
        $region33: #{tpu_custom_call.1} parent=11 // pred_check
          %p584 = pneg %p247
        $region34: #{tpu_custom_call.1} parent=11 // pred_check_branch
          %586 = sbr.rel (%p584) target = $region36
        $region35: #{tpu_custom_call.1} parent=11 // pred_region
          _
        $region36: #{tpu_custom_call.1} parent=11 // pred_fallthru
          _
        // Predicated region
        $region37: #{tpu_custom_call.1} parent=11 // pred_check
          %p587 = pneg %p268
        $region38: #{tpu_custom_call.1} parent=11 // pred_check_branch
          %589 = sbr.rel (%p587) target = $region40
        $region39: #{tpu_custom_call.1} parent=11 // pred_region
          _
        $region40: #{tpu_custom_call.1} parent=11 // pred_fallthru
          _
        // Predicated region
        $region41: #{tpu_custom_call.1} parent=11 // pred_check
          %p590 = pneg %p289
        $region42: #{tpu_custom_call.1} parent=11 // pred_check_branch
          %592 = sbr.rel (%p590) target = $region44
        $region43: #{tpu_custom_call.1} parent=11 // pred_region
          %s594 = ssub.s32 32, 32
          %595 = vsyncadd [#allocation12], %s594
          %s596 = sshll.u32 [#allocation13], 4
          %s597 = int_to_ptr.vmem [resolvable:$true] %s596
          %602 = dma.hbm_to_vmem [thread:$0]  %s10, 32, %s597, [#allocation12], 16, 16, 1
        $region44: #{tpu_custom_call.1} parent=11 // pred_fallthru
          _
        // Predicated region
        $region45: #{tpu_custom_call.1} parent=11 // pred_check
          %p603 = pneg %p310
        $region46: #{tpu_custom_call.1} parent=11 // pred_check_branch
          %605 = sbr.rel (%p603) target = $region48
        $region47: #{tpu_custom_call.1} parent=11 // pred_region
          %s607 = ssub.s32 32, 32
          %608 = vsyncadd [#allocation15], %s607
          %s609 = sshll.u32 [#allocation14], 4
          %s610 = int_to_ptr.vmem [resolvable:$true] %s609
          %615 = dma.hbm_to_vmem [thread:$0]  %s11, 32, %s610, [#allocation15], 16, 16, 1
        $region48: #{tpu_custom_call.1} parent=11 // pred_fallthru
          _
        // Predicated region
        $region49: #{tpu_custom_call.1} parent=11 // pred_check
          %p616 = pneg %p331
        $region50: #{tpu_custom_call.1} parent=11 // pred_check_branch
          %618 = sbr.rel (%p616) target = $region52
        $region51: #{tpu_custom_call.1} parent=11 // pred_region
          _
        $region52: #{tpu_custom_call.1} parent=11 // pred_fallthru
          _
        // Predicated region
        $region53: #{tpu_custom_call.1} parent=11 // pred_check
          %p619 = pneg %p352
        $region54: #{tpu_custom_call.1} parent=11 // pred_check_branch
          %621 = sbr.rel (%p619) target = $region56
        $region55: #{tpu_custom_call.1} parent=11 // pred_region
          %s623 = ssub.s32 32, 32
          %624 = vsyncadd [#allocation15], %s623
          %s625 = sshll.u32 [#allocation16], 4
          %s626 = int_to_ptr.vmem [resolvable:$true] %s625
          %631 = dma.hbm_to_vmem [thread:$0]  %s13, 32, %s626, [#allocation15], 16, 16, 1
        $region56: #{tpu_custom_call.1} parent=11 // pred_fallthru
          _
        // Predicated region
        $region57: #{tpu_custom_call.1} parent=11 // pred_check
          %p632 = pneg %p373
        $region58: #{tpu_custom_call.1} parent=11 // pred_check_branch
          %634 = sbr.rel (%p632) target = $region60
        $region59: #{tpu_custom_call.1} parent=11 // pred_region
          _
        $region60: #{tpu_custom_call.1} parent=11 // pred_fallthru
          _
        // Predicated region
        $region61: #{tpu_custom_call.1} parent=11 // pred_check
          %p635 = pneg %p394
        $region62: #{tpu_custom_call.1} parent=11 // pred_check_branch
          %637 = sbr.rel (%p635) target = $region64
        $region63: #{tpu_custom_call.1} parent=11 // pred_region
          _
        $region64: #{tpu_custom_call.1} parent=11 // pred_fallthru
          _
        // Predicated region
        $region65: #{tpu_custom_call.1} parent=11 // pred_check
          %p638 = pneg %p415
        $region66: #{tpu_custom_call.1} parent=11 // pred_check_branch
          %640 = sbr.rel (%p638) target = $region68
        $region67: #{tpu_custom_call.1} parent=11 // pred_region
          _
        $region68: #{tpu_custom_call.1} parent=11 // pred_fallthru
          _
        // Predicated region
        $region69: #{tpu_custom_call.1} parent=11 // pred_check
          %p641 = pneg %p436
        $region70: #{tpu_custom_call.1} parent=11 // pred_check_branch
          %643 = sbr.rel (%p641) target = $region72
        $region71: #{tpu_custom_call.1} parent=11 // pred_region
          _
        $region72: #{tpu_custom_call.1} parent=11 // pred_fallthru
          _
        // Predicated region
        $region73: #{tpu_custom_call.1} parent=11 // pred_check
          %p644 = pneg %p457
        $region74: #{tpu_custom_call.1} parent=11 // pred_check_branch
          %646 = sbr.rel (%p644) target = $region76
        $region75: #{tpu_custom_call.1} parent=11 // pred_region
          _
        $region76: #{tpu_custom_call.1} parent=11 // pred_fallthru
          _
        // Predicated region
        $region77: #{tpu_custom_call.1} parent=11 // pred_check
          %p647 = pneg %p478
        $region78: #{tpu_custom_call.1} parent=11 // pred_check_branch
          %649 = sbr.rel (%p647) target = $region80
        $region79: #{tpu_custom_call.1} parent=11 // pred_region
          _
        $region80: #{tpu_custom_call.1} parent=11 // pred_fallthru
          _
      $region12: #{tpu_custom_call.1} parent=5 // pred_fallthru
        _
      %p650 = scmp.lt.s32.totalorder %s43, 2
      // Predicated region
      $region81: #{tpu_custom_call.1} parent=5 // pred_check
        %p651 = pneg %p650
      $region82: #{tpu_custom_call.1} parent=5 // pred_check_branch
        %653 = sbr.rel (%p651) target = $region84
      $region83: #{tpu_custom_call.1} parent=5 // pred_region
        // Predicated region
        $region85: #{tpu_custom_call.1} parent=83 // pred_check
          %p654 = pneg %p63
        $region86: #{tpu_custom_call.1} parent=83 // pred_check_branch
          %656 = sbr.rel (%p654) target = $region88
        $region87: #{tpu_custom_call.1} parent=83 // pred_region
          %s657 = sand.u32 %s53, 1
          %s658 = scalar_lea.sflag [#allocation3], %s657
          %s659 = sand.u32 %s53, 1
          %s660 = scalar_lea.vmem [#allocation2], %s659
          %s662 = ssub.s32 16, 16
          %663 = vsyncadd %s658, %s662
          %s664 = smul.addr %s43, 16
          %s665 = scalar_lea.hbm %s0, %s664
          %s667 = sshll.u32 %s660, 4
          %s668 = int_to_ptr.vmem [resolvable:$true] %s667
          %670 = dma.hbm_to_vmem [thread:$0]  %s665, 16, %s668, %s658
        $region88: #{tpu_custom_call.1} parent=83 // pred_fallthru
          _
        // Predicated region
        $region89: #{tpu_custom_call.1} parent=83 // pred_check
          %p671 = pneg %p89
        $region90: #{tpu_custom_call.1} parent=83 // pred_check_branch
          %673 = sbr.rel (%p671) target = $region92
        $region91: #{tpu_custom_call.1} parent=83 // pred_region
          %s674 = sand.u32 %s43, 1
          %s675 = scalar_lea.sflag [#allocation6], %s674
          %s676 = sand.u32 %s79, 1
          %s677 = smul.addr %s676, 8
          %s678 = scalar_lea.vmem [#allocation5], %s677
          %s680 = ssub.s32 128, 128
          %681 = vsyncadd %s675, %s680
          %s682 = smul.addr %s43, 128
          %s683 = scalar_lea.hbm %s1, %s682
          %s685 = sshll.u32 %s678, 4
          %s686 = int_to_ptr.vmem [resolvable:$true] %s685
          %688 = dma.hbm_to_vmem [thread:$0]  %s683, 128, %s686, %s675
        $region92: #{tpu_custom_call.1} parent=83 // pred_fallthru
          _
        // Predicated region
        $region93: #{tpu_custom_call.1} parent=83 // pred_check
          %p689 = pneg %p115
        $region94: #{tpu_custom_call.1} parent=83 // pred_check_branch
          %691 = sbr.rel (%p689) target = $region96
        $region95: #{tpu_custom_call.1} parent=83 // pred_region
          %s692 = sand.u32 %s43, 1
          %s693 = scalar_lea.sflag [#allocation6], %s692
          %s694 = sand.u32 %s105, 1
          %s695 = smul.addr %s694, 8
          %s696 = scalar_lea.vmem [#allocation7], %s695
          %s698 = ssub.s32 128, 128
          %699 = vsyncadd %s693, %s698
          %s700 = smul.addr %s43, 128
          %s701 = scalar_lea.hbm %s2, %s700
          %s703 = sshll.u32 %s696, 4
          %s704 = int_to_ptr.vmem [resolvable:$true] %s703
          %706 = dma.hbm_to_vmem [thread:$0]  %s701, 128, %s704, %s693
        $region96: #{tpu_custom_call.1} parent=83 // pred_fallthru
          _
      $region84: #{tpu_custom_call.1} parent=5 // pred_fallthru
        _
      %p707 = scmp.le.s32.totalorder 1, %s43
      %p708 = scmp.lt.s32.totalorder %s43, 3
      %p709 = pnand %p707, %p708
      %p710 = pneg %p709
      // Predicated region
      $region97: #{tpu_custom_call.1} parent=5 // pred_check
        _
      $region98: #{tpu_custom_call.1} parent=5 // pred_check_branch
        %712 = sbr.rel (%p709) target = $region100
      $region99: #{tpu_custom_call.1} parent=5 // pred_region
        %s713 = ssub.s32 %s43, 1
        %s714 = sand.u32 %s56, 1
        %s715 = scalar_lea.sflag [#allocation3], %s714
        %s716 = sand.u32 %s56, 1
        %s717 = scalar_lea.vmem [#allocation2], %s716
        // Predicated region
        $region101: #{tpu_custom_call.1} parent=99 // pred_check
          %p718 = pneg %p69
        $region102: #{tpu_custom_call.1} parent=99 // pred_check_branch
          %720 = sbr.rel (%p718) target = $region104
        $region103: #{tpu_custom_call.1} parent=99 // pred_region
          %721 = dma.done %s715, 16
        $region104: #{tpu_custom_call.1} parent=99 // pred_fallthru
          _
        %s722 = sand.u32 %s48, 1
        %s723 = scalar_lea.sflag [#allocation6], %s722
        %s724 = sand.u32 %s82, 1
        %s725 = smul.addr %s724, 8
        %s726 = scalar_lea.vmem [#allocation5], %s725
        // Predicated region
        $region105: #{tpu_custom_call.1} parent=99 // pred_check
          %p727 = pneg %p95
        $region106: #{tpu_custom_call.1} parent=99 // pred_check_branch
          %729 = sbr.rel (%p727) target = $region108
        $region107: #{tpu_custom_call.1} parent=99 // pred_region
          %730 = dma.done %s723, 128
        $region108: #{tpu_custom_call.1} parent=99 // pred_fallthru
          _
        %s731 = sand.u32 %s48, 1
        %s732 = scalar_lea.sflag [#allocation6], %s731
        %s733 = sand.u32 %s108, 1
        %s734 = smul.addr %s733, 8
        %s735 = scalar_lea.vmem [#allocation7], %s734
        // Predicated region
        $region109: #{tpu_custom_call.1} parent=99 // pred_check
          %p736 = pneg %p121
        $region110: #{tpu_custom_call.1} parent=99 // pred_check_branch
          %738 = sbr.rel (%p736) target = $region112
        $region111: #{tpu_custom_call.1} parent=99 // pred_region
          %739 = dma.done %s732, 128
        $region112: #{tpu_custom_call.1} parent=99 // pred_fallthru
          _
        // Predicated region
        $region113: #{tpu_custom_call.1} parent=99 // pred_check
          %p740 = pneg %p142
        $region114: #{tpu_custom_call.1} parent=99 // pred_check_branch
          %742 = sbr.rel (%p740) target = $region116
        $region115: #{tpu_custom_call.1} parent=99 // pred_region
          %743 = dma.done [#allocation9], 128
        $region116: #{tpu_custom_call.1} parent=99 // pred_fallthru
          _
        // Predicated region
        $region117: #{tpu_custom_call.1} parent=99 // pred_check
          %p744 = pneg %p163
        $region118: #{tpu_custom_call.1} parent=99 // pred_check_branch
          %746 = sbr.rel (%p744) target = $region120
        $region119: #{tpu_custom_call.1} parent=99 // pred_region
          %747 = dma.done [#allocation9], 16
        $region120: #{tpu_custom_call.1} parent=99 // pred_fallthru
          _
        // Predicated region
        $region121: #{tpu_custom_call.1} parent=99 // pred_check
          %p748 = pneg %p184
        $region122: #{tpu_custom_call.1} parent=99 // pred_check_branch
          %750 = sbr.rel (%p748) target = $region124
        $region123: #{tpu_custom_call.1} parent=99 // pred_region
          %751 = dma.done [#allocation12], 16
        $region124: #{tpu_custom_call.1} parent=99 // pred_fallthru
          _
        // Predicated region
        $region125: #{tpu_custom_call.1} parent=99 // pred_check
          %p752 = pneg %p289
        $region126: #{tpu_custom_call.1} parent=99 // pred_check_branch
          %754 = sbr.rel (%p752) target = $region128
        $region127: #{tpu_custom_call.1} parent=99 // pred_region
          %755 = dma.done [#allocation12], 32
        $region128: #{tpu_custom_call.1} parent=99 // pred_fallthru
          _
        // Predicated region
        $region129: #{tpu_custom_call.1} parent=99 // pred_check
          %p756 = pneg %p310
        $region130: #{tpu_custom_call.1} parent=99 // pred_check_branch
          %758 = sbr.rel (%p756) target = $region132
        $region131: #{tpu_custom_call.1} parent=99 // pred_region
          %759 = dma.done [#allocation15], 32
        $region132: #{tpu_custom_call.1} parent=99 // pred_fallthru
          _
        // Predicated region
        $region133: #{tpu_custom_call.1} parent=99 // pred_check
          %p760 = pneg %p352
        $region134: #{tpu_custom_call.1} parent=99 // pred_check_branch
          %762 = sbr.rel (%p760) target = $region136
        $region135: #{tpu_custom_call.1} parent=99 // pred_region
          %763 = dma.done [#allocation15], 32
        $region136: #{tpu_custom_call.1} parent=99 // pred_fallthru
          _
        %s764 = sand.u32 %s56, 1
        %s765 = scalar_lea.sflag [#allocation3], %s764
        %s766 = sand.u32 %s56, 1
        %s767 = scalar_lea.vmem [#allocation2], %s766
        %p768 = pneg %p69
        %p769 = pneg %p66
        %s770 = sand.u32 %s48, 1
        %s771 = scalar_lea.sflag [#allocation6], %s770
        %s772 = sand.u32 %s82, 1
        %s773 = smul.addr %s772, 8
        %s774 = scalar_lea.vmem [#allocation5], %s773
        %p775 = pneg %p95
        %p776 = pneg %p92
        %s777 = sand.u32 %s48, 1
        %s778 = scalar_lea.sflag [#allocation6], %s777
        %s779 = sand.u32 %s108, 1
        %s780 = smul.addr %s779, 8
        %s781 = scalar_lea.vmem [#allocation7], %s780
        %p782 = pneg %p121
        %p783 = pneg %p118
        %p784 = pneg %p142
        %p785 = pneg %p139
        %p786 = pneg %p163
        %p787 = pneg %p160
        %p788 = pneg %p184
        %p789 = pneg %p181
        %p790 = pneg %p205
        %p791 = pneg %p202
        %p792 = pneg %p226
        %p793 = pneg %p223
        %p794 = pneg %p247
        %p795 = pneg %p244
        %p796 = pneg %p268
        %p797 = pneg %p265
        %p798 = pneg %p289
        %p799 = pneg %p286
        %p800 = pneg %p310
        %p801 = pneg %p307
        %p802 = pneg %p331
        %p803 = pneg %p328
        %p804 = pneg %p352
        %p805 = pneg %p349
        %p806 = pneg %p373
        %p807 = pneg %p370
        %p808 = pneg %p394
        %p809 = pneg %p391
        %p810 = pneg %p415
        %p811 = pneg %p412
        %p812 = pneg %p436
        %p813 = pneg %p433
        %p814 = pneg %p457
        %p815 = pneg %p454
        %p816 = pneg %p478
        %p817 = pneg %p475
        %p818 = pneg %p504
        %p819 = pneg %p501
        %s820 = sand.u32 %s491, 1
        %s821 = scalar_lea.sflag [#allocation4], %s820
        %s822 = sand.u32 %s491, 1
        %s823 = smul.addr %s822, 16
        %s824 = scalar_lea.vmem [#allocation17], %s823
        %p825 = pneg %p530
        %p826 = pneg %p527
        %s827 = sand.u32 %s517, 1
        %s828 = scalar_lea.sflag [#allocation19], %s827
        %s829 = sand.u32 %s517, 1
        %s830 = scalar_lea.vmem [#allocation18], %s829
        %v832 = vld [vmem:[%s726] sm:$0xff]
        %v833 = vld [vmem:[#allocation8] sm:$0xff]
        %v834 = vadd.f32 %v832, %v833
        %v835 = vld [vmem:[%s735] sm:$0xff]
        %v836 = vadd.f32 %v834, %v835
        %v837 = vld [vmem:[#allocation10] sm:$0x1]
        %v838 = vld [vmem:[#allocation11] sm:$0x1]
        %vm839 = vcmask 261120
        %v840 = vsel %vm839, %v836, 0.0
        %841 = vadd.xlane.f32.xlu0 %v840
        %v842 = vpop.xlane.xlu0 %841
        %v843 = vrcp.pop 32.0
        %v844 = vmul.f32 %v842, %v843
        %v845 = vsub.f32 %v836, %v844
        %v846 = vmul.f32 %v845, %v845
        %v847 = vsel %vm839, %v846, 0.0
        %848 = vadd.xlane.f32.xlu0 %v847
        %v849 = vpop.xlane.xlu0 %848
        %v850 = vmul.f32 %v849, %v843
        %v851 = vadd.f32 %v850, 1e-12
        %v852 = vrsqrt.pop %v851
        %v853 = vmul.f32 %v851, %v852
        %vm854 = vcmp.eq.f32.partialorder %v851, inf
        %v855 = vsel %vm854, %v851, %v853
        %vm856 = vcmp.eq.f32.partialorder %v851, 0.0
        %v857 = vand.u32 %v851, 2147483648
        %v858 = vsel %vm856, %v857, %v855
        %v859 = vrcp.pop %v858
        %v860 = vmul.f32 %v845, %v859
        %v862 = vlaneseq
        %v863 = vshrl.u32 %v862, 7
        %v864 = vsub.s32 0, %v863
        %v865 = vrot.slane %v837, %v864
        %v867 = vmul.f32 %v865, %v860
        %v869 = vlaneseq
        %v870 = vshrl.u32 %v869, 7
        %v871 = vsub.s32 0, %v870
        %v872 = vrot.slane %v838, %v871
        %v874 = vadd.f32 %v867, %v872
        %v875 = vld [vmem:[%s717] sm:$0x1]
        %v877 = vlaneseq
        %v878 = vshrl.u32 %v877, 7
        %v879 = vsub.s32 0, %v878
        %v880 = vrot.slane %v875, %v879
        %v882 = vpack.c.bf16 %v874, %v874
        %v883 = vld [vmem:[%s6] sm:$0xf]
        %v884 = vld [vmem:[%s6 + $0x4] sm:$0xf]
        %v885 = vld [vmem:[%s6 + $0x8] sm:$0xf]
        %v886 = vld [vmem:[%s6 + $0xc] sm:$0xf]
        %v887 = vld [vmem:[%s7] sm:$0x1]
        %v889 = vlaneseq
        %v890 = vshrl.u32 %v889, 7
        %v891 = vsub.s32 0, %v890
        %v892 = vrot.slane %v887, %v891
        %v898 = vunpack.c.l.b16 %v883
        %v899 = vunpack.c.l.b16 %v884
        %v900 = vunpack.c.l.b16 %v885
        %v901 = vunpack.c.l.b16 %v886
        %v902 = vpack.c.b16 %v899, %v898
        %v903 = vpack.c.b16 %v901, %v900
        %v907 = vsel %vm839, %v882, 0
        %909 = vmatprep.subr.bf16.mxu0 0
        %910 = vmatpush1.bf16.msra.mxu0 %v902
        %911 = vmatprep.subr.bf16.mxu0 0
        %912 = vmatpush1.bf16.msra.mxu0 %v903
        %913 = vmatprep.subr.bf16.mxu0 0
        %914 = vmatpush1.bf16.msra.mxu0 0
        %915 = vmatprep.subr.bf16.mxu0 0
        %916 = vmatpush1.bf16.msra.mxu0 0
        %917 = vmatprep.subr.bf16.mxu0 0
        %918 = vmatpush1.bf16.msra.mxu0 0
        %919 = vmatprep.subr.bf16.mxu0 0
        %920 = vmatpush1.bf16.msra.mxu0 0
        %921 = vmatprep.subr.bf16.mxu0 0
        %922 = vmatpush1.bf16.msra.mxu0 0
        %923 = vmatprep.subr.bf16.mxu0 0
        %924 = vmatpush1.bf16.msra.mxu0 0
        %925 = vmatprep.subr.bf16.mxu0 0
        %926 = vmatpush1.bf16.msra.mxu0 0
        %927 = vmatprep.subr.bf16.mxu0 0
        %928 = vmatpush1.bf16.msra.mxu0 0
        %929 = vmatprep.subr.bf16.mxu0 0
        %930 = vmatpush1.bf16.msra.mxu0 0
        %931 = vmatprep.subr.bf16.mxu0 0
        %932 = vmatpush1.bf16.msra.mxu0 0
        %933 = vmatprep.subr.bf16.mxu0 0
        %934 = vmatpush1.bf16.msra.mxu0 0
        %935 = vmatprep.subr.bf16.mxu0 0
        %936 = vmatpush1.bf16.msra.mxu0 0
        %937 = vmatprep.subr.bf16.mxu0 0
        %938 = vmatpush1.bf16.msra.mxu0 0
        %939 = vmatprep.subr.bf16.mxu0 0
        %940 = vmatpush1.bf16.msra.mxu0 0
        %941 = vmatprep.mubr.bf16.mxu0 0
        %942 = vmatmul.mubr.bf16.gmra.mrb[0].mxu0 %v907
        %v943 = vpop.f32.mrb[0].mxu0
        %v944 = vadd.f32 %v892, %v943
        %v945 = vpop.f32.mrb[0].mxu0
        %v946 = vpop.f32.mrb[0].mxu0
        %v947 = vpop.f32.mrb[0].mxu0
        %948 = vdwg.mxu0
        %950 = vrot.lane.b32.xlu0 %v944, 120
        %v951 = vpop.permute.xlu0 %950
        %953 = vrot.lane.b32.xlu0 %v944, 112
        %v954 = vpop.permute.xlu0 %953
        %956 = vrot.lane.b32.xlu0 %v944, 104
        %v957 = vpop.permute.xlu0 %956
        %v959 = vpack.c.bf16 %v944, %v944
        %v960 = vpack.c.bf16 %v951, %v951
        %v961 = vpack.c.bf16 %v954, %v954
        %v962 = vpack.c.bf16 %v957, %v957
        %964 = vrot.lane.b32.xlu0 %v959, 96
        %v965 = vpop.permute.xlu0 %964
        %vm966 = vcmask 64512
        %v968 = vsel %vm966, %v959, 0
        %v971 = vsel %vm966, %v965, 0
        %973 = vmatprep.subr.bf16.mxu0 0
        %974 = vmatpush1.bf16.xpose.msra.mxu0 %v971
        %975 = vmatprep.subr.bf16.mxu0 0
        %976 = vmatpush1.bf16.xpose.msra.mxu0 0
        %977 = vmatprep.subr.bf16.mxu0 0
        %978 = vmatpush1.bf16.xpose.msra.mxu0 0
        %979 = vmatprep.subr.bf16.mxu0 0
        %980 = vmatpush1.bf16.xpose.msra.mxu0 0
        %981 = vmatprep.subr.bf16.mxu0 0
        %982 = vmatpush1.bf16.xpose.msra.mxu0 0
        %983 = vmatprep.subr.bf16.mxu0 0
        %984 = vmatpush1.bf16.xpose.msra.mxu0 0
        %985 = vmatprep.subr.bf16.mxu0 0
        %986 = vmatpush1.bf16.xpose.msra.mxu0 0
        %987 = vmatprep.subr.bf16.mxu0 0
        %988 = vmatpush1.bf16.xpose.msra.mxu0 0
        %989 = vmatprep.subr.bf16.mxu0 0
        %990 = vmatpush1.bf16.xpose.msra.mxu0 0
        %991 = vmatprep.subr.bf16.mxu0 0
        %992 = vmatpush1.bf16.xpose.msra.mxu0 0
        %993 = vmatprep.subr.bf16.mxu0 0
        %994 = vmatpush1.bf16.xpose.msra.mxu0 0
        %995 = vmatprep.subr.bf16.mxu0 0
        %996 = vmatpush1.bf16.xpose.msra.mxu0 0
        %997 = vmatprep.subr.bf16.mxu0 0
        %998 = vmatpush1.bf16.xpose.msra.mxu0 0
        %999 = vmatprep.subr.bf16.mxu0 0
        %1000 = vmatpush1.bf16.xpose.msra.mxu0 0
        %1001 = vmatprep.subr.bf16.mxu0 0
        %1002 = vmatpush1.bf16.xpose.msra.mxu0 0
        %1003 = vmatprep.subr.bf16.mxu0 0
        %1004 = vmatpush1.bf16.xpose.msra.mxu0 0
        %1005 = vmatprep.mubr.bf16.mxu0 0
        %1006 = vmatmul.mubr.bf16.gmra.mrb[0].mxu0 %v968
        %v1007 = vpop.f32.mrb[0].mxu0
        %v1008 = vadd.f32 0.0, %v1007
        %v1009 = vpop.f32.mrb[0].mxu0
        %v1010 = vpop.f32.mrb[0].mxu0
        %v1011 = vpop.f32.mrb[0].mxu0
        %1012 = vdwg.mxu0
        %1014 = vrot.lane.b32.xlu0 %v960, 96
        %v1015 = vpop.permute.xlu0 %1014
        %v1017 = vsel %vm966, %v960, 0
        %v1020 = vsel %vm966, %v1015, 0
        %1022 = vmatprep.subr.bf16.mxu0 0
        %1023 = vmatpush1.bf16.xpose.msra.mxu0 %v1020
        %1024 = vmatprep.subr.bf16.mxu0 0
        %1025 = vmatpush1.bf16.xpose.msra.mxu0 0
        %1026 = vmatprep.subr.bf16.mxu0 0
        %1027 = vmatpush1.bf16.xpose.msra.mxu0 0
        %1028 = vmatprep.subr.bf16.mxu0 0
        %1029 = vmatpush1.bf16.xpose.msra.mxu0 0
        %1030 = vmatprep.subr.bf16.mxu0 0
        %1031 = vmatpush1.bf16.xpose.msra.mxu0 0
        %1032 = vmatprep.subr.bf16.mxu0 0
        %1033 = vmatpush1.bf16.xpose.msra.mxu0 0
        %1034 = vmatprep.subr.bf16.mxu0 0
        %1035 = vmatpush1.bf16.xpose.msra.mxu0 0
        %1036 = vmatprep.subr.bf16.mxu0 0
        %1037 = vmatpush1.bf16.xpose.msra.mxu0 0
        %1038 = vmatprep.subr.bf16.mxu0 0
        %1039 = vmatpush1.bf16.xpose.msra.mxu0 0
        %1040 = vmatprep.subr.bf16.mxu0 0
        %1041 = vmatpush1.bf16.xpose.msra.mxu0 0
        %1042 = vmatprep.subr.bf16.mxu0 0
        %1043 = vmatpush1.bf16.xpose.msra.mxu0 0
        %1044 = vmatprep.subr.bf16.mxu0 0
        %1045 = vmatpush1.bf16.xpose.msra.mxu0 0
        %1046 = vmatprep.subr.bf16.mxu0 0
        %1047 = vmatpush1.bf16.xpose.msra.mxu0 0
        %1048 = vmatprep.subr.bf16.mxu0 0
        %1049 = vmatpush1.bf16.xpose.msra.mxu0 0
        %1050 = vmatprep.subr.bf16.mxu0 0
        %1051 = vmatpush1.bf16.xpose.msra.mxu0 0
        %1052 = vmatprep.subr.bf16.mxu0 0
        %1053 = vmatpush1.bf16.xpose.msra.mxu0 0
        %1054 = vmatprep.mubr.bf16.mxu0 0
        %1055 = vmatmul.mubr.bf16.gmra.mrb[0].mxu0 %v1017
        %v1056 = vpop.f32.mrb[0].mxu0
        %v1057 = vadd.f32 0.0, %v1056
        %v1058 = vpop.f32.mrb[0].mxu0
        %v1059 = vpop.f32.mrb[0].mxu0
        %v1060 = vpop.f32.mrb[0].mxu0
        %1061 = vdwg.mxu0
        %1063 = vrot.lane.b32.xlu0 %v961, 96
        %v1064 = vpop.permute.xlu0 %1063
        %v1066 = vsel %vm966, %v961, 0
        %v1069 = vsel %vm966, %v1064, 0
        %1071 = vmatprep.subr.bf16.mxu0 0
        %1072 = vmatpush1.bf16.xpose.msra.mxu0 %v1069
        %1073 = vmatprep.subr.bf16.mxu0 0
        %1074 = vmatpush1.bf16.xpose.msra.mxu0 0
        %1075 = vmatprep.subr.bf16.mxu0 0
        %1076 = vmatpush1.bf16.xpose.msra.mxu0 0
        %1077 = vmatprep.subr.bf16.mxu0 0
        %1078 = vmatpush1.bf16.xpose.msra.mxu0 0
        %1079 = vmatprep.subr.bf16.mxu0 0
        %1080 = vmatpush1.bf16.xpose.msra.mxu0 0
        %1081 = vmatprep.subr.bf16.mxu0 0
        %1082 = vmatpush1.bf16.xpose.msra.mxu0 0
        %1083 = vmatprep.subr.bf16.mxu0 0
        %1084 = vmatpush1.bf16.xpose.msra.mxu0 0
        %1085 = vmatprep.subr.bf16.mxu0 0
        %1086 = vmatpush1.bf16.xpose.msra.mxu0 0
        %1087 = vmatprep.subr.bf16.mxu0 0
        %1088 = vmatpush1.bf16.xpose.msra.mxu0 0
        %1089 = vmatprep.subr.bf16.mxu0 0
        %1090 = vmatpush1.bf16.xpose.msra.mxu0 0
        %1091 = vmatprep.subr.bf16.mxu0 0
        %1092 = vmatpush1.bf16.xpose.msra.mxu0 0
        %1093 = vmatprep.subr.bf16.mxu0 0
        %1094 = vmatpush1.bf16.xpose.msra.mxu0 0
        %1095 = vmatprep.subr.bf16.mxu0 0
        %1096 = vmatpush1.bf16.xpose.msra.mxu0 0
        %1097 = vmatprep.subr.bf16.mxu0 0
        %1098 = vmatpush1.bf16.xpose.msra.mxu0 0
        %1099 = vmatprep.subr.bf16.mxu0 0
        %1100 = vmatpush1.bf16.xpose.msra.mxu0 0
        %1101 = vmatprep.subr.bf16.mxu0 0
        %1102 = vmatpush1.bf16.xpose.msra.mxu0 0
        %1103 = vmatprep.mubr.bf16.mxu0 0
        %1104 = vmatmul.mubr.bf16.gmra.mrb[0].mxu0 %v1066
        %v1105 = vpop.f32.mrb[0].mxu0
        %v1106 = vadd.f32 0.0, %v1105
        %v1107 = vpop.f32.mrb[0].mxu0
        %v1108 = vpop.f32.mrb[0].mxu0
        %v1109 = vpop.f32.mrb[0].mxu0
        %1110 = vdwg.mxu0
        %1112 = vrot.lane.b32.xlu0 %v962, 96
        %v1113 = vpop.permute.xlu0 %1112
        %v1115 = vsel %vm966, %v962, 0
        %v1118 = vsel %vm966, %v1113, 0
        %1120 = vmatprep.subr.bf16.mxu0 0
        %1121 = vmatpush1.bf16.xpose.msra.mxu0 %v1118
        %1122 = vmatprep.subr.bf16.mxu0 0
        %1123 = vmatpush1.bf16.xpose.msra.mxu0 0
        %1124 = vmatprep.subr.bf16.mxu0 0
        %1125 = vmatpush1.bf16.xpose.msra.mxu0 0
        %1126 = vmatprep.subr.bf16.mxu0 0
        %1127 = vmatpush1.bf16.xpose.msra.mxu0 0
        %1128 = vmatprep.subr.bf16.mxu0 0
        %1129 = vmatpush1.bf16.xpose.msra.mxu0 0
        %1130 = vmatprep.subr.bf16.mxu0 0
        %1131 = vmatpush1.bf16.xpose.msra.mxu0 0
        %1132 = vmatprep.subr.bf16.mxu0 0
        %1133 = vmatpush1.bf16.xpose.msra.mxu0 0
        %1134 = vmatprep.subr.bf16.mxu0 0
        %1135 = vmatpush1.bf16.xpose.msra.mxu0 0
        %1136 = vmatprep.subr.bf16.mxu0 0
        %1137 = vmatpush1.bf16.xpose.msra.mxu0 0
        %1138 = vmatprep.subr.bf16.mxu0 0
        %1139 = vmatpush1.bf16.xpose.msra.mxu0 0
        %1140 = vmatprep.subr.bf16.mxu0 0
        %1141 = vmatpush1.bf16.xpose.msra.mxu0 0
        %1142 = vmatprep.subr.bf16.mxu0 0
        %1143 = vmatpush1.bf16.xpose.msra.mxu0 0
        %1144 = vmatprep.subr.bf16.mxu0 0
        %1145 = vmatpush1.bf16.xpose.msra.mxu0 0
        %1146 = vmatprep.subr.bf16.mxu0 0
        %1147 = vmatpush1.bf16.xpose.msra.mxu0 0
        %1148 = vmatprep.subr.bf16.mxu0 0
        %1149 = vmatpush1.bf16.xpose.msra.mxu0 0
        %1150 = vmatprep.subr.bf16.mxu0 0
        %1151 = vmatpush1.bf16.xpose.msra.mxu0 0
        %1152 = vmatprep.mubr.bf16.mxu0 0
        %1153 = vmatmul.mubr.bf16.gmra.mrb[0].mxu0 %v1115
        %v1154 = vpop.f32.mrb[0].mxu0
        %v1155 = vadd.f32 0.0, %v1154
        %v1156 = vpop.f32.mrb[0].mxu0
        %v1157 = vpop.f32.mrb[0].mxu0
        %v1158 = vpop.f32.mrb[0].mxu0
        %1159 = vdwg.mxu0
        %v1160 = vmul.f32 %v1008, 0.35355338
        %v1161 = vmul.f32 %v1057, 0.35355338
        %v1162 = vmul.f32 %v1106, 0.35355338
        %v1163 = vmul.f32 %v1155, 0.35355338
        %v1164 = vadd.f32 %v1160, %v880
        %v1165 = vadd.f32 %v1161, %v880
        %v1166 = vadd.f32 %v1162, %v880
        %v1167 = vadd.f32 %v1163, %v880
        %v1168 = vsel %vm966, %v1164, -inf
        %1169 = vmax.xlane.f32.xlu0 %v1168
        %v1170 = vpop.xlane.xlu0 %1169
        %v1171 = vsel %vm966, %v1165, -inf
        %1172 = vmax.xlane.f32.xlu0 %v1171
        %v1173 = vpop.xlane.xlu0 %1172
        %v1174 = vsel %vm966, %v1166, -inf
        %1175 = vmax.xlane.f32.xlu0 %v1174
        %v1176 = vpop.xlane.xlu0 %1175
        %v1177 = vsel %vm966, %v1167, -inf
        %1178 = vmax.xlane.f32.xlu0 %v1177
        %v1179 = vpop.xlane.xlu0 %1178
        %v1180 = vsub.f32 %v1164, %v1170
        %v1181 = vsub.f32 %v1165, %v1173
        %v1182 = vsub.f32 %v1166, %v1176
        %v1183 = vsub.f32 %v1167, %v1179
        %v1184 = vmul.f32 %v1180, 1.442695
        %v1185 = vpow.pop %v1184
        %v1186 = vmul.f32 %v1181, 1.442695
        %v1187 = vpow.pop %v1186
        %v1188 = vmul.f32 %v1182, 1.442695
        %v1189 = vpow.pop %v1188
        %v1190 = vmul.f32 %v1183, 1.442695
        %v1191 = vpow.pop %v1190
        %v1192 = vsel %vm966, %v1185, 0.0
        %1193 = vadd.xlane.f32.xlu0 %v1192
        %v1194 = vpop.xlane.xlu0 %1193
        %v1195 = vsel %vm966, %v1187, 0.0
        %1196 = vadd.xlane.f32.xlu0 %v1195
        %v1197 = vpop.xlane.xlu0 %1196
        %v1198 = vsel %vm966, %v1189, 0.0
        %1199 = vadd.xlane.f32.xlu0 %v1198
        %v1200 = vpop.xlane.xlu0 %1199
        %v1201 = vsel %vm966, %v1191, 0.0
        %1202 = vadd.xlane.f32.xlu0 %v1201
        %v1203 = vpop.xlane.xlu0 %1202
        %v1204 = vrcp.pop %v1194
        %v1205 = vmul.f32 %v1185, %v1204
        %v1206 = vrcp.pop %v1197
        %v1207 = vmul.f32 %v1187, %v1206
        %v1208 = vrcp.pop %v1200
        %v1209 = vmul.f32 %v1189, %v1208
        %v1210 = vrcp.pop %v1203
        %v1211 = vmul.f32 %v1191, %v1210
        %v1212 = vpack.c.bf16 %v1205, %v1205
        %v1213 = vpack.c.bf16 %v1207, %v1207
        %v1214 = vpack.c.bf16 %v1209, %v1209
        %v1215 = vpack.c.bf16 %v1211, %v1211
        %1216 = vrot.lane.b32.xlu0 %v959, 64
        %v1217 = vpop.permute.xlu0 %1216
        %v1219 = vsel %vm966, %v1212, 0
        %vm1221 = vcmask 1043456
        %v1223 = vsel %vm1221, %v1217, 0
        %1225 = vmatprep.subr.bf16.mxu0 0
        %1226 = vmatpush1.bf16.msra.mxu0 %v1223
        %1227 = vmatprep.subr.bf16.mxu0 0
        %1228 = vmatpush1.bf16.msra.mxu0 0
        %1229 = vmatprep.subr.bf16.mxu0 0
        %1230 = vmatpush1.bf16.msra.mxu0 0
        %1231 = vmatprep.subr.bf16.mxu0 0
        %1232 = vmatpush1.bf16.msra.mxu0 0
        %1233 = vmatprep.subr.bf16.mxu0 0
        %1234 = vmatpush1.bf16.msra.mxu0 0
        %1235 = vmatprep.subr.bf16.mxu0 0
        %1236 = vmatpush1.bf16.msra.mxu0 0
        %1237 = vmatprep.subr.bf16.mxu0 0
        %1238 = vmatpush1.bf16.msra.mxu0 0
        %1239 = vmatprep.subr.bf16.mxu0 0
        %1240 = vmatpush1.bf16.msra.mxu0 0
        %1241 = vmatprep.subr.bf16.mxu0 0
        %1242 = vmatpush1.bf16.msra.mxu0 0
        %1243 = vmatprep.subr.bf16.mxu0 0
        %1244 = vmatpush1.bf16.msra.mxu0 0
        %1245 = vmatprep.subr.bf16.mxu0 0
        %1246 = vmatpush1.bf16.msra.mxu0 0
        %1247 = vmatprep.subr.bf16.mxu0 0
        %1248 = vmatpush1.bf16.msra.mxu0 0
        %1249 = vmatprep.subr.bf16.mxu0 0
        %1250 = vmatpush1.bf16.msra.mxu0 0
        %1251 = vmatprep.subr.bf16.mxu0 0
        %1252 = vmatpush1.bf16.msra.mxu0 0
        %1253 = vmatprep.subr.bf16.mxu0 0
        %1254 = vmatpush1.bf16.msra.mxu0 0
        %1255 = vmatprep.subr.bf16.mxu0 0
        %1256 = vmatpush1.bf16.msra.mxu0 0
        %1257 = vmatprep.mubr.bf16.mxu0 0
        %1258 = vmatmul.mubr.bf16.gmra.mrb[0].mxu0 %v1219
        %v1259 = vpop.f32.mrb[0].mxu0
        %v1260 = vadd.f32 0.0, %v1259
        %v1261 = vpop.f32.mrb[0].mxu0
        %v1262 = vpop.f32.mrb[0].mxu0
        %v1263 = vpop.f32.mrb[0].mxu0
        %1264 = vdwg.mxu0
        %1265 = vrot.lane.b32.xlu0 %v960, 64
        %v1266 = vpop.permute.xlu0 %1265
        %v1268 = vsel %vm966, %v1213, 0
        %v1271 = vsel %vm1221, %v1266, 0
        %1273 = vmatprep.subr.bf16.mxu0 0
        %1274 = vmatpush1.bf16.msra.mxu0 %v1271
        %1275 = vmatprep.subr.bf16.mxu0 0
        %1276 = vmatpush1.bf16.msra.mxu0 0
        %1277 = vmatprep.subr.bf16.mxu0 0
        %1278 = vmatpush1.bf16.msra.mxu0 0
        %1279 = vmatprep.subr.bf16.mxu0 0
        %1280 = vmatpush1.bf16.msra.mxu0 0
        %1281 = vmatprep.subr.bf16.mxu0 0
        %1282 = vmatpush1.bf16.msra.mxu0 0
        %1283 = vmatprep.subr.bf16.mxu0 0
        %1284 = vmatpush1.bf16.msra.mxu0 0
        %1285 = vmatprep.subr.bf16.mxu0 0
        %1286 = vmatpush1.bf16.msra.mxu0 0
        %1287 = vmatprep.subr.bf16.mxu0 0
        %1288 = vmatpush1.bf16.msra.mxu0 0
        %1289 = vmatprep.subr.bf16.mxu0 0
        %1290 = vmatpush1.bf16.msra.mxu0 0
        %1291 = vmatprep.subr.bf16.mxu0 0
        %1292 = vmatpush1.bf16.msra.mxu0 0
        %1293 = vmatprep.subr.bf16.mxu0 0
        %1294 = vmatpush1.bf16.msra.mxu0 0
        %1295 = vmatprep.subr.bf16.mxu0 0
        %1296 = vmatpush1.bf16.msra.mxu0 0
        %1297 = vmatprep.subr.bf16.mxu0 0
        %1298 = vmatpush1.bf16.msra.mxu0 0
        %1299 = vmatprep.subr.bf16.mxu0 0
        %1300 = vmatpush1.bf16.msra.mxu0 0
        %1301 = vmatprep.subr.bf16.mxu0 0
        %1302 = vmatpush1.bf16.msra.mxu0 0
        %1303 = vmatprep.subr.bf16.mxu0 0
        %1304 = vmatpush1.bf16.msra.mxu0 0
        %1305 = vmatprep.mubr.bf16.mxu0 0
        %1306 = vmatmul.mubr.bf16.gmra.mrb[0].mxu0 %v1268
        %v1307 = vpop.f32.mrb[0].mxu0
        %v1308 = vadd.f32 0.0, %v1307
        %v1309 = vpop.f32.mrb[0].mxu0
        %v1310 = vpop.f32.mrb[0].mxu0
        %v1311 = vpop.f32.mrb[0].mxu0
        %1312 = vdwg.mxu0
        %1313 = vrot.lane.b32.xlu0 %v961, 64
        %v1314 = vpop.permute.xlu0 %1313
        %v1316 = vsel %vm966, %v1214, 0
        %v1319 = vsel %vm1221, %v1314, 0
        %1321 = vmatprep.subr.bf16.mxu0 0
        %1322 = vmatpush1.bf16.msra.mxu0 %v1319
        %1323 = vmatprep.subr.bf16.mxu0 0
        %1324 = vmatpush1.bf16.msra.mxu0 0
        %1325 = vmatprep.subr.bf16.mxu0 0
        %1326 = vmatpush1.bf16.msra.mxu0 0
        %1327 = vmatprep.subr.bf16.mxu0 0
        %1328 = vmatpush1.bf16.msra.mxu0 0
        %1329 = vmatprep.subr.bf16.mxu0 0
        %1330 = vmatpush1.bf16.msra.mxu0 0
        %1331 = vmatprep.subr.bf16.mxu0 0
        %1332 = vmatpush1.bf16.msra.mxu0 0
        %1333 = vmatprep.subr.bf16.mxu0 0
        %1334 = vmatpush1.bf16.msra.mxu0 0
        %1335 = vmatprep.subr.bf16.mxu0 0
        %1336 = vmatpush1.bf16.msra.mxu0 0
        %1337 = vmatprep.subr.bf16.mxu0 0
        %1338 = vmatpush1.bf16.msra.mxu0 0
        %1339 = vmatprep.subr.bf16.mxu0 0
        %1340 = vmatpush1.bf16.msra.mxu0 0
        %1341 = vmatprep.subr.bf16.mxu0 0
        %1342 = vmatpush1.bf16.msra.mxu0 0
        %1343 = vmatprep.subr.bf16.mxu0 0
        %1344 = vmatpush1.bf16.msra.mxu0 0
        %1345 = vmatprep.subr.bf16.mxu0 0
        %1346 = vmatpush1.bf16.msra.mxu0 0
        %1347 = vmatprep.subr.bf16.mxu0 0
        %1348 = vmatpush1.bf16.msra.mxu0 0
        %1349 = vmatprep.subr.bf16.mxu0 0
        %1350 = vmatpush1.bf16.msra.mxu0 0
        %1351 = vmatprep.subr.bf16.mxu0 0
        %1352 = vmatpush1.bf16.msra.mxu0 0
        %1353 = vmatprep.mubr.bf16.mxu0 0
        %1354 = vmatmul.mubr.bf16.gmra.mrb[0].mxu0 %v1316
        %v1355 = vpop.f32.mrb[0].mxu0
        %v1356 = vadd.f32 0.0, %v1355
        %v1357 = vpop.f32.mrb[0].mxu0
        %v1358 = vpop.f32.mrb[0].mxu0
        %v1359 = vpop.f32.mrb[0].mxu0
        %1360 = vdwg.mxu0
        %1361 = vrot.lane.b32.xlu0 %v962, 64
        %v1362 = vpop.permute.xlu0 %1361
        %v1364 = vsel %vm966, %v1215, 0
        %v1367 = vsel %vm1221, %v1362, 0
        %1369 = vmatprep.subr.bf16.mxu0 0
        %1370 = vmatpush1.bf16.msra.mxu0 %v1367
        %1371 = vmatprep.subr.bf16.mxu0 0
        %1372 = vmatpush1.bf16.msra.mxu0 0
        %1373 = vmatprep.subr.bf16.mxu0 0
        %1374 = vmatpush1.bf16.msra.mxu0 0
        %1375 = vmatprep.subr.bf16.mxu0 0
        %1376 = vmatpush1.bf16.msra.mxu0 0
        %1377 = vmatprep.subr.bf16.mxu0 0
        %1378 = vmatpush1.bf16.msra.mxu0 0
        %1379 = vmatprep.subr.bf16.mxu0 0
        %1380 = vmatpush1.bf16.msra.mxu0 0
        %1381 = vmatprep.subr.bf16.mxu0 0
        %1382 = vmatpush1.bf16.msra.mxu0 0
        %1383 = vmatprep.subr.bf16.mxu0 0
        %1384 = vmatpush1.bf16.msra.mxu0 0
        %1385 = vmatprep.subr.bf16.mxu0 0
        %1386 = vmatpush1.bf16.msra.mxu0 0
        %1387 = vmatprep.subr.bf16.mxu0 0
        %1388 = vmatpush1.bf16.msra.mxu0 0
        %1389 = vmatprep.subr.bf16.mxu0 0
        %1390 = vmatpush1.bf16.msra.mxu0 0
        %1391 = vmatprep.subr.bf16.mxu0 0
        %1392 = vmatpush1.bf16.msra.mxu0 0
        %1393 = vmatprep.subr.bf16.mxu0 0
        %1394 = vmatpush1.bf16.msra.mxu0 0
        %1395 = vmatprep.subr.bf16.mxu0 0
        %1396 = vmatpush1.bf16.msra.mxu0 0
        %1397 = vmatprep.subr.bf16.mxu0 0
        %1398 = vmatpush1.bf16.msra.mxu0 0
        %1399 = vmatprep.subr.bf16.mxu0 0
        %1400 = vmatpush1.bf16.msra.mxu0 0
        %1401 = vmatprep.mubr.bf16.mxu0 0
        %1402 = vmatmul.mubr.bf16.gmra.mrb[0].mxu0 %v1364
        %v1403 = vpop.f32.mrb[0].mxu0
        %v1404 = vadd.f32 0.0, %v1403
        %v1405 = vpop.f32.mrb[0].mxu0
        %v1406 = vpop.f32.mrb[0].mxu0
        %v1407 = vpop.f32.mrb[0].mxu0
        %1408 = vdwg.mxu0
        %v1409 = vpack.c.bf16 %v1260, %v1260
        %v1410 = vpack.c.bf16 %v1308, %v1308
        %v1411 = vpack.c.bf16 %v1356, %v1356
        %v1412 = vpack.c.bf16 %v1404, %v1404
        %v1413 = vld [vmem:[%s8] sm:$0xf]
        %v1414 = vld [vmem:[%s8 + $0x4] sm:$0xf]
        %v1415 = vld [vmem:[%s8 + $0x8] sm:$0xf]
        %v1416 = vld [vmem:[%s8 + $0xc] sm:$0xf]
        %v1418 = vsel %vm966, %v1409, 0
        %v1421 = vsel %vm1221, %v1413, 0
        %1423 = vmatprep.subr.bf16.mxu0 0
        %1424 = vmatpush1.bf16.msra.mxu0 %v1421
        %1425 = vmatprep.subr.bf16.mxu0 0
        %1426 = vmatpush1.bf16.msra.mxu0 0
        %1427 = vmatprep.subr.bf16.mxu0 0
        %1428 = vmatpush1.bf16.msra.mxu0 0
        %1429 = vmatprep.subr.bf16.mxu0 0
        %1430 = vmatpush1.bf16.msra.mxu0 0
        %1431 = vmatprep.subr.bf16.mxu0 0
        %1432 = vmatpush1.bf16.msra.mxu0 0
        %1433 = vmatprep.subr.bf16.mxu0 0
        %1434 = vmatpush1.bf16.msra.mxu0 0
        %1435 = vmatprep.subr.bf16.mxu0 0
        %1436 = vmatpush1.bf16.msra.mxu0 0
        %1437 = vmatprep.subr.bf16.mxu0 0
        %1438 = vmatpush1.bf16.msra.mxu0 0
        %1439 = vmatprep.subr.bf16.mxu0 0
        %1440 = vmatpush1.bf16.msra.mxu0 0
        %1441 = vmatprep.subr.bf16.mxu0 0
        %1442 = vmatpush1.bf16.msra.mxu0 0
        %1443 = vmatprep.subr.bf16.mxu0 0
        %1444 = vmatpush1.bf16.msra.mxu0 0
        %1445 = vmatprep.subr.bf16.mxu0 0
        %1446 = vmatpush1.bf16.msra.mxu0 0
        %1447 = vmatprep.subr.bf16.mxu0 0
        %1448 = vmatpush1.bf16.msra.mxu0 0
        %1449 = vmatprep.subr.bf16.mxu0 0
        %1450 = vmatpush1.bf16.msra.mxu0 0
        %1451 = vmatprep.subr.bf16.mxu0 0
        %1452 = vmatpush1.bf16.msra.mxu0 0
        %1453 = vmatprep.subr.bf16.mxu0 0
        %1454 = vmatpush1.bf16.msra.mxu0 0
        %1455 = vmatprep.mubr.bf16.mxu0 0
        %1456 = vmatmul.mubr.bf16.gmra.mrb[0].mxu0 %v1418
        %v1457 = vpop.f32.mrb[0].mxu0
        %v1458 = vadd.f32 0.0, %v1457
        %v1459 = vpop.f32.mrb[0].mxu0
        %v1460 = vpop.f32.mrb[0].mxu0
        %v1461 = vpop.f32.mrb[0].mxu0
        %1462 = vdwg.mxu0
        %v1464 = vsel %vm966, %v1410, 0
        %v1467 = vsel %vm1221, %v1414, 0
        %1469 = vmatprep.subr.bf16.mxu0 0
        %1470 = vmatpush1.bf16.msra.mxu0 %v1467
        %1471 = vmatprep.subr.bf16.mxu0 0
        %1472 = vmatpush1.bf16.msra.mxu0 0
        %1473 = vmatprep.subr.bf16.mxu0 0
        %1474 = vmatpush1.bf16.msra.mxu0 0
        %1475 = vmatprep.subr.bf16.mxu0 0
        %1476 = vmatpush1.bf16.msra.mxu0 0
        %1477 = vmatprep.subr.bf16.mxu0 0
        %1478 = vmatpush1.bf16.msra.mxu0 0
        %1479 = vmatprep.subr.bf16.mxu0 0
        %1480 = vmatpush1.bf16.msra.mxu0 0
        %1481 = vmatprep.subr.bf16.mxu0 0
        %1482 = vmatpush1.bf16.msra.mxu0 0
        %1483 = vmatprep.subr.bf16.mxu0 0
        %1484 = vmatpush1.bf16.msra.mxu0 0
        %1485 = vmatprep.subr.bf16.mxu0 0
        %1486 = vmatpush1.bf16.msra.mxu0 0
        %1487 = vmatprep.subr.bf16.mxu0 0
        %1488 = vmatpush1.bf16.msra.mxu0 0
        %1489 = vmatprep.subr.bf16.mxu0 0
        %1490 = vmatpush1.bf16.msra.mxu0 0
        %1491 = vmatprep.subr.bf16.mxu0 0
        %1492 = vmatpush1.bf16.msra.mxu0 0
        %1493 = vmatprep.subr.bf16.mxu0 0
        %1494 = vmatpush1.bf16.msra.mxu0 0
        %1495 = vmatprep.subr.bf16.mxu0 0
        %1496 = vmatpush1.bf16.msra.mxu0 0
        %1497 = vmatprep.subr.bf16.mxu0 0
        %1498 = vmatpush1.bf16.msra.mxu0 0
        %1499 = vmatprep.subr.bf16.mxu0 0
        %1500 = vmatpush1.bf16.msra.mxu0 0
        %1501 = vmatprep.mubr.bf16.mxu0 0
        %1502 = vmatmul.mubr.bf16.gmra.mrb[0].mxu0 %v1464
        %v1503 = vpop.f32.mrb[0].mxu0
        %v1504 = vadd.f32 0.0, %v1503
        %v1505 = vpop.f32.mrb[0].mxu0
        %v1506 = vpop.f32.mrb[0].mxu0
        %v1507 = vpop.f32.mrb[0].mxu0
        %1508 = vdwg.mxu0
        %v1510 = vsel %vm966, %v1411, 0
        %v1513 = vsel %vm1221, %v1415, 0
        %1515 = vmatprep.subr.bf16.mxu0 0
        %1516 = vmatpush1.bf16.msra.mxu0 %v1513
        %1517 = vmatprep.subr.bf16.mxu0 0
        %1518 = vmatpush1.bf16.msra.mxu0 0
        %1519 = vmatprep.subr.bf16.mxu0 0
        %1520 = vmatpush1.bf16.msra.mxu0 0
        %1521 = vmatprep.subr.bf16.mxu0 0
        %1522 = vmatpush1.bf16.msra.mxu0 0
        %1523 = vmatprep.subr.bf16.mxu0 0
        %1524 = vmatpush1.bf16.msra.mxu0 0
        %1525 = vmatprep.subr.bf16.mxu0 0
        %1526 = vmatpush1.bf16.msra.mxu0 0
        %1527 = vmatprep.subr.bf16.mxu0 0
        %1528 = vmatpush1.bf16.msra.mxu0 0
        %1529 = vmatprep.subr.bf16.mxu0 0
        %1530 = vmatpush1.bf16.msra.mxu0 0
        %1531 = vmatprep.subr.bf16.mxu0 0
        %1532 = vmatpush1.bf16.msra.mxu0 0
        %1533 = vmatprep.subr.bf16.mxu0 0
        %1534 = vmatpush1.bf16.msra.mxu0 0
        %1535 = vmatprep.subr.bf16.mxu0 0
        %1536 = vmatpush1.bf16.msra.mxu0 0
        %1537 = vmatprep.subr.bf16.mxu0 0
        %1538 = vmatpush1.bf16.msra.mxu0 0
        %1539 = vmatprep.subr.bf16.mxu0 0
        %1540 = vmatpush1.bf16.msra.mxu0 0
        %1541 = vmatprep.subr.bf16.mxu0 0
        %1542 = vmatpush1.bf16.msra.mxu0 0
        %1543 = vmatprep.subr.bf16.mxu0 0
        %1544 = vmatpush1.bf16.msra.mxu0 0
        %1545 = vmatprep.subr.bf16.mxu0 0
        %1546 = vmatpush1.bf16.msra.mxu0 0
        %1547 = vmatprep.mubr.bf16.mxu0 0
        %1548 = vmatmul.mubr.bf16.gmra.mrb[0].mxu0 %v1510
        %v1549 = vpop.f32.mrb[0].mxu0
        %v1550 = vadd.f32 0.0, %v1549
        %v1551 = vpop.f32.mrb[0].mxu0
        %v1552 = vpop.f32.mrb[0].mxu0
        %v1553 = vpop.f32.mrb[0].mxu0
        %1554 = vdwg.mxu0
        %v1556 = vsel %vm966, %v1412, 0
        %v1559 = vsel %vm1221, %v1416, 0
        %1561 = vmatprep.subr.bf16.mxu0 0
        %1562 = vmatpush1.bf16.msra.mxu0 %v1559
        %1563 = vmatprep.subr.bf16.mxu0 0
        %1564 = vmatpush1.bf16.msra.mxu0 0
        %1565 = vmatprep.subr.bf16.mxu0 0
        %1566 = vmatpush1.bf16.msra.mxu0 0
        %1567 = vmatprep.subr.bf16.mxu0 0
        %1568 = vmatpush1.bf16.msra.mxu0 0
        %1569 = vmatprep.subr.bf16.mxu0 0
        %1570 = vmatpush1.bf16.msra.mxu0 0
        %1571 = vmatprep.subr.bf16.mxu0 0
        %1572 = vmatpush1.bf16.msra.mxu0 0
        %1573 = vmatprep.subr.bf16.mxu0 0
        %1574 = vmatpush1.bf16.msra.mxu0 0
        %1575 = vmatprep.subr.bf16.mxu0 0
        %1576 = vmatpush1.bf16.msra.mxu0 0
        %1577 = vmatprep.subr.bf16.mxu0 0
        %1578 = vmatpush1.bf16.msra.mxu0 0
        %1579 = vmatprep.subr.bf16.mxu0 0
        %1580 = vmatpush1.bf16.msra.mxu0 0
        %1581 = vmatprep.subr.bf16.mxu0 0
        %1582 = vmatpush1.bf16.msra.mxu0 0
        %1583 = vmatprep.subr.bf16.mxu0 0
        %1584 = vmatpush1.bf16.msra.mxu0 0
        %1585 = vmatprep.subr.bf16.mxu0 0
        %1586 = vmatpush1.bf16.msra.mxu0 0
        %1587 = vmatprep.subr.bf16.mxu0 0
        %1588 = vmatpush1.bf16.msra.mxu0 0
        %1589 = vmatprep.subr.bf16.mxu0 0
        %1590 = vmatpush1.bf16.msra.mxu0 0
        %1591 = vmatprep.subr.bf16.mxu0 0
        %1592 = vmatpush1.bf16.msra.mxu0 0
        %1593 = vmatprep.mubr.bf16.mxu0 0
        %1594 = vmatmul.mubr.bf16.gmra.mrb[0].mxu0 %v1556
        %v1595 = vpop.f32.mrb[0].mxu0
        %v1596 = vadd.f32 0.0, %v1595
        %v1597 = vpop.f32.mrb[0].mxu0
        %v1598 = vpop.f32.mrb[0].mxu0
        %v1599 = vpop.f32.mrb[0].mxu0
        %1600 = vdwg.mxu0
        %v1601 = vsel %vm839, %v1458, 0.0
        %v1602 = vsel %vm839, %v1504, 0.0
        %v1603 = vadd.f32 %v1601, %v1602
        %v1604 = vsel %vm839, %v1550, 0.0
        %v1605 = vadd.f32 %v1603, %v1604
        %v1606 = vsel %vm839, %v1596, 0.0
        %v1607 = vadd.f32 %v1605, %v1606
        %v1608 = vld [vmem:[%s9] sm:$0x1]
        %v1610 = vlaneseq
        %v1611 = vshrl.u32 %v1610, 7
        %v1612 = vsub.s32 0, %v1611
        %v1613 = vrot.slane %v1608, %v1612
        %v1615 = vadd.f32 %v1607, %v1613
        %v1616 = vadd.f32 %v1615, %v874
        %v1617 = vld [vmem:[#allocation13] sm:$0x1]
        %v1618 = vld [vmem:[#allocation14] sm:$0x1]
        %v1619 = vsel %vm839, %v1616, 0.0
        %1620 = vadd.xlane.f32.xlu0 %v1619
        %v1621 = vpop.xlane.xlu0 %1620
        %v1622 = vmul.f32 %v1621, %v843
        %v1623 = vsub.f32 %v1616, %v1622
        %v1624 = vmul.f32 %v1623, %v1623
        %v1625 = vsel %vm839, %v1624, 0.0
        %1626 = vadd.xlane.f32.xlu0 %v1625
        %v1627 = vpop.xlane.xlu0 %1626
        %v1628 = vmul.f32 %v1627, %v843
        %v1629 = vadd.f32 %v1628, 1e-12
        %v1630 = vrsqrt.pop %v1629
        %v1631 = vmul.f32 %v1629, %v1630
        %vm1632 = vcmp.eq.f32.partialorder %v1629, inf
        %v1633 = vsel %vm1632, %v1629, %v1631
        %vm1634 = vcmp.eq.f32.partialorder %v1629, 0.0
        %v1635 = vand.u32 %v1629, 2147483648
        %v1636 = vsel %vm1634, %v1635, %v1633
        %v1637 = vrcp.pop %v1636
        %v1638 = vmul.f32 %v1623, %v1637
        %v1640 = vlaneseq
        %v1641 = vshrl.u32 %v1640, 7
        %v1642 = vsub.s32 0, %v1641
        %v1643 = vrot.slane %v1617, %v1642
        %v1645 = vmul.f32 %v1643, %v1638
        %v1647 = vlaneseq
        %v1648 = vshrl.u32 %v1647, 7
        %v1649 = vsub.s32 0, %v1648
        %v1650 = vrot.slane %v1618, %v1649
        %v1652 = vadd.f32 %v1645, %v1650
        %v1653 = vpack.c.bf16 %v1652, %v1652
        %v1654 = vld [vmem:[%s12] sm:$0xf]
        %v1655 = vld [vmem:[%s12 + $0x4] sm:$0xf]
        %v1656 = vld [vmem:[%s12 + $0x8] sm:$0xf]
        %v1657 = vld [vmem:[%s12 + $0xc] sm:$0xf]
        %v1658 = vld [vmem:[#allocation16] sm:$0x1]
        %v1660 = vlaneseq
        %v1661 = vshrl.u32 %v1660, 7
        %v1662 = vsub.s32 0, %v1661
        %v1663 = vrot.slane %v1658, %v1662
        %v1669 = vunpack.c.l.b16 %v1654
        %v1670 = vunpack.c.l.b16 %v1655
        %v1671 = vunpack.c.l.b16 %v1656
        %v1672 = vunpack.c.l.b16 %v1657
        %v1673 = vpack.c.b16 %v1670, %v1669
        %v1674 = vpack.c.b16 %v1672, %v1671
        %v1678 = vsel %vm839, %v1653, 0
        %1680 = vmatprep.subr.bf16.mxu0 0
        %1681 = vmatpush1.bf16.msra.mxu0 %v1673
        %1682 = vmatprep.subr.bf16.mxu0 0
        %1683 = vmatpush1.bf16.msra.mxu0 %v1674
        %1684 = vmatprep.subr.bf16.mxu0 0
        %1685 = vmatpush1.bf16.msra.mxu0 0
        %1686 = vmatprep.subr.bf16.mxu0 0
        %1687 = vmatpush1.bf16.msra.mxu0 0
        %1688 = vmatprep.subr.bf16.mxu0 0
        %1689 = vmatpush1.bf16.msra.mxu0 0
        %1690 = vmatprep.subr.bf16.mxu0 0
        %1691 = vmatpush1.bf16.msra.mxu0 0
        %1692 = vmatprep.subr.bf16.mxu0 0
        %1693 = vmatpush1.bf16.msra.mxu0 0
        %1694 = vmatprep.subr.bf16.mxu0 0
        %1695 = vmatpush1.bf16.msra.mxu0 0
        %1696 = vmatprep.subr.bf16.mxu0 0
        %1697 = vmatpush1.bf16.msra.mxu0 0
        %1698 = vmatprep.subr.bf16.mxu0 0
        %1699 = vmatpush1.bf16.msra.mxu0 0
        %1700 = vmatprep.subr.bf16.mxu0 0
        %1701 = vmatpush1.bf16.msra.mxu0 0
        %1702 = vmatprep.subr.bf16.mxu0 0
        %1703 = vmatpush1.bf16.msra.mxu0 0
        %1704 = vmatprep.subr.bf16.mxu0 0
        %1705 = vmatpush1.bf16.msra.mxu0 0
        %1706 = vmatprep.subr.bf16.mxu0 0
        %1707 = vmatpush1.bf16.msra.mxu0 0
        %1708 = vmatprep.subr.bf16.mxu0 0
        %1709 = vmatpush1.bf16.msra.mxu0 0
        %1710 = vmatprep.subr.bf16.mxu0 0
        %1711 = vmatpush1.bf16.msra.mxu0 0
        %1712 = vmatprep.mubr.bf16.mxu0 0
        %1713 = vmatmul.mubr.bf16.gmra.mrb[0].mxu0 %v1678
        %v1714 = vpop.f32.mrb[0].mxu0
        %v1715 = vadd.f32 %v1663, %v1714
        %v1716 = vpop.f32.mrb[0].mxu0
        %v1717 = vpop.f32.mrb[0].mxu0
        %v1718 = vpop.f32.mrb[0].mxu0
        %1719 = vdwg.mxu0
        %v1720 = vmul.f32 %v1715, 0.5
        %v1721 = vrcp.pop 1.4142135
        %v1722 = vmul.f32 %v1715, %v1721
        %v1723 = verf.f32.pop %v1722
        %v1724 = vadd.f32 %v1723, 1.0
        %v1725 = vmul.f32 %v1720, %v1724
        %v1726 = vpack.c.bf16 %v1725, %v1725
        %v1727 = vld [vmem:[%s14] sm:$0xf]
        %v1728 = vld [vmem:[%s14 + $0x4] sm:$0xf]
        %v1729 = vld [vmem:[%s14 + $0x8] sm:$0xf]
        %v1730 = vld [vmem:[%s14 + $0xc] sm:$0xf]
        %v1731 = vld [vmem:[%s14 + $0x10] sm:$0xf]
        %v1732 = vld [vmem:[%s14 + $0x14] sm:$0xf]
        %v1733 = vld [vmem:[%s14 + $0x18] sm:$0xf]
        %v1734 = vld [vmem:[%s14 + $0x1c] sm:$0xf]
        %v1735 = vld [vmem:[%s15] sm:$0x1]
        %v1737 = vlaneseq
        %v1738 = vshrl.u32 %v1737, 7
        %v1739 = vsub.s32 0, %v1738
        %v1740 = vrot.slane %v1735, %v1739
        %v1750 = vunpack.c.l.b16 %v1727
        %v1751 = vunpack.c.l.b16 %v1728
        %v1752 = vunpack.c.l.b16 %v1729
        %v1753 = vunpack.c.l.b16 %v1730
        %v1754 = vunpack.c.l.b16 %v1731
        %v1755 = vunpack.c.l.b16 %v1732
        %v1756 = vunpack.c.l.b16 %v1733
        %v1757 = vunpack.c.l.b16 %v1734
        %v1758 = vpack.c.b16 %v1751, %v1750
        %v1759 = vpack.c.b16 %v1753, %v1752
        %v1760 = vpack.c.b16 %v1755, %v1754
        %v1761 = vpack.c.b16 %v1757, %v1756
        %vm1766 = vcmask 523264
        %v1768 = vsel %vm1766, %v1726, 0
        %1770 = vmatprep.subr.bf16.mxu0 0
        %1771 = vmatpush1.bf16.msra.mxu0 %v1758
        %1772 = vmatprep.subr.bf16.mxu0 0
        %1773 = vmatpush1.bf16.msra.mxu0 %v1759
        %1774 = vmatprep.subr.bf16.mxu0 0
        %1775 = vmatpush1.bf16.msra.mxu0 %v1760
        %1776 = vmatprep.subr.bf16.mxu0 0
        %1777 = vmatpush1.bf16.msra.mxu0 %v1761
        %1778 = vmatprep.subr.bf16.mxu0 0
        %1779 = vmatpush1.bf16.msra.mxu0 0
        %1780 = vmatprep.subr.bf16.mxu0 0
        %1781 = vmatpush1.bf16.msra.mxu0 0
        %1782 = vmatprep.subr.bf16.mxu0 0
        %1783 = vmatpush1.bf16.msra.mxu0 0
        %1784 = vmatprep.subr.bf16.mxu0 0
        %1785 = vmatpush1.bf16.msra.mxu0 0
        %1786 = vmatprep.subr.bf16.mxu0 0
        %1787 = vmatpush1.bf16.msra.mxu0 0
        %1788 = vmatprep.subr.bf16.mxu0 0
        %1789 = vmatpush1.bf16.msra.mxu0 0
        %1790 = vmatprep.subr.bf16.mxu0 0
        %1791 = vmatpush1.bf16.msra.mxu0 0
        %1792 = vmatprep.subr.bf16.mxu0 0
        %1793 = vmatpush1.bf16.msra.mxu0 0
        %1794 = vmatprep.subr.bf16.mxu0 0
        %1795 = vmatpush1.bf16.msra.mxu0 0
        %1796 = vmatprep.subr.bf16.mxu0 0
        %1797 = vmatpush1.bf16.msra.mxu0 0
        %1798 = vmatprep.subr.bf16.mxu0 0
        %1799 = vmatpush1.bf16.msra.mxu0 0
        %1800 = vmatprep.subr.bf16.mxu0 0
        %1801 = vmatpush1.bf16.msra.mxu0 0
        %1802 = vmatprep.mubr.bf16.mxu0 0
        %1803 = vmatmul.mubr.bf16.gmra.mrb[0].mxu0 %v1768
        %v1804 = vpop.f32.mrb[0].mxu0
        %v1805 = vadd.f32 %v1740, %v1804
        %v1806 = vpop.f32.mrb[0].mxu0
        %v1807 = vpop.f32.mrb[0].mxu0
        %v1808 = vpop.f32.mrb[0].mxu0
        %1809 = vdwg.mxu0
        %v1810 = vadd.f32 %v1805, %v1652
        %v1811 = vld [vmem:[%s16] sm:$0x1]
        %v1812 = vld [vmem:[%s17] sm:$0x1]
        %v1813 = vsel %vm839, %v1810, 0.0
        %1814 = vadd.xlane.f32.xlu0 %v1813
        %v1815 = vpop.xlane.xlu0 %1814
        %v1816 = vmul.f32 %v1815, %v843
        %v1817 = vsub.f32 %v1810, %v1816
        %v1818 = vmul.f32 %v1817, %v1817
        %v1819 = vsel %vm839, %v1818, 0.0
        %1820 = vadd.xlane.f32.xlu0 %v1819
        %v1821 = vpop.xlane.xlu0 %1820
        %v1822 = vmul.f32 %v1821, %v843
        %v1823 = vadd.f32 %v1822, 1e-12
        %v1824 = vrsqrt.pop %v1823
        %v1825 = vmul.f32 %v1823, %v1824
        %vm1826 = vcmp.eq.f32.partialorder %v1823, inf
        %v1827 = vsel %vm1826, %v1823, %v1825
        %vm1828 = vcmp.eq.f32.partialorder %v1823, 0.0
        %v1829 = vand.u32 %v1823, 2147483648
        %v1830 = vsel %vm1828, %v1829, %v1827
        %v1831 = vrcp.pop %v1830
        %v1832 = vmul.f32 %v1817, %v1831
        %v1834 = vlaneseq
        %v1835 = vshrl.u32 %v1834, 7
        %v1836 = vsub.s32 0, %v1835
        %v1837 = vrot.slane %v1811, %v1836
        %v1839 = vmul.f32 %v1837, %v1832
        %v1841 = vlaneseq
        %v1842 = vshrl.u32 %v1841, 7
        %v1843 = vsub.s32 0, %v1842
        %v1844 = vrot.slane %v1812, %v1843
        %v1846 = vadd.f32 %v1839, %v1844
        %1847 = vst.msk [vmem:[%s824] sm:$0xff] %vm839, %v1846
        %v1848 = vpack.c.bf16 %v1846, %v1846
        %s1849 = scalar_lea.vmem %s6, 16
        %v1850 = vld [vmem:[%s1849] sm:$0xf]
        %v1851 = vld [vmem:[%s1849 + $0x4] sm:$0xf]
        %v1852 = vld [vmem:[%s1849 + $0x8] sm:$0xf]
        %v1853 = vld [vmem:[%s1849 + $0xc] sm:$0xf]
        %s1854 = scalar_lea.vmem %s7, 1
        %v1855 = vld [vmem:[%s1854] sm:$0x1]
        %v1857 = vlaneseq
        %v1858 = vshrl.u32 %v1857, 7
        %v1859 = vsub.s32 0, %v1858
        %v1860 = vrot.slane %v1855, %v1859
        %v1866 = vunpack.c.l.b16 %v1850
        %v1867 = vunpack.c.l.b16 %v1851
        %v1868 = vunpack.c.l.b16 %v1852
        %v1869 = vunpack.c.l.b16 %v1853
        %v1870 = vpack.c.b16 %v1867, %v1866
        %v1871 = vpack.c.b16 %v1869, %v1868
        %v1875 = vsel %vm839, %v1848, 0
        %1877 = vmatprep.subr.bf16.mxu0 0
        %1878 = vmatpush1.bf16.msra.mxu0 %v1870
        %1879 = vmatprep.subr.bf16.mxu0 0
        %1880 = vmatpush1.bf16.msra.mxu0 %v1871
        %1881 = vmatprep.subr.bf16.mxu0 0
        %1882 = vmatpush1.bf16.msra.mxu0 0
        %1883 = vmatprep.subr.bf16.mxu0 0
        %1884 = vmatpush1.bf16.msra.mxu0 0
        %1885 = vmatprep.subr.bf16.mxu0 0
        %1886 = vmatpush1.bf16.msra.mxu0 0
        %1887 = vmatprep.subr.bf16.mxu0 0
        %1888 = vmatpush1.bf16.msra.mxu0 0
        %1889 = vmatprep.subr.bf16.mxu0 0
        %1890 = vmatpush1.bf16.msra.mxu0 0
        %1891 = vmatprep.subr.bf16.mxu0 0
        %1892 = vmatpush1.bf16.msra.mxu0 0
        %1893 = vmatprep.subr.bf16.mxu0 0
        %1894 = vmatpush1.bf16.msra.mxu0 0
        %1895 = vmatprep.subr.bf16.mxu0 0
        %1896 = vmatpush1.bf16.msra.mxu0 0
        %1897 = vmatprep.subr.bf16.mxu0 0
        %1898 = vmatpush1.bf16.msra.mxu0 0
        %1899 = vmatprep.subr.bf16.mxu0 0
        %1900 = vmatpush1.bf16.msra.mxu0 0
        %1901 = vmatprep.subr.bf16.mxu0 0
        %1902 = vmatpush1.bf16.msra.mxu0 0
        %1903 = vmatprep.subr.bf16.mxu0 0
        %1904 = vmatpush1.bf16.msra.mxu0 0
        %1905 = vmatprep.subr.bf16.mxu0 0
        %1906 = vmatpush1.bf16.msra.mxu0 0
        %1907 = vmatprep.subr.bf16.mxu0 0
        %1908 = vmatpush1.bf16.msra.mxu0 0
        %1909 = vmatprep.mubr.bf16.mxu0 0
        %1910 = vmatmul.mubr.bf16.gmra.mrb[0].mxu0 %v1875
        %v1911 = vpop.f32.mrb[0].mxu0
        %v1912 = vadd.f32 %v1860, %v1911
        %v1913 = vpop.f32.mrb[0].mxu0
        %v1914 = vpop.f32.mrb[0].mxu0
        %v1915 = vpop.f32.mrb[0].mxu0
        %1916 = vdwg.mxu0
        %1918 = vrot.lane.b32.xlu0 %v1912, 120
        %v1919 = vpop.permute.xlu0 %1918
        %1921 = vrot.lane.b32.xlu0 %v1912, 112
        %v1922 = vpop.permute.xlu0 %1921
        %1924 = vrot.lane.b32.xlu0 %v1912, 104
        %v1925 = vpop.permute.xlu0 %1924
        %v1927 = vpack.c.bf16 %v1912, %v1912
        %v1928 = vpack.c.bf16 %v1919, %v1919
        %v1929 = vpack.c.bf16 %v1922, %v1922
        %v1930 = vpack.c.bf16 %v1925, %v1925
        %1932 = vrot.lane.b32.xlu0 %v1927, 96
        %v1933 = vpop.permute.xlu0 %1932
        %v1935 = vsel %vm966, %v1927, 0
        %v1938 = vsel %vm966, %v1933, 0
        %1940 = vmatprep.subr.bf16.mxu0 0
        %1941 = vmatpush1.bf16.xpose.msra.mxu0 %v1938
        %1942 = vmatprep.subr.bf16.mxu0 0
        %1943 = vmatpush1.bf16.xpose.msra.mxu0 0
        %1944 = vmatprep.subr.bf16.mxu0 0
        %1945 = vmatpush1.bf16.xpose.msra.mxu0 0
        %1946 = vmatprep.subr.bf16.mxu0 0
        %1947 = vmatpush1.bf16.xpose.msra.mxu0 0
        %1948 = vmatprep.subr.bf16.mxu0 0
        %1949 = vmatpush1.bf16.xpose.msra.mxu0 0
        %1950 = vmatprep.subr.bf16.mxu0 0
        %1951 = vmatpush1.bf16.xpose.msra.mxu0 0
        %1952 = vmatprep.subr.bf16.mxu0 0
        %1953 = vmatpush1.bf16.xpose.msra.mxu0 0
        %1954 = vmatprep.subr.bf16.mxu0 0
        %1955 = vmatpush1.bf16.xpose.msra.mxu0 0
        %1956 = vmatprep.subr.bf16.mxu0 0
        %1957 = vmatpush1.bf16.xpose.msra.mxu0 0
        %1958 = vmatprep.subr.bf16.mxu0 0
        %1959 = vmatpush1.bf16.xpose.msra.mxu0 0
        %1960 = vmatprep.subr.bf16.mxu0 0
        %1961 = vmatpush1.bf16.xpose.msra.mxu0 0
        %1962 = vmatprep.subr.bf16.mxu0 0
        %1963 = vmatpush1.bf16.xpose.msra.mxu0 0
        %1964 = vmatprep.subr.bf16.mxu0 0
        %1965 = vmatpush1.bf16.xpose.msra.mxu0 0
        %1966 = vmatprep.subr.bf16.mxu0 0
        %1967 = vmatpush1.bf16.xpose.msra.mxu0 0
        %1968 = vmatprep.subr.bf16.mxu0 0
        %1969 = vmatpush1.bf16.xpose.msra.mxu0 0
        %1970 = vmatprep.subr.bf16.mxu0 0
        %1971 = vmatpush1.bf16.xpose.msra.mxu0 0
        %1972 = vmatprep.mubr.bf16.mxu0 0
        %1973 = vmatmul.mubr.bf16.gmra.mrb[0].mxu0 %v1935
        %v1974 = vpop.f32.mrb[0].mxu0
        %v1975 = vadd.f32 0.0, %v1974
        %v1976 = vpop.f32.mrb[0].mxu0
        %v1977 = vpop.f32.mrb[0].mxu0
        %v1978 = vpop.f32.mrb[0].mxu0
        %1979 = vdwg.mxu0
        %1981 = vrot.lane.b32.xlu0 %v1928, 96
        %v1982 = vpop.permute.xlu0 %1981
        %v1984 = vsel %vm966, %v1928, 0
        %v1987 = vsel %vm966, %v1982, 0
        %1989 = vmatprep.subr.bf16.mxu0 0
        %1990 = vmatpush1.bf16.xpose.msra.mxu0 %v1987
        %1991 = vmatprep.subr.bf16.mxu0 0
        %1992 = vmatpush1.bf16.xpose.msra.mxu0 0
        %1993 = vmatprep.subr.bf16.mxu0 0
        %1994 = vmatpush1.bf16.xpose.msra.mxu0 0
        %1995 = vmatprep.subr.bf16.mxu0 0
        %1996 = vmatpush1.bf16.xpose.msra.mxu0 0
        %1997 = vmatprep.subr.bf16.mxu0 0
        %1998 = vmatpush1.bf16.xpose.msra.mxu0 0
        %1999 = vmatprep.subr.bf16.mxu0 0
        %2000 = vmatpush1.bf16.xpose.msra.mxu0 0
        %2001 = vmatprep.subr.bf16.mxu0 0
        %2002 = vmatpush1.bf16.xpose.msra.mxu0 0
        %2003 = vmatprep.subr.bf16.mxu0 0
        %2004 = vmatpush1.bf16.xpose.msra.mxu0 0
        %2005 = vmatprep.subr.bf16.mxu0 0
        %2006 = vmatpush1.bf16.xpose.msra.mxu0 0
        %2007 = vmatprep.subr.bf16.mxu0 0
        %2008 = vmatpush1.bf16.xpose.msra.mxu0 0
        %2009 = vmatprep.subr.bf16.mxu0 0
        %2010 = vmatpush1.bf16.xpose.msra.mxu0 0
        %2011 = vmatprep.subr.bf16.mxu0 0
        %2012 = vmatpush1.bf16.xpose.msra.mxu0 0
        %2013 = vmatprep.subr.bf16.mxu0 0
        %2014 = vmatpush1.bf16.xpose.msra.mxu0 0
        %2015 = vmatprep.subr.bf16.mxu0 0
        %2016 = vmatpush1.bf16.xpose.msra.mxu0 0
        %2017 = vmatprep.subr.bf16.mxu0 0
        %2018 = vmatpush1.bf16.xpose.msra.mxu0 0
        %2019 = vmatprep.subr.bf16.mxu0 0
        %2020 = vmatpush1.bf16.xpose.msra.mxu0 0
        %2021 = vmatprep.mubr.bf16.mxu0 0
        %2022 = vmatmul.mubr.bf16.gmra.mrb[0].mxu0 %v1984
        %v2023 = vpop.f32.mrb[0].mxu0
        %v2024 = vadd.f32 0.0, %v2023
        %v2025 = vpop.f32.mrb[0].mxu0
        %v2026 = vpop.f32.mrb[0].mxu0
        %v2027 = vpop.f32.mrb[0].mxu0
        %2028 = vdwg.mxu0
        %2030 = vrot.lane.b32.xlu0 %v1929, 96
        %v2031 = vpop.permute.xlu0 %2030
        %v2033 = vsel %vm966, %v1929, 0
        %v2036 = vsel %vm966, %v2031, 0
        %2038 = vmatprep.subr.bf16.mxu0 0
        %2039 = vmatpush1.bf16.xpose.msra.mxu0 %v2036
        %2040 = vmatprep.subr.bf16.mxu0 0
        %2041 = vmatpush1.bf16.xpose.msra.mxu0 0
        %2042 = vmatprep.subr.bf16.mxu0 0
        %2043 = vmatpush1.bf16.xpose.msra.mxu0 0
        %2044 = vmatprep.subr.bf16.mxu0 0
        %2045 = vmatpush1.bf16.xpose.msra.mxu0 0
        %2046 = vmatprep.subr.bf16.mxu0 0
        %2047 = vmatpush1.bf16.xpose.msra.mxu0 0
        %2048 = vmatprep.subr.bf16.mxu0 0
        %2049 = vmatpush1.bf16.xpose.msra.mxu0 0
        %2050 = vmatprep.subr.bf16.mxu0 0
        %2051 = vmatpush1.bf16.xpose.msra.mxu0 0
        %2052 = vmatprep.subr.bf16.mxu0 0
        %2053 = vmatpush1.bf16.xpose.msra.mxu0 0
        %2054 = vmatprep.subr.bf16.mxu0 0
        %2055 = vmatpush1.bf16.xpose.msra.mxu0 0
        %2056 = vmatprep.subr.bf16.mxu0 0
        %2057 = vmatpush1.bf16.xpose.msra.mxu0 0
        %2058 = vmatprep.subr.bf16.mxu0 0
        %2059 = vmatpush1.bf16.xpose.msra.mxu0 0
        %2060 = vmatprep.subr.bf16.mxu0 0
        %2061 = vmatpush1.bf16.xpose.msra.mxu0 0
        %2062 = vmatprep.subr.bf16.mxu0 0
        %2063 = vmatpush1.bf16.xpose.msra.mxu0 0
        %2064 = vmatprep.subr.bf16.mxu0 0
        %2065 = vmatpush1.bf16.xpose.msra.mxu0 0
        %2066 = vmatprep.subr.bf16.mxu0 0
        %2067 = vmatpush1.bf16.xpose.msra.mxu0 0
        %2068 = vmatprep.subr.bf16.mxu0 0
        %2069 = vmatpush1.bf16.xpose.msra.mxu0 0
        %2070 = vmatprep.mubr.bf16.mxu0 0
        %2071 = vmatmul.mubr.bf16.gmra.mrb[0].mxu0 %v2033
        %v2072 = vpop.f32.mrb[0].mxu0
        %v2073 = vadd.f32 0.0, %v2072
        %v2074 = vpop.f32.mrb[0].mxu0
        %v2075 = vpop.f32.mrb[0].mxu0
        %v2076 = vpop.f32.mrb[0].mxu0
        %2077 = vdwg.mxu0
        %2079 = vrot.lane.b32.xlu0 %v1930, 96
        %v2080 = vpop.permute.xlu0 %2079
        %v2082 = vsel %vm966, %v1930, 0
        %v2085 = vsel %vm966, %v2080, 0
        %2087 = vmatprep.subr.bf16.mxu0 0
        %2088 = vmatpush1.bf16.xpose.msra.mxu0 %v2085
        %2089 = vmatprep.subr.bf16.mxu0 0
        %2090 = vmatpush1.bf16.xpose.msra.mxu0 0
        %2091 = vmatprep.subr.bf16.mxu0 0
        %2092 = vmatpush1.bf16.xpose.msra.mxu0 0
        %2093 = vmatprep.subr.bf16.mxu0 0
        %2094 = vmatpush1.bf16.xpose.msra.mxu0 0
        %2095 = vmatprep.subr.bf16.mxu0 0
        %2096 = vmatpush1.bf16.xpose.msra.mxu0 0
        %2097 = vmatprep.subr.bf16.mxu0 0
        %2098 = vmatpush1.bf16.xpose.msra.mxu0 0
        %2099 = vmatprep.subr.bf16.mxu0 0
        %2100 = vmatpush1.bf16.xpose.msra.mxu0 0
        %2101 = vmatprep.subr.bf16.mxu0 0
        %2102 = vmatpush1.bf16.xpose.msra.mxu0 0
        %2103 = vmatprep.subr.bf16.mxu0 0
        %2104 = vmatpush1.bf16.xpose.msra.mxu0 0
        %2105 = vmatprep.subr.bf16.mxu0 0
        %2106 = vmatpush1.bf16.xpose.msra.mxu0 0
        %2107 = vmatprep.subr.bf16.mxu0 0
        %2108 = vmatpush1.bf16.xpose.msra.mxu0 0
        %2109 = vmatprep.subr.bf16.mxu0 0
        %2110 = vmatpush1.bf16.xpose.msra.mxu0 0
        %2111 = vmatprep.subr.bf16.mxu0 0
        %2112 = vmatpush1.bf16.xpose.msra.mxu0 0
        %2113 = vmatprep.subr.bf16.mxu0 0
        %2114 = vmatpush1.bf16.xpose.msra.mxu0 0
        %2115 = vmatprep.subr.bf16.mxu0 0
        %2116 = vmatpush1.bf16.xpose.msra.mxu0 0
        %2117 = vmatprep.subr.bf16.mxu0 0
        %2118 = vmatpush1.bf16.xpose.msra.mxu0 0
        %2119 = vmatprep.mubr.bf16.mxu0 0
        %2120 = vmatmul.mubr.bf16.gmra.mrb[0].mxu0 %v2082
        %v2121 = vpop.f32.mrb[0].mxu0
        %v2122 = vadd.f32 0.0, %v2121
        %v2123 = vpop.f32.mrb[0].mxu0
        %v2124 = vpop.f32.mrb[0].mxu0
        %v2125 = vpop.f32.mrb[0].mxu0
        %2126 = vdwg.mxu0
        %v2127 = vmul.f32 %v1975, 0.35355338
        %v2128 = vmul.f32 %v2024, 0.35355338
        %v2129 = vmul.f32 %v2073, 0.35355338
        %v2130 = vmul.f32 %v2122, 0.35355338
        %v2131 = vadd.f32 %v2127, %v880
        %v2132 = vadd.f32 %v2128, %v880
        %v2133 = vadd.f32 %v2129, %v880
        %v2134 = vadd.f32 %v2130, %v880
        %v2135 = vsel %vm966, %v2131, -inf
        %2136 = vmax.xlane.f32.xlu0 %v2135
        %v2137 = vpop.xlane.xlu0 %2136
        %v2138 = vsel %vm966, %v2132, -inf
        %2139 = vmax.xlane.f32.xlu0 %v2138
        %v2140 = vpop.xlane.xlu0 %2139
        %v2141 = vsel %vm966, %v2133, -inf
        %2142 = vmax.xlane.f32.xlu0 %v2141
        %v2143 = vpop.xlane.xlu0 %2142
        %v2144 = vsel %vm966, %v2134, -inf
        %2145 = vmax.xlane.f32.xlu0 %v2144
        %v2146 = vpop.xlane.xlu0 %2145
        %v2147 = vsub.f32 %v2131, %v2137
        %v2148 = vsub.f32 %v2132, %v2140
        %v2149 = vsub.f32 %v2133, %v2143
        %v2150 = vsub.f32 %v2134, %v2146
        %v2151 = vmul.f32 %v2147, 1.442695
        %v2152 = vpow.pop %v2151
        %v2153 = vmul.f32 %v2148, 1.442695
        %v2154 = vpow.pop %v2153
        %v2155 = vmul.f32 %v2149, 1.442695
        %v2156 = vpow.pop %v2155
        %v2157 = vmul.f32 %v2150, 1.442695
        %v2158 = vpow.pop %v2157
        %v2159 = vsel %vm966, %v2152, 0.0
        %2160 = vadd.xlane.f32.xlu0 %v2159
        %v2161 = vpop.xlane.xlu0 %2160
        %v2162 = vsel %vm966, %v2154, 0.0
        %2163 = vadd.xlane.f32.xlu0 %v2162
        %v2164 = vpop.xlane.xlu0 %2163
        %v2165 = vsel %vm966, %v2156, 0.0
        %2166 = vadd.xlane.f32.xlu0 %v2165
        %v2167 = vpop.xlane.xlu0 %2166
        %v2168 = vsel %vm966, %v2158, 0.0
        %2169 = vadd.xlane.f32.xlu0 %v2168
        %v2170 = vpop.xlane.xlu0 %2169
        %v2171 = vrcp.pop %v2161
        %v2172 = vmul.f32 %v2152, %v2171
        %v2173 = vrcp.pop %v2164
        %v2174 = vmul.f32 %v2154, %v2173
        %v2175 = vrcp.pop %v2167
        %v2176 = vmul.f32 %v2156, %v2175
        %v2177 = vrcp.pop %v2170
        %v2178 = vmul.f32 %v2158, %v2177
        %v2179 = vpack.c.bf16 %v2172, %v2172
        %v2180 = vpack.c.bf16 %v2174, %v2174
        %v2181 = vpack.c.bf16 %v2176, %v2176
        %v2182 = vpack.c.bf16 %v2178, %v2178
        %2183 = vrot.lane.b32.xlu0 %v1927, 64
        %v2184 = vpop.permute.xlu0 %2183
        %v2186 = vsel %vm966, %v2179, 0
        %v2189 = vsel %vm1221, %v2184, 0
        %2191 = vmatprep.subr.bf16.mxu0 0
        %2192 = vmatpush1.bf16.msra.mxu0 %v2189
        %2193 = vmatprep.subr.bf16.mxu0 0
        %2194 = vmatpush1.bf16.msra.mxu0 0
        %2195 = vmatprep.subr.bf16.mxu0 0
        %2196 = vmatpush1.bf16.msra.mxu0 0
        %2197 = vmatprep.subr.bf16.mxu0 0
        %2198 = vmatpush1.bf16.msra.mxu0 0
        %2199 = vmatprep.subr.bf16.mxu0 0
        %2200 = vmatpush1.bf16.msra.mxu0 0
        %2201 = vmatprep.subr.bf16.mxu0 0
        %2202 = vmatpush1.bf16.msra.mxu0 0
        %2203 = vmatprep.subr.bf16.mxu0 0
        %2204 = vmatpush1.bf16.msra.mxu0 0
        %2205 = vmatprep.subr.bf16.mxu0 0
        %2206 = vmatpush1.bf16.msra.mxu0 0
        %2207 = vmatprep.subr.bf16.mxu0 0
        %2208 = vmatpush1.bf16.msra.mxu0 0
        %2209 = vmatprep.subr.bf16.mxu0 0
        %2210 = vmatpush1.bf16.msra.mxu0 0
        %2211 = vmatprep.subr.bf16.mxu0 0
        %2212 = vmatpush1.bf16.msra.mxu0 0
        %2213 = vmatprep.subr.bf16.mxu0 0
        %2214 = vmatpush1.bf16.msra.mxu0 0
        %2215 = vmatprep.subr.bf16.mxu0 0
        %2216 = vmatpush1.bf16.msra.mxu0 0
        %2217 = vmatprep.subr.bf16.mxu0 0
        %2218 = vmatpush1.bf16.msra.mxu0 0
        %2219 = vmatprep.subr.bf16.mxu0 0
        %2220 = vmatpush1.bf16.msra.mxu0 0
        %2221 = vmatprep.subr.bf16.mxu0 0
        %2222 = vmatpush1.bf16.msra.mxu0 0
        %2223 = vmatprep.mubr.bf16.mxu0 0
        %2224 = vmatmul.mubr.bf16.gmra.mrb[0].mxu0 %v2186
        %v2225 = vpop.f32.mrb[0].mxu0
        %v2226 = vadd.f32 0.0, %v2225
        %v2227 = vpop.f32.mrb[0].mxu0
        %v2228 = vpop.f32.mrb[0].mxu0
        %v2229 = vpop.f32.mrb[0].mxu0
        %2230 = vdwg.mxu0
        %2231 = vrot.lane.b32.xlu0 %v1928, 64
        %v2232 = vpop.permute.xlu0 %2231
        %v2234 = vsel %vm966, %v2180, 0
        %v2237 = vsel %vm1221, %v2232, 0
        %2239 = vmatprep.subr.bf16.mxu0 0
        %2240 = vmatpush1.bf16.msra.mxu0 %v2237
        %2241 = vmatprep.subr.bf16.mxu0 0
        %2242 = vmatpush1.bf16.msra.mxu0 0
        %2243 = vmatprep.subr.bf16.mxu0 0
        %2244 = vmatpush1.bf16.msra.mxu0 0
        %2245 = vmatprep.subr.bf16.mxu0 0
        %2246 = vmatpush1.bf16.msra.mxu0 0
        %2247 = vmatprep.subr.bf16.mxu0 0
        %2248 = vmatpush1.bf16.msra.mxu0 0
        %2249 = vmatprep.subr.bf16.mxu0 0
        %2250 = vmatpush1.bf16.msra.mxu0 0
        %2251 = vmatprep.subr.bf16.mxu0 0
        %2252 = vmatpush1.bf16.msra.mxu0 0
        %2253 = vmatprep.subr.bf16.mxu0 0
        %2254 = vmatpush1.bf16.msra.mxu0 0
        %2255 = vmatprep.subr.bf16.mxu0 0
        %2256 = vmatpush1.bf16.msra.mxu0 0
        %2257 = vmatprep.subr.bf16.mxu0 0
        %2258 = vmatpush1.bf16.msra.mxu0 0
        %2259 = vmatprep.subr.bf16.mxu0 0
        %2260 = vmatpush1.bf16.msra.mxu0 0
        %2261 = vmatprep.subr.bf16.mxu0 0
        %2262 = vmatpush1.bf16.msra.mxu0 0
        %2263 = vmatprep.subr.bf16.mxu0 0
        %2264 = vmatpush1.bf16.msra.mxu0 0
        %2265 = vmatprep.subr.bf16.mxu0 0
        %2266 = vmatpush1.bf16.msra.mxu0 0
        %2267 = vmatprep.subr.bf16.mxu0 0
        %2268 = vmatpush1.bf16.msra.mxu0 0
        %2269 = vmatprep.subr.bf16.mxu0 0
        %2270 = vmatpush1.bf16.msra.mxu0 0
        %2271 = vmatprep.mubr.bf16.mxu0 0
        %2272 = vmatmul.mubr.bf16.gmra.mrb[0].mxu0 %v2234
        %v2273 = vpop.f32.mrb[0].mxu0
        %v2274 = vadd.f32 0.0, %v2273
        %v2275 = vpop.f32.mrb[0].mxu0
        %v2276 = vpop.f32.mrb[0].mxu0
        %v2277 = vpop.f32.mrb[0].mxu0
        %2278 = vdwg.mxu0
        %2279 = vrot.lane.b32.xlu0 %v1929, 64
        %v2280 = vpop.permute.xlu0 %2279
        %v2282 = vsel %vm966, %v2181, 0
        %v2285 = vsel %vm1221, %v2280, 0
        %2287 = vmatprep.subr.bf16.mxu0 0
        %2288 = vmatpush1.bf16.msra.mxu0 %v2285
        %2289 = vmatprep.subr.bf16.mxu0 0
        %2290 = vmatpush1.bf16.msra.mxu0 0
        %2291 = vmatprep.subr.bf16.mxu0 0
        %2292 = vmatpush1.bf16.msra.mxu0 0
        %2293 = vmatprep.subr.bf16.mxu0 0
        %2294 = vmatpush1.bf16.msra.mxu0 0
        %2295 = vmatprep.subr.bf16.mxu0 0
        %2296 = vmatpush1.bf16.msra.mxu0 0
        %2297 = vmatprep.subr.bf16.mxu0 0
        %2298 = vmatpush1.bf16.msra.mxu0 0
        %2299 = vmatprep.subr.bf16.mxu0 0
        %2300 = vmatpush1.bf16.msra.mxu0 0
        %2301 = vmatprep.subr.bf16.mxu0 0
        %2302 = vmatpush1.bf16.msra.mxu0 0
        %2303 = vmatprep.subr.bf16.mxu0 0
        %2304 = vmatpush1.bf16.msra.mxu0 0
        %2305 = vmatprep.subr.bf16.mxu0 0
        %2306 = vmatpush1.bf16.msra.mxu0 0
        %2307 = vmatprep.subr.bf16.mxu0 0
        %2308 = vmatpush1.bf16.msra.mxu0 0
        %2309 = vmatprep.subr.bf16.mxu0 0
        %2310 = vmatpush1.bf16.msra.mxu0 0
        %2311 = vmatprep.subr.bf16.mxu0 0
        %2312 = vmatpush1.bf16.msra.mxu0 0
        %2313 = vmatprep.subr.bf16.mxu0 0
        %2314 = vmatpush1.bf16.msra.mxu0 0
        %2315 = vmatprep.subr.bf16.mxu0 0
        %2316 = vmatpush1.bf16.msra.mxu0 0
        %2317 = vmatprep.subr.bf16.mxu0 0
        %2318 = vmatpush1.bf16.msra.mxu0 0
        %2319 = vmatprep.mubr.bf16.mxu0 0
        %2320 = vmatmul.mubr.bf16.gmra.mrb[0].mxu0 %v2282
        %v2321 = vpop.f32.mrb[0].mxu0
        %v2322 = vadd.f32 0.0, %v2321
        %v2323 = vpop.f32.mrb[0].mxu0
        %v2324 = vpop.f32.mrb[0].mxu0
        %v2325 = vpop.f32.mrb[0].mxu0
        %2326 = vdwg.mxu0
        %2327 = vrot.lane.b32.xlu0 %v1930, 64
        %v2328 = vpop.permute.xlu0 %2327
        %v2330 = vsel %vm966, %v2182, 0
        %v2333 = vsel %vm1221, %v2328, 0
        %2335 = vmatprep.subr.bf16.mxu0 0
        %2336 = vmatpush1.bf16.msra.mxu0 %v2333
        %2337 = vmatprep.subr.bf16.mxu0 0
        %2338 = vmatpush1.bf16.msra.mxu0 0
        %2339 = vmatprep.subr.bf16.mxu0 0
        %2340 = vmatpush1.bf16.msra.mxu0 0
        %2341 = vmatprep.subr.bf16.mxu0 0
        %2342 = vmatpush1.bf16.msra.mxu0 0
        %2343 = vmatprep.subr.bf16.mxu0 0
        %2344 = vmatpush1.bf16.msra.mxu0 0
        %2345 = vmatprep.subr.bf16.mxu0 0
        %2346 = vmatpush1.bf16.msra.mxu0 0
        %2347 = vmatprep.subr.bf16.mxu0 0
        %2348 = vmatpush1.bf16.msra.mxu0 0
        %2349 = vmatprep.subr.bf16.mxu0 0
        %2350 = vmatpush1.bf16.msra.mxu0 0
        %2351 = vmatprep.subr.bf16.mxu0 0
        %2352 = vmatpush1.bf16.msra.mxu0 0
        %2353 = vmatprep.subr.bf16.mxu0 0
        %2354 = vmatpush1.bf16.msra.mxu0 0
        %2355 = vmatprep.subr.bf16.mxu0 0
        %2356 = vmatpush1.bf16.msra.mxu0 0
        %2357 = vmatprep.subr.bf16.mxu0 0
        %2358 = vmatpush1.bf16.msra.mxu0 0
        %2359 = vmatprep.subr.bf16.mxu0 0
        %2360 = vmatpush1.bf16.msra.mxu0 0
        %2361 = vmatprep.subr.bf16.mxu0 0
        %2362 = vmatpush1.bf16.msra.mxu0 0
        %2363 = vmatprep.subr.bf16.mxu0 0
        %2364 = vmatpush1.bf16.msra.mxu0 0
        %2365 = vmatprep.subr.bf16.mxu0 0
        %2366 = vmatpush1.bf16.msra.mxu0 0
        %2367 = vmatprep.mubr.bf16.mxu0 0
        %2368 = vmatmul.mubr.bf16.gmra.mrb[0].mxu0 %v2330
        %v2369 = vpop.f32.mrb[0].mxu0
        %v2370 = vadd.f32 0.0, %v2369
        %v2371 = vpop.f32.mrb[0].mxu0
        %v2372 = vpop.f32.mrb[0].mxu0
        %v2373 = vpop.f32.mrb[0].mxu0
        %2374 = vdwg.mxu0
        %v2375 = vpack.c.bf16 %v2226, %v2226
        %v2376 = vpack.c.bf16 %v2274, %v2274
        %v2377 = vpack.c.bf16 %v2322, %v2322
        %v2378 = vpack.c.bf16 %v2370, %v2370
        %s2379 = scalar_lea.vmem %s8, 16
        %v2380 = vld [vmem:[%s2379] sm:$0xf]
        %v2381 = vld [vmem:[%s2379 + $0x4] sm:$0xf]
        %v2382 = vld [vmem:[%s2379 + $0x8] sm:$0xf]
        %v2383 = vld [vmem:[%s2379 + $0xc] sm:$0xf]
        %v2385 = vsel %vm966, %v2375, 0
        %v2388 = vsel %vm1221, %v2380, 0
        %2390 = vmatprep.subr.bf16.mxu0 0
        %2391 = vmatpush1.bf16.msra.mxu0 %v2388
        %2392 = vmatprep.subr.bf16.mxu0 0
        %2393 = vmatpush1.bf16.msra.mxu0 0
        %2394 = vmatprep.subr.bf16.mxu0 0
        %2395 = vmatpush1.bf16.msra.mxu0 0
        %2396 = vmatprep.subr.bf16.mxu0 0
        %2397 = vmatpush1.bf16.msra.mxu0 0
        %2398 = vmatprep.subr.bf16.mxu0 0
        %2399 = vmatpush1.bf16.msra.mxu0 0
        %2400 = vmatprep.subr.bf16.mxu0 0
        %2401 = vmatpush1.bf16.msra.mxu0 0
        %2402 = vmatprep.subr.bf16.mxu0 0
        %2403 = vmatpush1.bf16.msra.mxu0 0
        %2404 = vmatprep.subr.bf16.mxu0 0
        %2405 = vmatpush1.bf16.msra.mxu0 0
        %2406 = vmatprep.subr.bf16.mxu0 0
        %2407 = vmatpush1.bf16.msra.mxu0 0
        %2408 = vmatprep.subr.bf16.mxu0 0
        %2409 = vmatpush1.bf16.msra.mxu0 0
        %2410 = vmatprep.subr.bf16.mxu0 0
        %2411 = vmatpush1.bf16.msra.mxu0 0
        %2412 = vmatprep.subr.bf16.mxu0 0
        %2413 = vmatpush1.bf16.msra.mxu0 0
        %2414 = vmatprep.subr.bf16.mxu0 0
        %2415 = vmatpush1.bf16.msra.mxu0 0
        %2416 = vmatprep.subr.bf16.mxu0 0
        %2417 = vmatpush1.bf16.msra.mxu0 0
        %2418 = vmatprep.subr.bf16.mxu0 0
        %2419 = vmatpush1.bf16.msra.mxu0 0
        %2420 = vmatprep.subr.bf16.mxu0 0
        %2421 = vmatpush1.bf16.msra.mxu0 0
        %2422 = vmatprep.mubr.bf16.mxu0 0
        %2423 = vmatmul.mubr.bf16.gmra.mrb[0].mxu0 %v2385
        %v2424 = vpop.f32.mrb[0].mxu0
        %v2425 = vadd.f32 0.0, %v2424
        %v2426 = vpop.f32.mrb[0].mxu0
        %v2427 = vpop.f32.mrb[0].mxu0
        %v2428 = vpop.f32.mrb[0].mxu0
        %2429 = vdwg.mxu0
        %v2431 = vsel %vm966, %v2376, 0
        %v2434 = vsel %vm1221, %v2381, 0
        %2436 = vmatprep.subr.bf16.mxu0 0
        %2437 = vmatpush1.bf16.msra.mxu0 %v2434
        %2438 = vmatprep.subr.bf16.mxu0 0
        %2439 = vmatpush1.bf16.msra.mxu0 0
        %2440 = vmatprep.subr.bf16.mxu0 0
        %2441 = vmatpush1.bf16.msra.mxu0 0
        %2442 = vmatprep.subr.bf16.mxu0 0
        %2443 = vmatpush1.bf16.msra.mxu0 0
        %2444 = vmatprep.subr.bf16.mxu0 0
        %2445 = vmatpush1.bf16.msra.mxu0 0
        %2446 = vmatprep.subr.bf16.mxu0 0
        %2447 = vmatpush1.bf16.msra.mxu0 0
        %2448 = vmatprep.subr.bf16.mxu0 0
        %2449 = vmatpush1.bf16.msra.mxu0 0
        %2450 = vmatprep.subr.bf16.mxu0 0
        %2451 = vmatpush1.bf16.msra.mxu0 0
        %2452 = vmatprep.subr.bf16.mxu0 0
        %2453 = vmatpush1.bf16.msra.mxu0 0
        %2454 = vmatprep.subr.bf16.mxu0 0
        %2455 = vmatpush1.bf16.msra.mxu0 0
        %2456 = vmatprep.subr.bf16.mxu0 0
        %2457 = vmatpush1.bf16.msra.mxu0 0
        %2458 = vmatprep.subr.bf16.mxu0 0
        %2459 = vmatpush1.bf16.msra.mxu0 0
        %2460 = vmatprep.subr.bf16.mxu0 0
        %2461 = vmatpush1.bf16.msra.mxu0 0
        %2462 = vmatprep.subr.bf16.mxu0 0
        %2463 = vmatpush1.bf16.msra.mxu0 0
        %2464 = vmatprep.subr.bf16.mxu0 0
        %2465 = vmatpush1.bf16.msra.mxu0 0
        %2466 = vmatprep.subr.bf16.mxu0 0
        %2467 = vmatpush1.bf16.msra.mxu0 0
        %2468 = vmatprep.mubr.bf16.mxu0 0
        %2469 = vmatmul.mubr.bf16.gmra.mrb[0].mxu0 %v2431
        %v2470 = vpop.f32.mrb[0].mxu0
        %v2471 = vadd.f32 0.0, %v2470
        %v2472 = vpop.f32.mrb[0].mxu0
        %v2473 = vpop.f32.mrb[0].mxu0
        %v2474 = vpop.f32.mrb[0].mxu0
        %2475 = vdwg.mxu0
        %v2477 = vsel %vm966, %v2377, 0
        %v2480 = vsel %vm1221, %v2382, 0
        %2482 = vmatprep.subr.bf16.mxu0 0
        %2483 = vmatpush1.bf16.msra.mxu0 %v2480
        %2484 = vmatprep.subr.bf16.mxu0 0
        %2485 = vmatpush1.bf16.msra.mxu0 0
        %2486 = vmatprep.subr.bf16.mxu0 0
        %2487 = vmatpush1.bf16.msra.mxu0 0
        %2488 = vmatprep.subr.bf16.mxu0 0
        %2489 = vmatpush1.bf16.msra.mxu0 0
        %2490 = vmatprep.subr.bf16.mxu0 0
        %2491 = vmatpush1.bf16.msra.mxu0 0
        %2492 = vmatprep.subr.bf16.mxu0 0
        %2493 = vmatpush1.bf16.msra.mxu0 0
        %2494 = vmatprep.subr.bf16.mxu0 0
        %2495 = vmatpush1.bf16.msra.mxu0 0
        %2496 = vmatprep.subr.bf16.mxu0 0
        %2497 = vmatpush1.bf16.msra.mxu0 0
        %2498 = vmatprep.subr.bf16.mxu0 0
        %2499 = vmatpush1.bf16.msra.mxu0 0
        %2500 = vmatprep.subr.bf16.mxu0 0
        %2501 = vmatpush1.bf16.msra.mxu0 0
        %2502 = vmatprep.subr.bf16.mxu0 0
        %2503 = vmatpush1.bf16.msra.mxu0 0
        %2504 = vmatprep.subr.bf16.mxu0 0
        %2505 = vmatpush1.bf16.msra.mxu0 0
        %2506 = vmatprep.subr.bf16.mxu0 0
        %2507 = vmatpush1.bf16.msra.mxu0 0
        %2508 = vmatprep.subr.bf16.mxu0 0
        %2509 = vmatpush1.bf16.msra.mxu0 0
        %2510 = vmatprep.subr.bf16.mxu0 0
        %2511 = vmatpush1.bf16.msra.mxu0 0
        %2512 = vmatprep.subr.bf16.mxu0 0
        %2513 = vmatpush1.bf16.msra.mxu0 0
        %2514 = vmatprep.mubr.bf16.mxu0 0
        %2515 = vmatmul.mubr.bf16.gmra.mrb[0].mxu0 %v2477
        %v2516 = vpop.f32.mrb[0].mxu0
        %v2517 = vadd.f32 0.0, %v2516
        %v2518 = vpop.f32.mrb[0].mxu0
        %v2519 = vpop.f32.mrb[0].mxu0
        %v2520 = vpop.f32.mrb[0].mxu0
        %2521 = vdwg.mxu0
        %v2523 = vsel %vm966, %v2378, 0
        %v2526 = vsel %vm1221, %v2383, 0
        %2528 = vmatprep.subr.bf16.mxu0 0
        %2529 = vmatpush1.bf16.msra.mxu0 %v2526
        %2530 = vmatprep.subr.bf16.mxu0 0
        %2531 = vmatpush1.bf16.msra.mxu0 0
        %2532 = vmatprep.subr.bf16.mxu0 0
        %2533 = vmatpush1.bf16.msra.mxu0 0
        %2534 = vmatprep.subr.bf16.mxu0 0
        %2535 = vmatpush1.bf16.msra.mxu0 0
        %2536 = vmatprep.subr.bf16.mxu0 0
        %2537 = vmatpush1.bf16.msra.mxu0 0
        %2538 = vmatprep.subr.bf16.mxu0 0
        %2539 = vmatpush1.bf16.msra.mxu0 0
        %2540 = vmatprep.subr.bf16.mxu0 0
        %2541 = vmatpush1.bf16.msra.mxu0 0
        %2542 = vmatprep.subr.bf16.mxu0 0
        %2543 = vmatpush1.bf16.msra.mxu0 0
        %2544 = vmatprep.subr.bf16.mxu0 0
        %2545 = vmatpush1.bf16.msra.mxu0 0
        %2546 = vmatprep.subr.bf16.mxu0 0
        %2547 = vmatpush1.bf16.msra.mxu0 0
        %2548 = vmatprep.subr.bf16.mxu0 0
        %2549 = vmatpush1.bf16.msra.mxu0 0
        %2550 = vmatprep.subr.bf16.mxu0 0
        %2551 = vmatpush1.bf16.msra.mxu0 0
        %2552 = vmatprep.subr.bf16.mxu0 0
        %2553 = vmatpush1.bf16.msra.mxu0 0
        %2554 = vmatprep.subr.bf16.mxu0 0
        %2555 = vmatpush1.bf16.msra.mxu0 0
        %2556 = vmatprep.subr.bf16.mxu0 0
        %2557 = vmatpush1.bf16.msra.mxu0 0
        %2558 = vmatprep.subr.bf16.mxu0 0
        %2559 = vmatpush1.bf16.msra.mxu0 0
        %2560 = vmatprep.mubr.bf16.mxu0 0
        %2561 = vmatmul.mubr.bf16.gmra.mrb[0].mxu0 %v2523
        %v2562 = vpop.f32.mrb[0].mxu0
        %v2563 = vadd.f32 0.0, %v2562
        %v2564 = vpop.f32.mrb[0].mxu0
        %v2565 = vpop.f32.mrb[0].mxu0
        %v2566 = vpop.f32.mrb[0].mxu0
        %2567 = vdwg.mxu0
        %v2568 = vsel %vm839, %v2425, 0.0
        %v2569 = vsel %vm839, %v2471, 0.0
        %v2570 = vadd.f32 %v2568, %v2569
        %v2571 = vsel %vm839, %v2517, 0.0
        %v2572 = vadd.f32 %v2570, %v2571
        %v2573 = vsel %vm839, %v2563, 0.0
        %v2574 = vadd.f32 %v2572, %v2573
        %s2575 = scalar_lea.vmem %s9, 1
        %v2576 = vld [vmem:[%s2575] sm:$0x1]
        %v2578 = vlaneseq
        %v2579 = vshrl.u32 %v2578, 7
        %v2580 = vsub.s32 0, %v2579
        %v2581 = vrot.slane %v2576, %v2580
        %v2583 = vadd.f32 %v2574, %v2581
        %v2584 = vadd.f32 %v2583, %v1846
        %s2585 = scalar_lea.vmem [#allocation13], 1
        %v2586 = vld [vmem:[%s2585] sm:$0x1]
        %s2587 = scalar_lea.vmem [#allocation14], 1
        %v2588 = vld [vmem:[%s2587] sm:$0x1]
        %v2589 = vsel %vm839, %v2584, 0.0
        %2590 = vadd.xlane.f32.xlu0 %v2589
        %v2591 = vpop.xlane.xlu0 %2590
        %v2592 = vmul.f32 %v2591, %v843
        %v2593 = vsub.f32 %v2584, %v2592
        %v2594 = vmul.f32 %v2593, %v2593
        %v2595 = vsel %vm839, %v2594, 0.0
        %2596 = vadd.xlane.f32.xlu0 %v2595
        %v2597 = vpop.xlane.xlu0 %2596
        %v2598 = vmul.f32 %v2597, %v843
        %v2599 = vadd.f32 %v2598, 1e-12
        %v2600 = vrsqrt.pop %v2599
        %v2601 = vmul.f32 %v2599, %v2600
        %vm2602 = vcmp.eq.f32.partialorder %v2599, inf
        %v2603 = vsel %vm2602, %v2599, %v2601
        %vm2604 = vcmp.eq.f32.partialorder %v2599, 0.0
        %v2605 = vand.u32 %v2599, 2147483648
        %v2606 = vsel %vm2604, %v2605, %v2603
        %v2607 = vrcp.pop %v2606
        %v2608 = vmul.f32 %v2593, %v2607
        %v2610 = vlaneseq
        %v2611 = vshrl.u32 %v2610, 7
        %v2612 = vsub.s32 0, %v2611
        %v2613 = vrot.slane %v2586, %v2612
        %v2615 = vmul.f32 %v2613, %v2608
        %v2617 = vlaneseq
        %v2618 = vshrl.u32 %v2617, 7
        %v2619 = vsub.s32 0, %v2618
        %v2620 = vrot.slane %v2588, %v2619
        %v2622 = vadd.f32 %v2615, %v2620
        %v2623 = vpack.c.bf16 %v2622, %v2622
        %s2624 = scalar_lea.vmem %s12, 16
        %v2625 = vld [vmem:[%s2624] sm:$0xf]
        %v2626 = vld [vmem:[%s2624 + $0x4] sm:$0xf]
        %v2627 = vld [vmem:[%s2624 + $0x8] sm:$0xf]
        %v2628 = vld [vmem:[%s2624 + $0xc] sm:$0xf]
        %s2629 = scalar_lea.vmem [#allocation16], 1
        %v2630 = vld [vmem:[%s2629] sm:$0x1]
        %v2632 = vlaneseq
        %v2633 = vshrl.u32 %v2632, 7
        %v2634 = vsub.s32 0, %v2633
        %v2635 = vrot.slane %v2630, %v2634
        %v2641 = vunpack.c.l.b16 %v2625
        %v2642 = vunpack.c.l.b16 %v2626
        %v2643 = vunpack.c.l.b16 %v2627
        %v2644 = vunpack.c.l.b16 %v2628
        %v2645 = vpack.c.b16 %v2642, %v2641
        %v2646 = vpack.c.b16 %v2644, %v2643
        %v2650 = vsel %vm839, %v2623, 0
        %2652 = vmatprep.subr.bf16.mxu0 0
        %2653 = vmatpush1.bf16.msra.mxu0 %v2645
        %2654 = vmatprep.subr.bf16.mxu0 0
        %2655 = vmatpush1.bf16.msra.mxu0 %v2646
        %2656 = vmatprep.subr.bf16.mxu0 0
        %2657 = vmatpush1.bf16.msra.mxu0 0
        %2658 = vmatprep.subr.bf16.mxu0 0
        %2659 = vmatpush1.bf16.msra.mxu0 0
        %2660 = vmatprep.subr.bf16.mxu0 0
        %2661 = vmatpush1.bf16.msra.mxu0 0
        %2662 = vmatprep.subr.bf16.mxu0 0
        %2663 = vmatpush1.bf16.msra.mxu0 0
        %2664 = vmatprep.subr.bf16.mxu0 0
        %2665 = vmatpush1.bf16.msra.mxu0 0
        %2666 = vmatprep.subr.bf16.mxu0 0
        %2667 = vmatpush1.bf16.msra.mxu0 0
        %2668 = vmatprep.subr.bf16.mxu0 0
        %2669 = vmatpush1.bf16.msra.mxu0 0
        %2670 = vmatprep.subr.bf16.mxu0 0
        %2671 = vmatpush1.bf16.msra.mxu0 0
        %2672 = vmatprep.subr.bf16.mxu0 0
        %2673 = vmatpush1.bf16.msra.mxu0 0
        %2674 = vmatprep.subr.bf16.mxu0 0
        %2675 = vmatpush1.bf16.msra.mxu0 0
        %2676 = vmatprep.subr.bf16.mxu0 0
        %2677 = vmatpush1.bf16.msra.mxu0 0
        %2678 = vmatprep.subr.bf16.mxu0 0
        %2679 = vmatpush1.bf16.msra.mxu0 0
        %2680 = vmatprep.subr.bf16.mxu0 0
        %2681 = vmatpush1.bf16.msra.mxu0 0
        %2682 = vmatprep.subr.bf16.mxu0 0
        %2683 = vmatpush1.bf16.msra.mxu0 0
        %2684 = vmatprep.mubr.bf16.mxu0 0
        %2685 = vmatmul.mubr.bf16.gmra.mrb[0].mxu0 %v2650
        %v2686 = vpop.f32.mrb[0].mxu0
        %v2687 = vadd.f32 %v2635, %v2686
        %v2688 = vpop.f32.mrb[0].mxu0
        %v2689 = vpop.f32.mrb[0].mxu0
        %v2690 = vpop.f32.mrb[0].mxu0
        %2691 = vdwg.mxu0
        %v2692 = vmul.f32 %v2687, 0.5
        %v2693 = vmul.f32 %v2687, %v1721
        %v2694 = verf.f32.pop %v2693
        %v2695 = vadd.f32 %v2694, 1.0
        %v2696 = vmul.f32 %v2692, %v2695
        %v2697 = vpack.c.bf16 %v2696, %v2696
        %s2698 = scalar_lea.vmem %s14, 32
        %v2699 = vld [vmem:[%s2698] sm:$0xf]
        %v2700 = vld [vmem:[%s2698 + $0x4] sm:$0xf]
        %v2701 = vld [vmem:[%s2698 + $0x8] sm:$0xf]
        %v2702 = vld [vmem:[%s2698 + $0xc] sm:$0xf]
        %v2703 = vld [vmem:[%s2698 + $0x10] sm:$0xf]
        %v2704 = vld [vmem:[%s2698 + $0x14] sm:$0xf]
        %v2705 = vld [vmem:[%s2698 + $0x18] sm:$0xf]
        %v2706 = vld [vmem:[%s2698 + $0x1c] sm:$0xf]
        %s2707 = scalar_lea.vmem %s15, 1
        %v2708 = vld [vmem:[%s2707] sm:$0x1]
        %v2710 = vlaneseq
        %v2711 = vshrl.u32 %v2710, 7
        %v2712 = vsub.s32 0, %v2711
        %v2713 = vrot.slane %v2708, %v2712
        %v2723 = vunpack.c.l.b16 %v2699
        %v2724 = vunpack.c.l.b16 %v2700
        %v2725 = vunpack.c.l.b16 %v2701
        %v2726 = vunpack.c.l.b16 %v2702
        %v2727 = vunpack.c.l.b16 %v2703
        %v2728 = vunpack.c.l.b16 %v2704
        %v2729 = vunpack.c.l.b16 %v2705
        %v2730 = vunpack.c.l.b16 %v2706
        %v2731 = vpack.c.b16 %v2724, %v2723
        %v2732 = vpack.c.b16 %v2726, %v2725
        %v2733 = vpack.c.b16 %v2728, %v2727
        %v2734 = vpack.c.b16 %v2730, %v2729
        %v2740 = vsel %vm1766, %v2697, 0
        %2742 = vmatprep.subr.bf16.mxu0 0
        %2743 = vmatpush1.bf16.msra.mxu0 %v2731
        %2744 = vmatprep.subr.bf16.mxu0 0
        %2745 = vmatpush1.bf16.msra.mxu0 %v2732
        %2746 = vmatprep.subr.bf16.mxu0 0
        %2747 = vmatpush1.bf16.msra.mxu0 %v2733
        %2748 = vmatprep.subr.bf16.mxu0 0
        %2749 = vmatpush1.bf16.msra.mxu0 %v2734
        %2750 = vmatprep.subr.bf16.mxu0 0
        %2751 = vmatpush1.bf16.msra.mxu0 0
        %2752 = vmatprep.subr.bf16.mxu0 0
        %2753 = vmatpush1.bf16.msra.mxu0 0
        %2754 = vmatprep.subr.bf16.mxu0 0
        %2755 = vmatpush1.bf16.msra.mxu0 0
        %2756 = vmatprep.subr.bf16.mxu0 0
        %2757 = vmatpush1.bf16.msra.mxu0 0
        %2758 = vmatprep.subr.bf16.mxu0 0
        %2759 = vmatpush1.bf16.msra.mxu0 0
        %2760 = vmatprep.subr.bf16.mxu0 0
        %2761 = vmatpush1.bf16.msra.mxu0 0
        %2762 = vmatprep.subr.bf16.mxu0 0
        %2763 = vmatpush1.bf16.msra.mxu0 0
        %2764 = vmatprep.subr.bf16.mxu0 0
        %2765 = vmatpush1.bf16.msra.mxu0 0
        %2766 = vmatprep.subr.bf16.mxu0 0
        %2767 = vmatpush1.bf16.msra.mxu0 0
        %2768 = vmatprep.subr.bf16.mxu0 0
        %2769 = vmatpush1.bf16.msra.mxu0 0
        %2770 = vmatprep.subr.bf16.mxu0 0
        %2771 = vmatpush1.bf16.msra.mxu0 0
        %2772 = vmatprep.subr.bf16.mxu0 0
        %2773 = vmatpush1.bf16.msra.mxu0 0
        %2774 = vmatprep.mubr.bf16.mxu0 0
        %2775 = vmatmul.mubr.bf16.gmra.mrb[0].mxu0 %v2740
        %v2776 = vpop.f32.mrb[0].mxu0
        %v2777 = vadd.f32 %v2713, %v2776
        %v2778 = vpop.f32.mrb[0].mxu0
        %v2779 = vpop.f32.mrb[0].mxu0
        %v2780 = vpop.f32.mrb[0].mxu0
        %2781 = vdwg.mxu0
        %v2782 = vadd.f32 %v2777, %v2622
        %s2783 = scalar_lea.vmem %s16, 1
        %v2784 = vld [vmem:[%s2783] sm:$0x1]
        %s2785 = scalar_lea.vmem %s17, 1
        %v2786 = vld [vmem:[%s2785] sm:$0x1]
        %v2787 = vsel %vm839, %v2782, 0.0
        %2788 = vadd.xlane.f32.xlu0 %v2787
        %v2789 = vpop.xlane.xlu0 %2788
        %v2790 = vmul.f32 %v2789, %v843
        %v2791 = vsub.f32 %v2782, %v2790
        %v2792 = vmul.f32 %v2791, %v2791
        %v2793 = vsel %vm839, %v2792, 0.0
        %2794 = vadd.xlane.f32.xlu0 %v2793
        %v2795 = vpop.xlane.xlu0 %2794
        %v2796 = vmul.f32 %v2795, %v843
        %v2797 = vadd.f32 %v2796, 1e-12
        %v2798 = vrsqrt.pop %v2797
        %v2799 = vmul.f32 %v2797, %v2798
        %vm2800 = vcmp.eq.f32.partialorder %v2797, inf
        %v2801 = vsel %vm2800, %v2797, %v2799
        %vm2802 = vcmp.eq.f32.partialorder %v2797, 0.0
        %v2803 = vand.u32 %v2797, 2147483648
        %v2804 = vsel %vm2802, %v2803, %v2801
        %v2805 = vrcp.pop %v2804
        %v2806 = vmul.f32 %v2791, %v2805
        %v2808 = vlaneseq
        %v2809 = vshrl.u32 %v2808, 7
        %v2810 = vsub.s32 0, %v2809
        %v2811 = vrot.slane %v2784, %v2810
        %v2813 = vmul.f32 %v2811, %v2806
        %v2815 = vlaneseq
        %v2816 = vshrl.u32 %v2815, 7
        %v2817 = vsub.s32 0, %v2816
        %v2818 = vrot.slane %v2786, %v2817
        %v2820 = vadd.f32 %v2813, %v2818
        %s2821 = scalar_lea.vmem %s824, 8 [#allocation17]
        %2822 = vst.msk [vmem:[%s2821] sm:$0xff] %vm839, %v2820
        %v2823 = vpack.c.bf16 %v2820, %v2820
        %v2824 = vld [vmem:[%s18] sm:$0xf]
        %v2825 = vld [vmem:[%s18 + $0x4] sm:$0xf]
        %v2826 = vld [vmem:[%s18 + $0x8] sm:$0xf]
        %v2827 = vld [vmem:[%s18 + $0xc] sm:$0xf]
        %v2828 = vld [vmem:[%s19] sm:$0x1]
        %v2833 = vunpack.c.l.b16 %v2824
        %v2834 = vunpack.c.l.b16 %v2825
        %v2835 = vunpack.c.l.b16 %v2826
        %v2836 = vunpack.c.l.b16 %v2827
        %v2837 = vpack.c.b16 %v2834, %v2833
        %v2838 = vpack.c.b16 %v2836, %v2835
        %v2842 = vsel %vm839, %v2823, 0
        %2844 = vmatprep.subr.bf16.mxu0 0
        %2845 = vmatpush1.bf16.msra.mxu0 %v2837
        %2846 = vmatprep.subr.bf16.mxu0 0
        %2847 = vmatpush1.bf16.msra.mxu0 %v2838
        %2848 = vmatprep.subr.bf16.mxu0 0
        %2849 = vmatpush1.bf16.msra.mxu0 0
        %2850 = vmatprep.subr.bf16.mxu0 0
        %2851 = vmatpush1.bf16.msra.mxu0 0
        %2852 = vmatprep.subr.bf16.mxu0 0
        %2853 = vmatpush1.bf16.msra.mxu0 0
        %2854 = vmatprep.subr.bf16.mxu0 0
        %2855 = vmatpush1.bf16.msra.mxu0 0
        %2856 = vmatprep.subr.bf16.mxu0 0
        %2857 = vmatpush1.bf16.msra.mxu0 0
        %2858 = vmatprep.subr.bf16.mxu0 0
        %2859 = vmatpush1.bf16.msra.mxu0 0
        %2860 = vmatprep.subr.bf16.mxu0 0
        %2861 = vmatpush1.bf16.msra.mxu0 0
        %2862 = vmatprep.subr.bf16.mxu0 0
        %2863 = vmatpush1.bf16.msra.mxu0 0
        %2864 = vmatprep.subr.bf16.mxu0 0
        %2865 = vmatpush1.bf16.msra.mxu0 0
        %2866 = vmatprep.subr.bf16.mxu0 0
        %2867 = vmatpush1.bf16.msra.mxu0 0
        %2868 = vmatprep.subr.bf16.mxu0 0
        %2869 = vmatpush1.bf16.msra.mxu0 0
        %2870 = vmatprep.subr.bf16.mxu0 0
        %2871 = vmatpush1.bf16.msra.mxu0 0
        %2872 = vmatprep.subr.bf16.mxu0 0
        %2873 = vmatpush1.bf16.msra.mxu0 0
        %2874 = vmatprep.subr.bf16.mxu0 0
        %2875 = vmatpush1.bf16.msra.mxu0 0
        %2876 = vmatprep.mubr.bf16.mxu0 0
        %2877 = vmatmul.mubr.bf16.gmra.mrb[0].mxu0 %v2842
        %v2878 = vpop.f32.mrb[0].mxu0
        %v2879 = vadd.f32 %v2828, %v2878
        %v2880 = vpop.f32.mrb[0].mxu0
        %v2881 = vpop.f32.mrb[0].mxu0
        %v2882 = vpop.f32.mrb[0].mxu0
        %2883 = vdwg.mxu0
        %v2884 = vtanh.pop %v2879
        %vm2885 = vcmask 253952
        %2886 = vst.msk [vmem:[%s830] sm:$0x1] %vm2885, %v2884
        %s2887 = sand.u32 %s491, 1
        %s2888 = scalar_lea.sflag [#allocation4], %s2887
        %s2889 = sand.u32 %s491, 1
        %s2890 = smul.addr %s2889, 16
        %s2891 = scalar_lea.vmem [#allocation17], %s2890
        %s2892 = sand.u32 %s517, 1
        %s2893 = scalar_lea.sflag [#allocation19], %s2892
        %s2894 = sand.u32 %s517, 1
        %s2895 = scalar_lea.vmem [#allocation18], %s2894
        // Predicated region
        $region137: #{tpu_custom_call.1} parent=99 // pred_check
          %p2896 = pneg %p501
        $region138: #{tpu_custom_call.1} parent=99 // pred_check_branch
          %2898 = sbr.rel (%p2896) target = $region140
        $region139: #{tpu_custom_call.1} parent=99 // pred_region
          %s2900 = ssub.s32 256, 256
          %2901 = vsyncadd %s2888, %s2900
          %s2902 = smul.addr %s48, 2
          %s2903 = smul.addr %s2902, 128
          %s2904 = scalar_lea.hbm %s20, %s2903
          %s2905 = sshll.u32 %s2891, 4
          %s2906 = int_to_ptr.vmem [resolvable:$true] %s2905
          %2911 = dma.vmem_to_hbm [thread:$0]  %s2906, 256, %s2904, %s2888, 128, 128, 8
        $region140: #{tpu_custom_call.1} parent=99 // pred_fallthru
          _
        // Predicated region
        $region141: #{tpu_custom_call.1} parent=99 // pred_check
          %p2912 = pneg %p527
        $region142: #{tpu_custom_call.1} parent=99 // pred_check_branch
          %2914 = sbr.rel (%p2912) target = $region144
        $region143: #{tpu_custom_call.1} parent=99 // pred_region
          %s2916 = ssub.s32 16, 16
          %2917 = vsyncadd %s2893, %s2916
          %s2918 = smul.addr %s48, 16
          %s2919 = scalar_lea.hbm %s21, %s2918
          %s2921 = sshll.u32 %s2895, 4
          %s2922 = int_to_ptr.vmem [resolvable:$true] %s2921
          %2924 = dma.vmem_to_hbm [thread:$0]  %s2922, 16, %s2919, %s2893
        $region144: #{tpu_custom_call.1} parent=99 // pred_fallthru
          _
      $region100: #{tpu_custom_call.1} parent=5 // pred_fallthru
        _
      %p2925 = scmp.le.s32.totalorder 2, %s43
      // Predicated region
      $region145: #{tpu_custom_call.1} parent=5 // pred_check
        %p2926 = pneg %p2925
      $region146: #{tpu_custom_call.1} parent=5 // pred_check_branch
        %2928 = sbr.rel (%p2926) target = $region148
      $region147: #{tpu_custom_call.1} parent=5 // pred_region
        %s2929 = ssub.s32 %s43, 2
        // Predicated region
        $region149: #{tpu_custom_call.1} parent=147 // pred_check
          %p2930 = pneg %p507
        $region150: #{tpu_custom_call.1} parent=147 // pred_check_branch
          %2932 = sbr.rel (%p2930) target = $region152
        $region151: #{tpu_custom_call.1} parent=147 // pred_region
          %s2933 = sand.u32 %s492, 1
          %s2934 = scalar_lea.sflag [#allocation4], %s2933
          %s2935 = sand.u32 %s492, 1
          %s2936 = smul.addr %s2935, 16
          %s2937 = scalar_lea.vmem [#allocation17], %s2936
          %2938 = dma.done %s2934, 256
        $region152: #{tpu_custom_call.1} parent=147 // pred_fallthru
          _
        // Predicated region
        $region153: #{tpu_custom_call.1} parent=147 // pred_check
          %p2939 = pneg %p533
        $region154: #{tpu_custom_call.1} parent=147 // pred_check_branch
          %2941 = sbr.rel (%p2939) target = $region156
        $region155: #{tpu_custom_call.1} parent=147 // pred_region
          %s2942 = sand.u32 %s518, 1
          %s2943 = scalar_lea.sflag [#allocation19], %s2942
          %s2944 = sand.u32 %s518, 1
          %s2945 = scalar_lea.vmem [#allocation18], %s2944
          %2946 = dma.done %s2943, 16
        $region156: #{tpu_custom_call.1} parent=147 // pred_fallthru
          _
      $region148: #{tpu_custom_call.1} parent=5 // pred_fallthru
        _
    $region6: #{tpu_custom_call.1} parent=1 // loop_footer
      %s47 = sadd.s32 1, %s43
    $region7: #{tpu_custom_call.1} parent=1 // loop_footer_branch
      %42 = sbr.rel target = $region3
    $region8: #{tpu_custom_call.1} parent=1 // loop_exit
      _
    %2947 = vsyncpa [#allocation3], 1
    %s2948 = scalar_lea.sflag [#allocation3], 1
    %2949 = vsyncpa %s2948, 1
    %2950 = vsyncpa [#allocation6], 1
    %s2951 = scalar_lea.sflag [#allocation6], 1
    %2952 = vsyncpa %s2951, 1
    %2953 = vsyncpa [#allocation9], 1
    %2954 = vsyncpa [#allocation12], 1
    %2955 = vsyncpa [#allocation15], 1
    %2956 = vsyncpa [#allocation4], 1
    %s2957 = scalar_lea.sflag [#allocation4], 1
    %2958 = vsyncpa %s2957, 1
    %2959 = vsyncpa [#allocation19], 1
    %s2960 = scalar_lea.sflag [#allocation19], 1
    %2961 = vsyncpa %s2960, 1

</llo_original>
